<compile_context>
chip_gen: v5e
topology: v5e:2x2
jax: 0.10.0
libtpu: 0.0.40
codegen_flags: <defaults>
</compile_context>

<pallas_src>
import functools

import jax
import jax.numpy as jnp
from jax.experimental import pallas as pl
from jax.experimental.pallas import tpu as pltpu


_BN_EPS = 1e-5
_ACT_DTYPE = jnp.bfloat16          # activations / MXU operands (f32 accumulate)
_LANE = 128                        # channel padding (lane-dense stores)
_SUBLANE = 16                      # time padding (bf16 sublane packing)
_MXU_ROWS = 128                    # target LHS rows per step (128 fills a v5e pass;
                                   # v6e/v7x prefer 256 when batch allows)
_VMEM_LIMIT = 32 * 1024 * 1024     # safe on v5e/v6e/v7x; re-derive for big real shapes


# ----------------------------------------------------------------------------
# Small helpers
# ----------------------------------------------------------------------------

def _round_up(n, m):
    return ((n + m - 1) // m) * m


def _rows_per_step(batch, ts):
    """Batch rows stacked per grid step so gb*ts roughly fills one MXU pass."""
    gb = max(1, min(batch, -(-_MXU_ROWS // ts)))
    while batch % gb:
        gb -= 1
    return gb


def _prelu(y, alpha):
    return jnp.where(y >= 0.0, y, alpha * y)


def _compiler_params():
    # TODO(synk): on v7x prefer >=2 grid steps (smaller gb) so both TensorCores run.
    return pltpu.CompilerParams(
        dimension_semantics=("parallel",),
        vmem_limit_bytes=_VMEM_LIMIT)


# ----------------------------------------------------------------------------
# Pallas kernels
# ----------------------------------------------------------------------------

def _make_transition_kernel(*, nseg, seg_ws, gb):
    """1x1 conv over the (virtually concatenated) feature segments + PReLU."""
    def kernel(*refs):
        segs = refs[:nseg]
        w_ref, a_ref, o_ref = refs[nseg], refs[nseg + 1], refs[nseg + 2]
        for g in range(gb):
            acc = None
            off = 0
            for s in range(nseg):
                w = seg_ws[s]
                c = jnp.dot(segs[s][g], w_ref[pl.ds(off, w), :],
                            preferred_element_type=jnp.float32)
                acc = c if acc is None else acc + c
                off += w
            o_ref[g] = _prelu(acc, a_ref[...]).astype(o_ref.dtype)
    return kernel


def _make_layer_kernel(*, nseg, seg_ws, gb, ts, t_real, k, d, has_ds):
    """One fused _ConvBatchChompRelu layer:
       stage-0 conv (+BN fold +chomp +PReLU) -> VMEM scratch ->
       stage-1 conv (+BN fold +chomp +PReLU) -> (+identity / 1x1-downsample residual)
       -> final PReLU.  All kernel-size branches are pre-fused along Cout."""
    pad = (k - 1) * d // 2                    # symmetric chomp == 'same' conv halo
    halo = _round_up(max(pad, 1), 8)          # sublane-aligned halo (>= pad)
    tp = ts + 2 * halo                        # per-batch-row padded span
    rows = gb * tp                            # scratch rows (batch rows stacked)
    lout = rows - 2 * halo                    # rows produced by each conv stage

    def kernel(*refs):
        segs = refs[:nseg]
        i = nseg
        w0, sc0, sh0, a0 = refs[i], refs[i + 1], refs[i + 2], refs[i + 3]
        i += 4
        w1, sc1, sh1, a1 = refs[i], refs[i + 1], refs[i + 2], refs[i + 3]
        i += 4
        if has_ds:
            dsw, dsb = refs[i], refs[i + 1]
            i += 2
        afin, o_ref = refs[i], refs[i + 1]
        xcat, o0p = refs[i + 2], refs[i + 3]

        # 1) Gather the dense-connectivity inputs into one halo-padded VMEM slab
        #    (replaces the HBM torch.cat + external jnp.pad of the layer input).
        for g in range(gb):
            base = g * tp
            off = 0
            for s in range(nseg):
                w = seg_ws[s]
                seg_g = segs[s][g]                                   # (ts, w) bf16
                xcat[pl.ds(base, tp), pl.ds(off, w)] = jnp.pad(
                    seg_g, ((halo, halo), (0, 0)))
                off += w

        # 2) Stage-0: fused-branch dilated conv as K accumulated MXU dots.
        acc0 = None
        for j in range(k):
            lhs = xcat[pl.ds(halo - pad + j * d, lout), :]
            c = jnp.dot(lhs, w0[j], preferred_element_type=jnp.float32)
            acc0 = c if acc0 is None else acc0 + c
        out0 = _prelu(acc0 * sc0[...] + sh0[...], a0[...])           # (lout, G) f32

        # 3) Stash stage-0 output halo-padded in VMEM (rows >= t_real zeroed so the
        #    second conv sees exactly the reference zero padding).
        for g in range(gb):
            blk = out0[g * tp:g * tp + t_real]
            blk = jnp.pad(blk, ((halo, tp - halo - t_real), (0, 0)))
            o0p[pl.ds(g * tp, tp), :] = blk.astype(o0p.dtype)

        # 4) Stage-1 conv + BN fold + PReLU.
        acc1 = None
        for j in range(k):
            lhs = o0p[pl.ds(halo - pad + j * d, lout), :]
            c = jnp.dot(lhs, w1[j], preferred_element_type=jnp.float32)
            acc1 = c if acc1 is None else acc1 + c
        y1 = _prelu(acc1 * sc1[...] + sh1[...], a1[...])             # (lout, G) f32

        # 5) Residual (1x1 downsample fused in-kernel, or identity), final PReLU, store.
        if has_ds:
            res = jnp.dot(xcat[pl.ds(halo, lout), :], dsw[...],
                          preferred_element_type=jnp.float32) + dsb[...]
        for g in range(gb):
            yg = y1[g * tp:g * tp + t_real]
            if has_ds:
                rg = res[g * tp:g * tp + t_real]
            else:
                rg = segs[0][g][:t_real].astype(jnp.float32)
            og = _prelu(yg + rg, afin[...])
            og = jnp.pad(og, ((0, ts - t_real), (0, 0)))   # keep zero time-pad invariant
            o_ref[g] = og.astype(o_ref.dtype)
    return kernel


def _scale_shift_kernel(x_ref, scale_ref, shift_ref, o_ref):
    o_ref[...] = (x_ref[...].astype(jnp.float32) * scale_ref[...]
                  + shift_ref[...]).astype(o_ref.dtype)


# ----------------------------------------------------------------------------
# Kernel wrappers
# ----------------------------------------------------------------------------

def transition_call(segs, params, gb, ts):
    bsz = segs[0].shape[0]
    seg_ws = tuple(int(s.shape[2]) for s in segs)
    cin_tot = sum(seg_ws)
    r_out = int(params["w"].shape[1])
    assert int(params["w"].shape[0]) == cin_tot
    kern = _make_transition_kernel(nseg=len(segs), seg_ws=seg_ws, gb=gb)
    in_specs = [pl.BlockSpec((gb, ts, w), lambda b: (b, 0, 0)) for w in seg_ws]
    in_specs += [pl.BlockSpec((cin_tot, r_out), lambda b: (0, 0)),
                 pl.BlockSpec((1, r_out), lambda b: (0, 0))]
    return pl.pallas_call(
        kern,
        out_shape=jax.ShapeDtypeStruct((bsz, ts, r_out), _ACT_DTYPE),
        grid=(bsz // gb,),
        in_specs=in_specs,
        out_specs=pl.BlockSpec((gb, ts, r_out), lambda b: (b, 0, 0)),
        compiler_params=_compiler_params(),
    )(*segs, params["w"], params["alpha"])


def layer_call(segs, lp, gb, ts, t_real, dilation):
    bsz = segs[0].shape[0]
    seg_ws = tuple(int(s.shape[2]) for s in segs)
    cin_tot = sum(seg_ws)
    k, cin_w, g_out = (int(v) for v in lp["w0"].shape)
    assert cin_w == cin_tot
    assert ((k - 1) * dilation) % 2 == 0, "symmetric chomp requires odd kernel sizes"
    has_ds = lp["ds_w"] is not None
    if not has_ds:
        assert len(segs) == 1 and seg_ws[0] == g_out
    pad = (k - 1) * dilation // 2
    halo = _round_up(max(pad, 1), 8)
    rows = gb * (ts + 2 * halo)

    kern = _make_layer_kernel(nseg=len(segs), seg_ws=seg_ws, gb=gb, ts=ts,
                              t_real=t_real, k=k, d=dilation, has_ds=has_ds)

    vec = lambda: pl.BlockSpec((1, g_out), lambda b: (0, 0))
    in_specs = [pl.BlockSpec((gb, ts, w), lambda b: (b, 0, 0)) for w in seg_ws]
    args = list(segs)
    in_specs += [pl.BlockSpec((k, cin_tot, g_out), lambda b: (0, 0, 0)),
                 vec(), vec(), vec(),
                 pl.BlockSpec((k, g_out, g_out), lambda b: (0, 0, 0)),
                 vec(), vec(), vec()]
    args += [lp["w0"], lp["scale0"], lp["shift0"], lp["alpha0"],
             lp["w1"], lp["scale1"], lp["shift1"], lp["alpha1"]]
    if has_ds:
        in_specs += [pl.BlockSpec((cin_tot, g_out), lambda b: (0, 0)), vec()]
        args += [lp["ds_w"], lp["ds_b"]]
    in_specs += [vec()]
    args += [lp["alpha_final"]]

    return pl.pallas_call(
        kern,
        out_shape=jax.ShapeDtypeStruct((bsz, ts, g_out), _ACT_DTYPE),
        grid=(bsz // gb,),
        in_specs=in_specs,
        out_specs=pl.BlockSpec((gb, ts, g_out), lambda b: (b, 0, 0)),
        scratch_shapes=[pltpu.VMEM((rows, cin_tot), _ACT_DTYPE),
                        pltpu.VMEM((rows, g_out), _ACT_DTYPE)],
        compiler_params=_compiler_params(),
    )(*args)


def scale_shift_call(x, scale, shift, gb, ts):
    bsz, _, width = (int(v) for v in x.shape)
    # TODO(synk): when T >= 128, emit (B, C, T) tiles directly here to delete the
    # final transpose pass.
    return pl.pallas_call(
        _scale_shift_kernel,
        out_shape=jax.ShapeDtypeStruct((bsz, ts, width), jnp.float32),
        grid=(bsz // gb,),
        in_specs=[pl.BlockSpec((gb, ts, width), lambda b: (b, 0, 0)),
                  pl.BlockSpec((1, width), lambda b: (0, 0)),
                  pl.BlockSpec((1, width), lambda b: (0, 0))],
        out_specs=pl.BlockSpec((gb, ts, width), lambda b: (b, 0, 0)),
        compiler_params=_compiler_params(),
    )(x, scale, shift)


# ----------------------------------------------------------------------------
# Raw (PyTorch-structured) parameter construction — deterministic, synthetic
# ----------------------------------------------------------------------------

def _uniform(key, shape, lo=-0.1, hi=0.1):
    return jax.random.uniform(key, shape, jnp.float32, lo, hi)


def _init_branch(key, cin, cout, k):
    ks = jax.random.split(key, 7)
    return dict(
        w=_uniform(ks[0], (k, cin, cout)),           # (tap, cin, cout)
        bias=_uniform(ks[1], (cout,)),
        gamma=1.0 + _uniform(ks[2], (cout,)),
        beta=_uniform(ks[3], (cout,)),
        mean=_uniform(ks[4], (cout,)),
        var=jax.random.uniform(ks[5], (cout,), jnp.float32, 0.5, 1.5),
        alpha=0.25 + _uniform(ks[6], (cout,)),
    )


def _init_layer(key, n_in, n_out, ksizes):
    nb = n_out // len(ksizes)
    assert nb * len(ksizes) == n_out, "growth rate must divide by num kernel sizes"
    ks = iter(jax.random.split(key, 2 * len(ksizes) + 3))
    b0 = [_init_branch(next(ks), n_in, nb, kk) for kk in ksizes]
    b1 = [_init_branch(next(ks), n_out, nb, kk) for kk in ksizes]
    ds = None
    if n_in != n_out:
        ds = dict(w=_uniform(next(ks), (n_in, n_out)), b=_uniform(next(ks), (n_out,)))
    else:
        next(ks), next(ks)
    return dict(branches0=b0, branches1=b1, downsample=ds,
                alpha_final=0.25 + _uniform(next(ks), (n_out,)))


def init_raw_params(key, block_config, growth_rate_set, input_size, reduced_size,
                    kernel_size_set):
    keys = iter(jax.random.split(key, 256))
    raw = dict(
        transition0=dict(w=_uniform(next(keys), (input_size, reduced_size)),
                         alpha=0.25 + _uniform(next(keys), (reduced_size,))),
        blocks=[], transitions=[])
    num_features = reduced_size
    for bi, num_layers in enumerate(block_config):
        growth = growth_rate_set[bi]
        layers = [_init_layer(next(keys), num_features + li * growth, growth,
                              tuple(kernel_size_set)) for li in range(num_layers)]
        raw["blocks"].append(dict(layers=layers))
        num_features = num_features + num_layers * growth
        if bi != len(block_config) - 1:
            raw["transitions"].append(
                dict(w=_uniform(next(keys), (num_features, reduced_size)),
                     alpha=0.25 + _uniform(next(keys), (reduced_size,))))
            num_features = reduced_size
    raw["norm"] = dict(
        gamma=1.0 + _uniform(next(keys), (num_features,)),
        beta=_uniform(next(keys), (num_features,)),
        mean=_uniform(next(keys), (num_features,)),
        var=jax.random.uniform(next(keys), (num_features,), jnp.float32, 0.5, 1.5))
    return raw, num_features


# ----------------------------------------------------------------------------
# Packing: branch fusion, BN folding, 128-padded / segment-scattered weights
# ----------------------------------------------------------------------------

def _pad_cols(a, new_cols):
    return jnp.pad(a, [(0, 0)] * (a.ndim - 1) + [(0, new_cols - a.shape[-1])])


def _scatter_rows(a, real_ws, pad_ws):
    """Place rows (axis=-2) of each real input segment at the start of its padded slot
    so weights line up with the 128-padded activation-segment layout."""
    parts, off = [], 0
    for rw, pw in zip(real_ws, pad_ws):
        seg = a[..., off:off + rw, :]
        cfg = [(0, 0)] * a.ndim
        cfg[-2] = (0, pw - rw)
        parts.append(jnp.pad(seg, cfg))
        off += rw
    return jnp.concatenate(parts, axis=-2)


def _fuse_branches(branches, ksizes):
    """Fuse the per-kernel-size branches of one stage into a single Kmax-tap conv
    (smaller kernels zero-padded symmetrically == identical 'same' conv), folding conv
    bias + eval BatchNorm into per-channel scale/shift."""
    kmax = max(ksizes)
    ws, scales, shifts, alphas = [], [], [], []
    for bp, kk in zip(branches, ksizes):
        lo = (kmax - kk) // 2
        ws.append(jnp.pad(bp["w"], ((lo, kmax - kk - lo), (0, 0), (0, 0))))
        s = bp["gamma"] / jnp.sqrt(bp["var"] + _BN_EPS)
        scales.append(s)
        shifts.append(bp["beta"] + s * (bp["bias"] - bp["mean"]))
        alphas.append(bp["alpha"])
    return (jnp.concatenate(ws, axis=2), jnp.concatenate(scales),
            jnp.concatenate(shifts), jnp.concatenate(alphas))


def _vec(v, pad_w):
    return jnp.pad(v, (0, pad_w - v.shape[0])).reshape(1, pad_w).astype(jnp.float32)


def pack_params(raw, block_config, growth_rate_set, reduced_size, kernel_size_set):
    ksizes = tuple(kernel_size_set)
    assert all(kk % 2 == 1 for kk in ksizes), \
        "even kernel sizes would break the symmetric-chomp == same-conv fusion"
    red_pad = _round_up(reduced_size, _LANE)
    packed = dict(
        transition0=dict(
            w=_pad_cols(raw["transition0"]["w"], red_pad).astype(_ACT_DTYPE),
            alpha=_vec(raw["transition0"]["alpha"], red_pad)),
        blocks=[], transitions=[])
    seg_real = seg_pad = None
    for bi, num_layers in enumerate(block_config):
        growth = growth_rate_set[bi]
        g_pad = _round_up(growth, _LANE)
        seg_real = [reduced_size] + [growth] * num_layers
        seg_pad = [red_pad] + [g_pad] * num_layers
        layers_p = []
        for li in range(num_layers):
            lp = raw["blocks"][bi]["layers"][li]
            in_real, in_pad = seg_real[:li + 1], seg_pad[:li + 1]
            w0, sc0, sh0, a0 = _fuse_branches(lp["branches0"], ksizes)
            w0 = _pad_cols(_scatter_rows(w0, in_real, in_pad), g_pad)
            w1, sc1, sh1, a1 = _fuse_branches(lp["branches1"], ksizes)
            w1 = _pad_cols(_scatter_rows(w1, [growth], [g_pad]), g_pad)
            if lp["downsample"] is not None:
                dsw = _pad_cols(_scatter_rows(lp["downsample"]["w"], in_real, in_pad),
                                g_pad).astype(_ACT_DTYPE)
                dsb = _vec(lp["downsample"]["b"], g_pad)
            else:
                dsw, dsb = None, None
            layers_p.append(dict(
                w0=w0.astype(_ACT_DTYPE), scale0=_vec(sc0, g_pad),
                shift0=_vec(sh0, g_pad), alpha0=_vec(a0, g_pad),
                w1=w1.astype(_ACT_DTYPE), scale1=_vec(sc1, g_pad),
                shift1=_vec(sh1, g_pad), alpha1=_vec(a1, g_pad),
                ds_w=dsw, ds_b=dsb,
                alpha_final=_vec(lp["alpha_final"], g_pad)))
        packed["blocks"].append(dict(layers=layers_p))
        if bi != len(block_config) - 1:
            tr = raw["transitions"][bi]
            packed["transitions"].append(dict(
                w=_pad_cols(_scatter_rows(tr["w"], seg_real, seg_pad),
                            red_pad).astype(_ACT_DTYPE),
                alpha=_vec(tr["alpha"], red_pad)))
    # Trailing BatchNorm (eval) split per segment of the last block.
    n = raw["norm"]
    scale = n["gamma"] / jnp.sqrt(n["var"] + _BN_EPS)
    shift = n["beta"] - scale * n["mean"]
    norm_segs, off = [], 0
    for rw, pw in zip(seg_real, seg_pad):
        norm_segs.append(dict(scale=_vec(scale[off:off + rw], pw),
                              shift=_vec(shift[off:off + rw], pw)))
        off += rw
    packed["norm_segments"] = norm_segs
    static = dict(last_seg_real=tuple(seg_real))
    return packed, static


# ----------------------------------------------------------------------------
# Forward pass (mirrors DenseTCN_feature.forward, eval mode)
# ----------------------------------------------------------------------------

def dense_tcn_feature_forward(params, x, lengths=None, B=None, *,
                              dilation_size_set, last_seg_real):
    """x: (B, T, C_in) channel-last (absorbs the PyTorch x.transpose(1, 2)).
    Returns (B, C_out, T) to match the PyTorch module output layout."""
    del lengths, B  # unused by the reference forward
    dset = tuple(dilation_size_set)
    bsz, t_real, _ = x.shape
    ts = _round_up(t_real, _SUBLANE)
    gb = _rows_per_step(bsz, ts)
    xw = jnp.pad(x.astype(_ACT_DTYPE), ((0, 0), (0, ts - t_real), (0, 0)))

    h = transition_call([xw], params["transition0"], gb, ts)
    segs = [h]
    nblocks = len(params["blocks"])
    for bi, block in enumerate(params["blocks"]):
        segs = [h]
        for li, lp in enumerate(block["layers"]):
            segs.append(layer_call(segs, lp, gb, ts, t_real, dset[li % len(dset)]))
        if bi != nblocks - 1:
            h = transition_call(segs, params["transitions"][bi], gb, ts)

    # Trailing BatchNorm (per segment), then the single final layout materialization.
    pieces = []
    for seg, ns, real_w in zip(segs, params["norm_segments"], last_seg_real):
        y = scale_shift_call(seg, ns["scale"], ns["shift"], gb, ts)
        pieces.append(y[:, :t_real, :real_w])
    out = jnp.concatenate(pieces, axis=-1)
    return jnp.transpose(out, (0, 2, 1))                 # (B, C_out, T)


# ----------------------------------------------------------------------------
# Pure-JAX f32 reference (unfused, PyTorch-structured) for correctness checking
# ----------------------------------------------------------------------------

def _ref_same_conv(x, w, d):
    k = w.shape[0]
    pad = (k - 1) * d // 2
    t = x.shape[1]
    xp = jnp.pad(x, ((0, 0), (pad, pad), (0, 0)))
    out = None
    for j in range(k):
        c = jnp.einsum("btc,co->bto", xp[:, j * d:j * d + t, :], w[j])
        out = c if out is None else out + c
    return out


def _ref_branch(x, bp, d):
    y = _ref_same_conv(x, bp["w"], d) + bp["bias"]
    y = (y - bp["mean"]) / jnp.sqrt(bp["var"] + _BN_EPS) * bp["gamma"] + bp["beta"]
    return _prelu(y, bp["alpha"])


def _ref_layer(x, lp, d):
    out0 = jnp.concatenate([_ref_branch(x, bp, d) for bp in lp["branches0"]], axis=-1)
    out1 = jnp.concatenate([_ref_branch(out0, bp, d) for bp in lp["branches1"]], axis=-1)
    if lp["downsample"] is None:
        res = x
    else:
        res = jnp.einsum("btc,co->bto", x, lp["downsample"]["w"]) + lp["downsample"]["b"]
    return _prelu(out1 + res, lp["alpha_final"])


def _ref_transition(x, tp):
    return _prelu(jnp.einsum("btc,co->bto", x, tp["w"]), tp["alpha"])


def dense_tcn_reference(raw, x, dilation_size_set):
    dset = tuple(dilation_size_set)
    h = _ref_transition(x, raw["transition0"])
    nblocks = len(raw["blocks"])
    feats = h
    for bi, block in enumerate(raw["blocks"]):
        feats = h
        for li, lp in enumerate(block["layers"]):
            out = _ref_layer(feats, lp, dset[li % len(dset)])
            feats = jnp.concatenate([feats, out], axis=-1)
        if bi != nblocks - 1:
            h = _ref_transition(feats, raw["transitions"][bi])
    n = raw["norm"]
    scale = n["gamma"] / jnp.sqrt(n["var"] + _BN_EPS)
    shift = n["beta"] - scale * n["mean"]
    return jnp.transpose(feats * scale + shift, (0, 2, 1))


# ----------------------------------------------------------------------------
# Demo
# ----------------------------------------------------------------------------

if __name__ == "__main__":
    key = jax.random.PRNGKey(0)
    k_param, k_x = jax.random.split(key)

    # Small synthetic config consistent with the module's constructor.
    B, T, input_size = 2, 8, 16
    block_config = [2, 2]
    growth_rate_set = [8, 8]
    reduced_size = 8
    kernel_size_set = [3, 5]
    dilation_size_set = [1, 2]
    # dropout=0.2 (identity in eval), relu_type='prelu', squeeze_excitation=False.
    # TODO(synk): squeeze_excitation=True branch (SELayer) not implemented.

    raw, num_features = init_raw_params(
        k_param, block_config, growth_rate_set, input_size, reduced_size,
        kernel_size_set)
    assert num_features == reduced_size + block_config[-1] * growth_rate_set[-1]
    packed, static = pack_params(raw, block_config, growth_rate_set, reduced_size,
                                 kernel_size_set)

    x = jax.random.normal(k_x, (B, T, input_size), jnp.float32)
    lengths = jnp.full((B,), T, jnp.int32)

    fwd = jax.jit(functools.partial(
        dense_tcn_feature_forward,
        dilation_size_set=tuple(dilation_size_set),
        last_seg_real=static["last_seg_real"]))
    out = jax.block_until_ready(fwd(packed, x, lengths, B))

    assert out.shape == (B, num_features, T), out.shape
    assert bool(jnp.all(jnp.isfinite(out)))

    # Tolerance check vs. the pure-JAX f32 reference (bf16 MXU operands -> ~1e-2 rel).
    ref = dense_tcn_reference(raw, x, tuple(dilation_size_set))
    max_err = float(jnp.max(jnp.abs(out.astype(jnp.float32) - ref)))
    assert max_err < 5e-2, f"max abs error vs reference: {max_err}"

    print("KERNEL_OK")
</pallas_src>

<mosaic_0001>
module attributes {stable_mosaic.version = 11 : i64} {
  func.func @kernel(%arg0: i32, %arg1: memref<2x16x128xbf16, #tpu.memory_space<vmem>>, %arg2: memref<5x128x128xbf16, #tpu.memory_space<vmem>>, %arg3: memref<1x128xf32, #tpu.memory_space<vmem>>, %arg4: memref<1x128xf32, #tpu.memory_space<vmem>>, %arg5: memref<1x128xf32, #tpu.memory_space<vmem>>, %arg6: memref<5x128x128xbf16, #tpu.memory_space<vmem>>, %arg7: memref<1x128xf32, #tpu.memory_space<vmem>>, %arg8: memref<1x128xf32, #tpu.memory_space<vmem>>, %arg9: memref<1x128xf32, #tpu.memory_space<vmem>>, %arg10: memref<1x128xf32, #tpu.memory_space<vmem>>, %arg11: memref<2x16x128xbf16, #tpu.memory_space<vmem>>, %arg12: memref<64x128xbf16, #tpu.memory_space<vmem>>, %arg13: memref<64x128xbf16, #tpu.memory_space<vmem>>) attributes {dimension_semantics = [#tpu.dimension_semantics<parallel>], iteration_bounds = array<i64: 1>, scalar_prefetch = 0 : i64, scratch_operands = 2 : i64, tpu.core_type = #tpu.core_type<tc>, window_params = [{transform_indices = @transform_0, window_bounds = array<i64: 2, 16, 128>}, {pipeline_mode = #tpu.pipeline_mode<synchronous>, transform_indices = @transform_1, window_bounds = array<i64: 5, 128, 128>}, {pipeline_mode = #tpu.pipeline_mode<synchronous>, transform_indices = @transform_2, window_bounds = array<i64: 1, 128>}, {pipeline_mode = #tpu.pipeline_mode<synchronous>, transform_indices = @transform_3, window_bounds = array<i64: 1, 128>}, {pipeline_mode = #tpu.pipeline_mode<synchronous>, transform_indices = @transform_4, window_bounds = array<i64: 1, 128>}, {pipeline_mode = #tpu.pipeline_mode<synchronous>, transform_indices = @transform_5, window_bounds = array<i64: 5, 128, 128>}, {pipeline_mode = #tpu.pipeline_mode<synchronous>, transform_indices = @transform_6, window_bounds = array<i64: 1, 128>}, {pipeline_mode = #tpu.pipeline_mode<synchronous>, transform_indices = @transform_7, window_bounds = array<i64: 1, 128>}, {pipeline_mode = #tpu.pipeline_mode<synchronous>, transform_indices = @transform_8, window_bounds = array<i64: 1, 128>}, {pipeline_mode = #tpu.pipeline_mode<synchronous>, transform_indices = @transform_9, window_bounds = array<i64: 1, 128>}, {transform_indices = @transform_10, window_bounds = array<i64: 2, 16, 128>}]} {
    %c0 = arith.constant 0 : index
    %c0_0 = arith.constant 0 : index
    %c0_1 = arith.constant 0 : index
    %0 = vector.load %arg1[%c0, %c0_0, %c0_1] : memref<2x16x128xbf16, #tpu.memory_space<vmem>>, vector<1x16x128xbf16>
    %1 = vector.shape_cast %0 : vector<1x16x128xbf16> to vector<16x128xbf16>
    %c0_i32 = arith.constant 0 : i32
    %2 = arith.sitofp %c0_i32 : i32 to bf16
    %3 = vector.broadcast %2 : bf16 to vector<8x128xbf16>
    %4 = tpu.concatenate %3, %1 in 0 : vector<8x128xbf16>, vector<16x128xbf16> -> vector<24x128xbf16>
    %5 = vector.broadcast %2 : bf16 to vector<8x128xbf16>
    %6 = tpu.concatenate %4, %5 in 0 : vector<24x128xbf16>, vector<8x128xbf16> -> vector<32x128xbf16>
    %c0_2 = arith.constant 0 : index
    %c0_3 = arith.constant 0 : index
    %7 = vector.load %arg12[%c0_2, %c0_3] : memref<64x128xbf16, #tpu.memory_space<vmem>>, vector<32x128xbf16>
    tpu.vector_store %arg12[%c0_2, %c0_3], %6 {strides = array<i32>} : memref<64x128xbf16, #tpu.memory_space<vmem>>, vector<32x128xbf16>,
    %c1 = arith.constant 1 : index
    %c0_4 = arith.constant 0 : index
    %c0_5 = arith.constant 0 : index
    %8 = vector.load %arg1[%c1, %c0_4, %c0_5] : memref<2x16x128xbf16, #tpu.memory_space<vmem>>, vector<1x16x128xbf16>
    %9 = vector.shape_cast %8 : vector<1x16x128xbf16> to vector<16x128xbf16>
    %c0_i32_6 = arith.constant 0 : i32
    %10 = arith.sitofp %c0_i32_6 : i32 to bf16
    %11 = vector.broadcast %10 : bf16 to vector<8x128xbf16>
    %12 = tpu.concatenate %11, %9 in 0 : vector<8x128xbf16>, vector<16x128xbf16> -> vector<24x128xbf16>
    %13 = vector.broadcast %10 : bf16 to vector<8x128xbf16>
    %14 = tpu.concatenate %12, %13 in 0 : vector<24x128xbf16>, vector<8x128xbf16> -> vector<32x128xbf16>
    %c32 = arith.constant 32 : index
    %c0_7 = arith.constant 0 : index
    %15 = vector.load %arg12[%c32, %c0_7] : memref<64x128xbf16, #tpu.memory_space<vmem>>, vector<32x128xbf16>
    tpu.vector_store %arg12[%c32, %c0_7], %14 {strides = array<i32>} : memref<64x128xbf16, #tpu.memory_space<vmem>>, vector<32x128xbf16>,
    %c6 = arith.constant 6 : index
    %c0_8 = arith.constant 0 : index
    %16 = vector.load %arg12[%c6, %c0_8] : memref<64x128xbf16, #tpu.memory_space<vmem>>, vector<48x128xbf16>
    %c0_9 = arith.constant 0 : index
    %c0_10 = arith.constant 0 : index
    %c0_11 = arith.constant 0 : index
    %17 = vector.load %arg2[%c0_9, %c0_10, %c0_11] : memref<5x128x128xbf16, #tpu.memory_space<vmem>>, vector<1x128x128xbf16>
    %18 = vector.shape_cast %17 : vector<1x128x128xbf16> to vector<128x128xbf16>
    %cst = arith.constant dense<0.000000e+00> : vector<48x128xf32>
    %19 = tpu.matmul %16, %18, %cst {dimension_numbers = #tpu.dot_dimension_numbers<[1], [0], [0], [1], [0, 0, 1, 1], [], []>} : vector<48x128xbf16>, vector<128x128xbf16>, vector<48x128xf32> -> vector<48x128xf32>
    %c7 = arith.constant 7 : index
    %c0_12 = arith.constant 0 : index
    %20 = vector.load %arg12[%c7, %c0_12] : memref<64x128xbf16, #tpu.memory_space<vmem>>, vector<48x128xbf16>
    %c1_13 = arith.constant 1 : index
    %c0_14 = arith.constant 0 : index
    %c0_15 = arith.constant 0 : index
    %21 = vector.load %arg2[%c1_13, %c0_14, %c0_15] : memref<5x128x128xbf16, #tpu.memory_space<vmem>>, vector<1x128x128xbf16>
    %22 = vector.shape_cast %21 : vector<1x128x128xbf16> to vector<128x128xbf16>
    %cst_16 = arith.constant dense<0.000000e+00> : vector<48x128xf32>
    %23 = tpu.matmul %20, %22, %cst_16 {dimension_numbers = #tpu.dot_dimension_numbers<[1], [0], [0], [1], [0, 0, 1, 1], [], []>} : vector<48x128xbf16>, vector<128x128xbf16>, vector<48x128xf32> -> vector<48x128xf32>
    %24 = arith.addf %19, %23 : vector<48x128xf32>
    %c8 = arith.constant 8 : index
    %c0_17 = arith.constant 0 : index
    %25 = vector.load %arg12[%c8, %c0_17] : memref<64x128xbf16, #tpu.memory_space<vmem>>, vector<48x128xbf16>
    %c2 = arith.constant 2 : index
    %c0_18 = arith.constant 0 : index
    %c0_19 = arith.constant 0 : index
    %26 = vector.load %arg2[%c2, %c0_18, %c0_19] : memref<5x128x128xbf16, #tpu.memory_space<vmem>>, vector<1x128x128xbf16>
    %27 = vector.shape_cast %26 : vector<1x128x128xbf16> to vector<128x128xbf16>
    %cst_20 = arith.constant dense<0.000000e+00> : vector<48x128xf32>
    %28 = tpu.matmul %25, %27, %cst_20 {dimension_numbers = #tpu.dot_dimension_numbers<[1], [0], [0], [1], [0, 0, 1, 1], [], []>} : vector<48x128xbf16>, vector<128x128xbf16>, vector<48x128xf32> -> vector<48x128xf32>
    %29 = arith.addf %24, %28 : vector<48x128xf32>
    %c9 = arith.constant 9 : index
    %c0_21 = arith.constant 0 : index
    %30 = vector.load %arg12[%c9, %c0_21] : memref<64x128xbf16, #tpu.memory_space<vmem>>, vector<48x128xbf16>
    %c3 = arith.constant 3 : index
    %c0_22 = arith.constant 0 : index
    %c0_23 = arith.constant 0 : index
    %31 = vector.load %arg2[%c3, %c0_22, %c0_23] : memref<5x128x128xbf16, #tpu.memory_space<vmem>>, vector<1x128x128xbf16>
    %32 = vector.shape_cast %31 : vector<1x128x128xbf16> to vector<128x128xbf16>
    %cst_24 = arith.constant dense<0.000000e+00> : vector<48x128xf32>
    %33 = tpu.matmul %30, %32, %cst_24 {dimension_numbers = #tpu.dot_dimension_numbers<[1], [0], [0], [1], [0, 0, 1, 1], [], []>} : vector<48x128xbf16>, vector<128x128xbf16>, vector<48x128xf32> -> vector<48x128xf32>
    %34 = arith.addf %29, %33 : vector<48x128xf32>
    %c10 = arith.constant 10 : index
    %c0_25 = arith.constant 0 : index
    %35 = vector.load %arg12[%c10, %c0_25] : memref<64x128xbf16, #tpu.memory_space<vmem>>, vector<48x128xbf16>
    %c4 = arith.constant 4 : index
    %c0_26 = arith.constant 0 : index
    %c0_27 = arith.constant 0 : index
    %36 = vector.load %arg2[%c4, %c0_26, %c0_27] : memref<5x128x128xbf16, #tpu.memory_space<vmem>>, vector<1x128x128xbf16>
    %37 = vector.shape_cast %36 : vector<1x128x128xbf16> to vector<128x128xbf16>
    %cst_28 = arith.constant dense<0.000000e+00> : vector<48x128xf32>
    %38 = tpu.matmul %35, %37, %cst_28 {dimension_numbers = #tpu.dot_dimension_numbers<[1], [0], [0], [1], [0, 0, 1, 1], [], []>} : vector<48x128xbf16>, vector<128x128xbf16>, vector<48x128xf32> -> vector<48x128xf32>
    %39 = arith.addf %34, %38 : vector<48x128xf32>
    %c0_29 = arith.constant 0 : index
    %c0_30 = arith.constant 0 : index
    %40 = vector.load %arg3[%c0_29, %c0_30] : memref<1x128xf32, #tpu.memory_space<vmem>>, vector<1x128xf32>
    %41 = vector.broadcast %40 : vector<1x128xf32> to vector<48x128xf32>
    %42 = arith.mulf %39, %41 : vector<48x128xf32>
    %c0_31 = arith.constant 0 : index
    %c0_32 = arith.constant 0 : index
    %43 = vector.load %arg4[%c0_31, %c0_32] : memref<1x128xf32, #tpu.memory_space<vmem>>, vector<1x128xf32>
    %44 = vector.broadcast %43 : vector<1x128xf32> to vector<48x128xf32>
    %45 = arith.addf %42, %44 : vector<48x128xf32>
    %c0_33 = arith.constant 0 : index
    %c0_34 = arith.constant 0 : index
    %46 = vector.load %arg5[%c0_33, %c0_34] : memref<1x128xf32, #tpu.memory_space<vmem>>, vector<1x128xf32>
    %cst_35 = arith.constant 0.000000e+00 : f32
    %47 = vector.broadcast %cst_35 : f32 to vector<48x128xf32>
    %48 = arith.cmpf oge, %45, %47 : vector<48x128xf32>
    %49 = vector.broadcast %46 : vector<1x128xf32> to vector<48x128xf32>
    %50 = arith.mulf %49, %45 : vector<48x128xf32>
    %51 = arith.select %48, %45, %50 : vector<48x128xi1>, vector<48x128xf32>
    %52 = vector.extract_strided_slice %51 {offsets = [0, 0], sizes = [8, 128], strides = [1, 1]} : vector<48x128xf32> to vector<8x128xf32>
    %c0_i32_36 = arith.constant 0 : i32
    %53 = arith.sitofp %c0_i32_36 : i32 to f32
    %54 = vector.broadcast %53 : f32 to vector<8x128xf32>
    %55 = tpu.concatenate %54, %52 in 0 : vector<8x128xf32>, vector<8x128xf32> -> vector<16x128xf32>
    %56 = vector.broadcast %53 : f32 to vector<16x128xf32>
    %57 = tpu.concatenate %55, %56 in 0 : vector<16x128xf32>, vector<16x128xf32> -> vector<32x128xf32>
    %58 = arith.truncf %57 : vector<32x128xf32> to vector<32x128xbf16>
    %c0_37 = arith.constant 0 : index
    %c0_38 = arith.constant 0 : index
    %59 = vector.load %arg13[%c0_37, %c0_38] : memref<64x128xbf16, #tpu.memory_space<vmem>>, vector<32x128xbf16>
    tpu.vector_store %arg13[%c0_37, %c0_38], %58 {strides = array<i32>} : memref<64x128xbf16, #tpu.memory_space<vmem>>, vector<32x128xbf16>,
    %60 = vector.extract_strided_slice %51 {offsets = [32, 0], sizes = [8, 128], strides = [1, 1]} : vector<48x128xf32> to vector<8x128xf32>
    %c0_i32_39 = arith.constant 0 : i32
    %61 = arith.sitofp %c0_i32_39 : i32 to f32
    %62 = vector.broadcast %61 : f32 to vector<8x128xf32>
    %63 = tpu.concatenate %62, %60 in 0 : vector<8x128xf32>, vector<8x128xf32> -> vector<16x128xf32>
    %64 = vector.broadcast %61 : f32 to vector<16x128xf32>
    %65 = tpu.concatenate %63, %64 in 0 : vector<16x128xf32>, vector<16x128xf32> -> vector<32x128xf32>
    %66 = arith.truncf %65 : vector<32x128xf32> to vector<32x128xbf16>
    %c32_40 = arith.constant 32 : index
    %c0_41 = arith.constant 0 : index
    %67 = vector.load %arg13[%c32_40, %c0_41] : memref<64x128xbf16, #tpu.memory_space<vmem>>, vector<32x128xbf16>
    tpu.vector_store %arg13[%c32_40, %c0_41], %66 {strides = array<i32>} : memref<64x128xbf16, #tpu.memory_space<vmem>>, vector<32x128xbf16>,
    %c6_42 = arith.constant 6 : index
    %c0_43 = arith.constant 0 : index
    %68 = vector.load %arg13[%c6_42, %c0_43] : memref<64x128xbf16, #tpu.memory_space<vmem>>, vector<48x128xbf16>
    %c0_44 = arith.constant 0 : index
    %c0_45 = arith.constant 0 : index
    %c0_46 = arith.constant 0 : index
    %69 = vector.load %arg6[%c0_44, %c0_45, %c0_46] : memref<5x128x128xbf16, #tpu.memory_space<vmem>>, vector<1x128x128xbf16>
    %70 = vector.shape_cast %69 : vector<1x128x128xbf16> to vector<128x128xbf16>
    %cst_47 = arith.constant dense<0.000000e+00> : vector<48x128xf32>
    %71 = tpu.matmul %68, %70, %cst_47 {dimension_numbers = #tpu.dot_dimension_numbers<[1], [0], [0], [1], [0, 0, 1, 1], [], []>} : vector<48x128xbf16>, vector<128x128xbf16>, vector<48x128xf32> -> vector<48x128xf32>
    %c7_48 = arith.constant 7 : index
    %c0_49 = arith.constant 0 : index
    %72 = vector.load %arg13[%c7_48, %c0_49] : memref<64x128xbf16, #tpu.memory_space<vmem>>, vector<48x128xbf16>
    %c1_50 = arith.constant 1 : index
    %c0_51 = arith.constant 0 : index
    %c0_52 = arith.constant 0 : index
    %73 = vector.load %arg6[%c1_50, %c0_51, %c0_52] : memref<5x128x128xbf16, #tpu.memory_space<vmem>>, vector<1x128x128xbf16>
    %74 = vector.shape_cast %73 : vector<1x128x128xbf16> to vector<128x128xbf16>
    %cst_53 = arith.constant dense<0.000000e+00> : vector<48x128xf32>
    %75 = tpu.matmul %72, %74, %cst_53 {dimension_numbers = #tpu.dot_dimension_numbers<[1], [0], [0], [1], [0, 0, 1, 1], [], []>} : vector<48x128xbf16>, vector<128x128xbf16>, vector<48x128xf32> -> vector<48x128xf32>
    %76 = arith.addf %71, %75 : vector<48x128xf32>
    %c8_54 = arith.constant 8 : index
    %c0_55 = arith.constant 0 : index
    %77 = vector.load %arg13[%c8_54, %c0_55] : memref<64x128xbf16, #tpu.memory_space<vmem>>, vector<48x128xbf16>
    %c2_56 = arith.constant 2 : index
    %c0_57 = arith.constant 0 : index
    %c0_58 = arith.constant 0 : index
    %78 = vector.load %arg6[%c2_56, %c0_57, %c0_58] : memref<5x128x128xbf16, #tpu.memory_space<vmem>>, vector<1x128x128xbf16>
    %79 = vector.shape_cast %78 : vector<1x128x128xbf16> to vector<128x128xbf16>
    %cst_59 = arith.constant dense<0.000000e+00> : vector<48x128xf32>
    %80 = tpu.matmul %77, %79, %cst_59 {dimension_numbers = #tpu.dot_dimension_numbers<[1], [0], [0], [1], [0, 0, 1, 1], [], []>} : vector<48x128xbf16>, vector<128x128xbf16>, vector<48x128xf32> -> vector<48x128xf32>
    %81 = arith.addf %76, %80 : vector<48x128xf32>
    %c9_60 = arith.constant 9 : index
    %c0_61 = arith.constant 0 : index
    %82 = vector.load %arg13[%c9_60, %c0_61] : memref<64x128xbf16, #tpu.memory_space<vmem>>, vector<48x128xbf16>
    %c3_62 = arith.constant 3 : index
    %c0_63 = arith.constant 0 : index
    %c0_64 = arith.constant 0 : index
    %83 = vector.load %arg6[%c3_62, %c0_63, %c0_64] : memref<5x128x128xbf16, #tpu.memory_space<vmem>>, vector<1x128x128xbf16>
    %84 = vector.shape_cast %83 : vector<1x128x128xbf16> to vector<128x128xbf16>
    %cst_65 = arith.constant dense<0.000000e+00> : vector<48x128xf32>
    %85 = tpu.matmul %82, %84, %cst_65 {dimension_numbers = #tpu.dot_dimension_numbers<[1], [0], [0], [1], [0, 0, 1, 1], [], []>} : vector<48x128xbf16>, vector<128x128xbf16>, vector<48x128xf32> -> vector<48x128xf32>
    %86 = arith.addf %81, %85 : vector<48x128xf32>
    %c10_66 = arith.constant 10 : index
    %c0_67 = arith.constant 0 : index
    %87 = vector.load %arg13[%c10_66, %c0_67] : memref<64x128xbf16, #tpu.memory_space<vmem>>, vector<48x128xbf16>
    %c4_68 = arith.constant 4 : index
    %c0_69 = arith.constant 0 : index
    %c0_70 = arith.constant 0 : index
    %88 = vector.load %arg6[%c4_68, %c0_69, %c0_70] : memref<5x128x128xbf16, #tpu.memory_space<vmem>>, vector<1x128x128xbf16>
    %89 = vector.shape_cast %88 : vector<1x128x128xbf16> to vector<128x128xbf16>
    %cst_71 = arith.constant dense<0.000000e+00> : vector<48x128xf32>
    %90 = tpu.matmul %87, %89, %cst_71 {dimension_numbers = #tpu.dot_dimension_numbers<[1], [0], [0], [1], [0, 0, 1, 1], [], []>} : vector<48x128xbf16>, vector<128x128xbf16>, vector<48x128xf32> -> vector<48x128xf32>
    %91 = arith.addf %86, %90 : vector<48x128xf32>
    %c0_72 = arith.constant 0 : index
    %c0_73 = arith.constant 0 : index
    %92 = vector.load %arg7[%c0_72, %c0_73] : memref<1x128xf32, #tpu.memory_space<vmem>>, vector<1x128xf32>
    %93 = vector.broadcast %92 : vector<1x128xf32> to vector<48x128xf32>
    %94 = arith.mulf %91, %93 : vector<48x128xf32>
    %c0_74 = arith.constant 0 : index
    %c0_75 = arith.constant 0 : index
    %95 = vector.load %arg8[%c0_74, %c0_75] : memref<1x128xf32, #tpu.memory_space<vmem>>, vector<1x128xf32>
    %96 = vector.broadcast %95 : vector<1x128xf32> to vector<48x128xf32>
    %97 = arith.addf %94, %96 : vector<48x128xf32>
    %c0_76 = arith.constant 0 : index
    %c0_77 = arith.constant 0 : index
    %98 = vector.load %arg9[%c0_76, %c0_77] : memref<1x128xf32, #tpu.memory_space<vmem>>, vector<1x128xf32>
    %cst_78 = arith.constant 0.000000e+00 : f32
    %99 = vector.broadcast %cst_78 : f32 to vector<48x128xf32>
    %100 = arith.cmpf oge, %97, %99 : vector<48x128xf32>
    %101 = vector.broadcast %98 : vector<1x128xf32> to vector<48x128xf32>
    %102 = arith.mulf %101, %97 : vector<48x128xf32>
    %103 = arith.select %100, %97, %102 : vector<48x128xi1>, vector<48x128xf32>
    %104 = vector.extract_strided_slice %103 {offsets = [0, 0], sizes = [8, 128], strides = [1, 1]} : vector<48x128xf32> to vector<8x128xf32>
    %c0_79 = arith.constant 0 : index
    %c0_80 = arith.constant 0 : index
    %c0_81 = arith.constant 0 : index
    %105 = vector.load %arg1[%c0_79, %c0_80, %c0_81] : memref<2x16x128xbf16, #tpu.memory_space<vmem>>, vector<1x16x128xbf16>
    %106 = vector.shape_cast %105 : vector<1x16x128xbf16> to vector<16x128xbf16>
    %107 = vector.extract_strided_slice %106 {offsets = [0, 0], sizes = [8, 128], strides = [1, 1]} : vector<16x128xbf16> to vector<8x128xbf16>
    %108 = arith.extf %107 : vector<8x128xbf16> to vector<8x128xf32>
    %109 = arith.addf %104, %108 : vector<8x128xf32>
    %c0_82 = arith.constant 0 : index
    %c0_83 = arith.constant 0 : index
    %110 = vector.load %arg10[%c0_82, %c0_83] : memref<1x128xf32, #tpu.memory_space<vmem>>, vector<1x128xf32>
    %cst_84 = arith.constant 0.000000e+00 : f32
    %111 = vector.broadcast %cst_84 : f32 to vector<8x128xf32>
    %112 = arith.cmpf oge, %109, %111 : vector<8x128xf32>
    %113 = vector.broadcast %110 : vector<1x128xf32> to vector<8x128xf32>
    %114 = arith.mulf %113, %109 : vector<8x128xf32>
    %115 = arith.select %112, %109, %114 : vector<8x128xi1>, vector<8x128xf32>
    %c0_i32_85 = arith.constant 0 : i32
    %116 = arith.sitofp %c0_i32_85 : i32 to f32
    %117 = vector.broadcast %116 : f32 to vector<8x128xf32>
    %118 = tpu.concatenate %115, %117 in 0 : vector<8x128xf32>, vector<8x128xf32> -> vector<16x128xf32>
    %119 = arith.truncf %118 : vector<16x128xf32> to vector<16x128xbf16>
    %c0_86 = arith.constant 0 : index
    %c0_87 = arith.constant 0 : index
    %c0_88 = arith.constant 0 : index
    %120 = vector.load %arg11[%c0_86, %c0_87, %c0_88] : memref<2x16x128xbf16, #tpu.memory_space<vmem>>, vector<1x16x128xbf16>
    %121 = vector.shape_cast %120 : vector<1x16x128xbf16> to vector<16x128xbf16>
    %122 = vector.shape_cast %119 : vector<16x128xbf16> to vector<1x16x128xbf16>
    tpu.vector_store %arg11[%c0_86, %c0_87, %c0_88], %122 {strides = array<i32>} : memref<2x16x128xbf16, #tpu.memory_space<vmem>>, vector<1x16x128xbf16>,
    %123 = vector.extract_strided_slice %103 {offsets = [32, 0], sizes = [8, 128], strides = [1, 1]} : vector<48x128xf32> to vector<8x128xf32>
    %c1_89 = arith.constant 1 : index
    %c0_90 = arith.constant 0 : index
    %c0_91 = arith.constant 0 : index
    %124 = vector.load %arg1[%c1_89, %c0_90, %c0_91] : memref<2x16x128xbf16, #tpu.memory_space<vmem>>, vector<1x16x128xbf16>
    %125 = vector.shape_cast %124 : vector<1x16x128xbf16> to vector<16x128xbf16>
    %126 = vector.extract_strided_slice %125 {offsets = [0, 0], sizes = [8, 128], strides = [1, 1]} : vector<16x128xbf16> to vector<8x128xbf16>
    %127 = arith.extf %126 : vector<8x128xbf16> to vector<8x128xf32>
    %128 = arith.addf %123, %127 : vector<8x128xf32>
    %c0_92 = arith.constant 0 : index
    %c0_93 = arith.constant 0 : index
    %129 = vector.load %arg10[%c0_92, %c0_93] : memref<1x128xf32, #tpu.memory_space<vmem>>, vector<1x128xf32>
    %cst_94 = arith.constant 0.000000e+00 : f32
    %130 = vector.broadcast %cst_94 : f32 to vector<8x128xf32>
    %131 = arith.cmpf oge, %128, %130 : vector<8x128xf32>
    %132 = vector.broadcast %129 : vector<1x128xf32> to vector<8x128xf32>
    %133 = arith.mulf %132, %128 : vector<8x128xf32>
    %134 = arith.select %131, %128, %133 : vector<8x128xi1>, vector<8x128xf32>
    %c0_i32_95 = arith.constant 0 : i32
    %135 = arith.sitofp %c0_i32_95 : i32 to f32
    %136 = vector.broadcast %135 : f32 to vector<8x128xf32>
    %137 = tpu.concatenate %134, %136 in 0 : vector<8x128xf32>, vector<8x128xf32> -> vector<16x128xf32>
    %138 = arith.truncf %137 : vector<16x128xf32> to vector<16x128xbf16>
    %c1_96 = arith.constant 1 : index
    %c0_97 = arith.constant 0 : index
    %c0_98 = arith.constant 0 : index
    %139 = vector.load %arg11[%c1_96, %c0_97, %c0_98] : memref<2x16x128xbf16, #tpu.memory_space<vmem>>, vector<1x16x128xbf16>
    %140 = vector.shape_cast %139 : vector<1x16x128xbf16> to vector<16x128xbf16>
    %141 = vector.shape_cast %138 : vector<16x128xbf16> to vector<1x16x128xbf16>
    tpu.vector_store %arg11[%c1_96, %c0_97, %c0_98], %141 {strides = array<i32>} : memref<2x16x128xbf16, #tpu.memory_space<vmem>>, vector<1x16x128xbf16>,
    return
  }
  func.func @transform_0(%arg0: i32) -> (i32, i32, i32) {
    %c0_i32 = arith.constant 0 : i32
    %c0_i32_0 = arith.constant 0 : i32
    %c0_i32_1 = arith.constant 0 : i32
    return %arg0, %c0_i32, %c0_i32_0 : i32, i32, i32
  }
  func.func @transform_1(%arg0: i32) -> (i32, i32, i32) {
    %c0_i32 = arith.constant 0 : i32
    %c0_i32_0 = arith.constant 0 : i32
    %c0_i32_1 = arith.constant 0 : i32
    %c0_i32_2 = arith.constant 0 : i32
    return %c0_i32, %c0_i32_0, %c0_i32_1 : i32, i32, i32
  }
  func.func @transform_2(%arg0: i32) -> (i32, i32) {
    %c0_i32 = arith.constant 0 : i32
    %c0_i32_0 = arith.constant 0 : i32
    %c0_i32_1 = arith.constant 0 : i32
    return %c0_i32, %c0_i32_0 : i32, i32
  }
  func.func @transform_3(%arg0: i32) -> (i32, i32) {
    %c0_i32 = arith.constant 0 : i32
    %c0_i32_0 = arith.constant 0 : i32
    %c0_i32_1 = arith.constant 0 : i32
    return %c0_i32, %c0_i32_0 : i32, i32
  }
  func.func @transform_4(%arg0: i32) -> (i32, i32) {
    %c0_i32 = arith.constant 0 : i32
    %c0_i32_0 = arith.constant 0 : i32
    %c0_i32_1 = arith.constant 0 : i32
    return %c0_i32, %c0_i32_0 : i32, i32
  }
  func.func @transform_5(%arg0: i32) -> (i32, i32, i32) {
    %c0_i32 = arith.constant 0 : i32
    %c0_i32_0 = arith.constant 0 : i32
    %c0_i32_1 = arith.constant 0 : i32
    %c0_i32_2 = arith.constant 0 : i32
    return %c0_i32, %c0_i32_0, %c0_i32_1 : i32, i32, i32
  }
  func.func @transform_6(%arg0: i32) -> (i32, i32) {
    %c0_i32 = arith.constant 0 : i32
    %c0_i32_0 = arith.constant 0 : i32
    %c0_i32_1 = arith.constant 0 : i32
    return %c0_i32, %c0_i32_0 : i32, i32
  }
  func.func @transform_7(%arg0: i32) -> (i32, i32) {
    %c0_i32 = arith.constant 0 : i32
    %c0_i32_0 = arith.constant 0 : i32
    %c0_i32_1 = arith.constant 0 : i32
    return %c0_i32, %c0_i32_0 : i32, i32
  }
  func.func @transform_8(%arg0: i32) -> (i32, i32) {
    %c0_i32 = arith.constant 0 : i32
    %c0_i32_0 = arith.constant 0 : i32
    %c0_i32_1 = arith.constant 0 : i32
    return %c0_i32, %c0_i32_0 : i32, i32
  }
  func.func @transform_9(%arg0: i32) -> (i32, i32) {
    %c0_i32 = arith.constant 0 : i32
    %c0_i32_0 = arith.constant 0 : i32
    %c0_i32_1 = arith.constant 0 : i32
    return %c0_i32, %c0_i32_0 : i32, i32
  }
  func.func @transform_10(%arg0: i32) -> (i32, i32, i32) {
    %c0_i32 = arith.constant 0 : i32
    %c0_i32_0 = arith.constant 0 : i32
    %c0_i32_1 = arith.constant 0 : i32
    return %arg0, %c0_i32, %c0_i32_0 : i32, i32, i32
  }
}

module attributes {stable_mosaic.version = 11 : i64} {
  func.func @kernel(%arg0: i32, %arg1: memref<2x16x16xbf16, #tpu.memory_space<vmem>>, %arg2: memref<16x128xbf16, #tpu.memory_space<vmem>>, %arg3: memref<1x128xf32, #tpu.memory_space<vmem>>, %arg4: memref<2x16x128xbf16, #tpu.memory_space<vmem>>) attributes {dimension_semantics = [#tpu.dimension_semantics<parallel>], iteration_bounds = array<i64: 1>, scalar_prefetch = 0 : i64, scratch_operands = 0 : i64, tpu.core_type = #tpu.core_type<tc>, window_params = [{transform_indices = @transform_0, window_bounds = array<i64: 2, 16, 16>}, {pipeline_mode = #tpu.pipeline_mode<synchronous>, transform_indices = @transform_1, window_bounds = array<i64: 16, 128>}, {pipeline_mode = #tpu.pipeline_mode<synchronous>, transform_indices = @transform_2, window_bounds = array<i64: 1, 128>}, {transform_indices = @transform_3, window_bounds = array<i64: 2, 16, 128>}]} {
    %c0 = arith.constant 0 : index
    %c0_0 = arith.constant 0 : index
    %c0_1 = arith.constant 0 : index
    %0 = vector.load %arg1[%c0, %c0_0, %c0_1] : memref<2x16x16xbf16, #tpu.memory_space<vmem>>, vector<1x16x16xbf16>
    %1 = vector.shape_cast %0 : vector<1x16x16xbf16> to vector<16x16xbf16>
    %c0_2 = arith.constant 0 : index
    %c0_3 = arith.constant 0 : index
    %2 = vector.load %arg2[%c0_2, %c0_3] : memref<16x128xbf16, #tpu.memory_space<vmem>>, vector<16x128xbf16>
    %cst = arith.constant dense<0.000000e+00> : vector<16x128xf32>
    %3 = tpu.matmul %1, %2, %cst {dimension_numbers = #tpu.dot_dimension_numbers<[1], [0], [0], [1], [0, 0, 1, 1], [], []>} : vector<16x16xbf16>, vector<16x128xbf16>, vector<16x128xf32> -> vector<16x128xf32>
    %c0_4 = arith.constant 0 : index
    %c0_5 = arith.constant 0 : index
    %4 = vector.load %arg3[%c0_4, %c0_5] : memref<1x128xf32, #tpu.memory_space<vmem>>, vector<1x128xf32>
    %cst_6 = arith.constant 0.000000e+00 : f32
    %5 = vector.broadcast %cst_6 : f32 to vector<16x128xf32>
    %6 = arith.cmpf oge, %3, %5 : vector<16x128xf32>
    %7 = vector.broadcast %4 : vector<1x128xf32> to vector<16x128xf32>
    %8 = arith.mulf %7, %3 : vector<16x128xf32>
    %9 = arith.select %6, %3, %8 : vector<16x128xi1>, vector<16x128xf32>
    %10 = arith.truncf %9 : vector<16x128xf32> to vector<16x128xbf16>
    %c0_7 = arith.constant 0 : index
    %c0_8 = arith.constant 0 : index
    %c0_9 = arith.constant 0 : index
    %11 = vector.load %arg4[%c0_7, %c0_8, %c0_9] : memref<2x16x128xbf16, #tpu.memory_space<vmem>>, vector<1x16x128xbf16>
    %12 = vector.shape_cast %11 : vector<1x16x128xbf16> to vector<16x128xbf16>
    %13 = vector.shape_cast %10 : vector<16x128xbf16> to vector<1x16x128xbf16>
    tpu.vector_store %arg4[%c0_7, %c0_8, %c0_9], %13 {strides = array<i32>} : memref<2x16x128xbf16, #tpu.memory_space<vmem>>, vector<1x16x128xbf16>,
    %c1 = arith.constant 1 : index
    %c0_10 = arith.constant 0 : index
    %c0_11 = arith.constant 0 : index
    %14 = vector.load %arg1[%c1, %c0_10, %c0_11] : memref<2x16x16xbf16, #tpu.memory_space<vmem>>, vector<1x16x16xbf16>
    %15 = vector.shape_cast %14 : vector<1x16x16xbf16> to vector<16x16xbf16>
    %c0_12 = arith.constant 0 : index
    %c0_13 = arith.constant 0 : index
    %16 = vector.load %arg2[%c0_12, %c0_13] : memref<16x128xbf16, #tpu.memory_space<vmem>>, vector<16x128xbf16>
    %cst_14 = arith.constant dense<0.000000e+00> : vector<16x128xf32>
    %17 = tpu.matmul %15, %16, %cst_14 {dimension_numbers = #tpu.dot_dimension_numbers<[1], [0], [0], [1], [0, 0, 1, 1], [], []>} : vector<16x16xbf16>, vector<16x128xbf16>, vector<16x128xf32> -> vector<16x128xf32>
    %c0_15 = arith.constant 0 : index
    %c0_16 = arith.constant 0 : index
    %18 = vector.load %arg3[%c0_15, %c0_16] : memref<1x128xf32, #tpu.memory_space<vmem>>, vector<1x128xf32>
    %cst_17 = arith.constant 0.000000e+00 : f32
    %19 = vector.broadcast %cst_17 : f32 to vector<16x128xf32>
    %20 = arith.cmpf oge, %17, %19 : vector<16x128xf32>
    %21 = vector.broadcast %18 : vector<1x128xf32> to vector<16x128xf32>
    %22 = arith.mulf %21, %17 : vector<16x128xf32>
    %23 = arith.select %20, %17, %22 : vector<16x128xi1>, vector<16x128xf32>
    %24 = arith.truncf %23 : vector<16x128xf32> to vector<16x128xbf16>
    %c1_18 = arith.constant 1 : index
    %c0_19 = arith.constant 0 : index
    %c0_20 = arith.constant 0 : index
    %25 = vector.load %arg4[%c1_18, %c0_19, %c0_20] : memref<2x16x128xbf16, #tpu.memory_space<vmem>>, vector<1x16x128xbf16>
    %26 = vector.shape_cast %25 : vector<1x16x128xbf16> to vector<16x128xbf16>
    %27 = vector.shape_cast %24 : vector<16x128xbf16> to vector<1x16x128xbf16>
    tpu.vector_store %arg4[%c1_18, %c0_19, %c0_20], %27 {strides = array<i32>} : memref<2x16x128xbf16, #tpu.memory_space<vmem>>, vector<1x16x128xbf16>,
    return
  }
  func.func @transform_0(%arg0: i32) -> (i32, i32, i32) {
    %c0_i32 = arith.constant 0 : i32
    %c0_i32_0 = arith.constant 0 : i32
    %c0_i32_1 = arith.constant 0 : i32
    return %arg0, %c0_i32, %c0_i32_0 : i32, i32, i32
  }
  func.func @transform_1(%arg0: i32) -> (i32, i32) {
    %c0_i32 = arith.constant 0 : i32
    %c0_i32_0 = arith.constant 0 : i32
    %c0_i32_1 = arith.constant 0 : i32
    return %c0_i32, %c0_i32_0 : i32, i32
  }
  func.func @transform_2(%arg0: i32) -> (i32, i32) {
    %c0_i32 = arith.constant 0 : i32
    %c0_i32_0 = arith.constant 0 : i32
    %c0_i32_1 = arith.constant 0 : i32
    return %c0_i32, %c0_i32_0 : i32, i32
  }
  func.func @transform_3(%arg0: i32) -> (i32, i32, i32) {
    %c0_i32 = arith.constant 0 : i32
    %c0_i32_0 = arith.constant 0 : i32
    %c0_i32_1 = arith.constant 0 : i32
    return %arg0, %c0_i32, %c0_i32_0 : i32, i32, i32
  }
}

module attributes {stable_mosaic.version = 11 : i64} {
  func.func @kernel(%arg0: i32, %arg1: memref<2x16x128xbf16, #tpu.memory_space<vmem>>, %arg2: memref<2x16x128xbf16, #tpu.memory_space<vmem>>, %arg3: memref<2x16x128xbf16, #tpu.memory_space<vmem>>, %arg4: memref<384x128xbf16, #tpu.memory_space<vmem>>, %arg5: memref<1x128xf32, #tpu.memory_space<vmem>>, %arg6: memref<2x16x128xbf16, #tpu.memory_space<vmem>>) attributes {dimension_semantics = [#tpu.dimension_semantics<parallel>], iteration_bounds = array<i64: 1>, scalar_prefetch = 0 : i64, scratch_operands = 0 : i64, tpu.core_type = #tpu.core_type<tc>, window_params = [{transform_indices = @transform_0, window_bounds = array<i64: 2, 16, 128>}, {transform_indices = @transform_1, window_bounds = array<i64: 2, 16, 128>}, {transform_indices = @transform_2, window_bounds = array<i64: 2, 16, 128>}, {pipeline_mode = #tpu.pipeline_mode<synchronous>, transform_indices = @transform_3, window_bounds = array<i64: 384, 128>}, {pipeline_mode = #tpu.pipeline_mode<synchronous>, transform_indices = @transform_4, window_bounds = array<i64: 1, 128>}, {transform_indices = @transform_5, window_bounds = array<i64: 2, 16, 128>}]} {
    %c0 = arith.constant 0 : index
    %c0_0 = arith.constant 0 : index
    %c0_1 = arith.constant 0 : index
    %0 = vector.load %arg1[%c0, %c0_0, %c0_1] : memref<2x16x128xbf16, #tpu.memory_space<vmem>>, vector<1x16x128xbf16>
    %1 = vector.shape_cast %0 : vector<1x16x128xbf16> to vector<16x128xbf16>
    %c0_2 = arith.constant 0 : index
    %c0_3 = arith.constant 0 : index
    %2 = vector.load %arg4[%c0_2, %c0_3] : memref<384x128xbf16, #tpu.memory_space<vmem>>, vector<128x128xbf16>
    %cst = arith.constant dense<0.000000e+00> : vector<16x128xf32>
    %3 = tpu.matmul %1, %2, %cst {dimension_numbers = #tpu.dot_dimension_numbers<[1], [0], [0], [1], [0, 0, 1, 1], [], []>} : vector<16x128xbf16>, vector<128x128xbf16>, vector<16x128xf32> -> vector<16x128xf32>
    %c0_4 = arith.constant 0 : index
    %c0_5 = arith.constant 0 : index
    %c0_6 = arith.constant 0 : index
    %4 = vector.load %arg2[%c0_4, %c0_5, %c0_6] : memref<2x16x128xbf16, #tpu.memory_space<vmem>>, vector<1x16x128xbf16>
    %5 = vector.shape_cast %4 : vector<1x16x128xbf16> to vector<16x128xbf16>
    %c128 = arith.constant 128 : index
    %c0_7 = arith.constant 0 : index
    %6 = vector.load %arg4[%c128, %c0_7] : memref<384x128xbf16, #tpu.memory_space<vmem>>, vector<128x128xbf16>
    %cst_8 = arith.constant dense<0.000000e+00> : vector<16x128xf32>
    %7 = tpu.matmul %5, %6, %cst_8 {dimension_numbers = #tpu.dot_dimension_numbers<[1], [0], [0], [1], [0, 0, 1, 1], [], []>} : vector<16x128xbf16>, vector<128x128xbf16>, vector<16x128xf32> -> vector<16x128xf32>
    %8 = arith.addf %3, %7 : vector<16x128xf32>
    %c0_9 = arith.constant 0 : index
    %c0_10 = arith.constant 0 : index
    %c0_11 = arith.constant 0 : index
    %9 = vector.load %arg3[%c0_9, %c0_10, %c0_11] : memref<2x16x128xbf16, #tpu.memory_space<vmem>>, vector<1x16x128xbf16>
    %10 = vector.shape_cast %9 : vector<1x16x128xbf16> to vector<16x128xbf16>
    %c256 = arith.constant 256 : index
    %c0_12 = arith.constant 0 : index
    %11 = vector.load %arg4[%c256, %c0_12] : memref<384x128xbf16, #tpu.memory_space<vmem>>, vector<128x128xbf16>
    %cst_13 = arith.constant dense<0.000000e+00> : vector<16x128xf32>
    %12 = tpu.matmul %10, %11, %cst_13 {dimension_numbers = #tpu.dot_dimension_numbers<[1], [0], [0], [1], [0, 0, 1, 1], [], []>} : vector<16x128xbf16>, vector<128x128xbf16>, vector<16x128xf32> -> vector<16x128xf32>
    %13 = arith.addf %8, %12 : vector<16x128xf32>
    %c0_14 = arith.constant 0 : index
    %c0_15 = arith.constant 0 : index
    %14 = vector.load %arg5[%c0_14, %c0_15] : memref<1x128xf32, #tpu.memory_space<vmem>>, vector<1x128xf32>
    %cst_16 = arith.constant 0.000000e+00 : f32
    %15 = vector.broadcast %cst_16 : f32 to vector<16x128xf32>
    %16 = arith.cmpf oge, %13, %15 : vector<16x128xf32>
    %17 = vector.broadcast %14 : vector<1x128xf32> to vector<16x128xf32>
    %18 = arith.mulf %17, %13 : vector<16x128xf32>
    %19 = arith.select %16, %13, %18 : vector<16x128xi1>, vector<16x128xf32>
    %20 = arith.truncf %19 : vector<16x128xf32> to vector<16x128xbf16>
    %c0_17 = arith.constant 0 : index
    %c0_18 = arith.constant 0 : index
    %c0_19 = arith.constant 0 : index
    %21 = vector.load %arg6[%c0_17, %c0_18, %c0_19] : memref<2x16x128xbf16, #tpu.memory_space<vmem>>, vector<1x16x128xbf16>
    %22 = vector.shape_cast %21 : vector<1x16x128xbf16> to vector<16x128xbf16>
    %23 = vector.shape_cast %20 : vector<16x128xbf16> to vector<1x16x128xbf16>
    tpu.vector_store %arg6[%c0_17, %c0_18, %c0_19], %23 {strides = array<i32>} : memref<2x16x128xbf16, #tpu.memory_space<vmem>>, vector<1x16x128xbf16>,
    %c1 = arith.constant 1 : index
    %c0_20 = arith.constant 0 : index
    %c0_21 = arith.constant 0 : index
    %24 = vector.load %arg1[%c1, %c0_20, %c0_21] : memref<2x16x128xbf16, #tpu.memory_space<vmem>>, vector<1x16x128xbf16>
    %25 = vector.shape_cast %24 : vector<1x16x128xbf16> to vector<16x128xbf16>
    %c0_22 = arith.constant 0 : index
    %c0_23 = arith.constant 0 : index
    %26 = vector.load %arg4[%c0_22, %c0_23] : memref<384x128xbf16, #tpu.memory_space<vmem>>, vector<128x128xbf16>
    %cst_24 = arith.constant dense<0.000000e+00> : vector<16x128xf32>
    %27 = tpu.matmul %25, %26, %cst_24 {dimension_numbers = #tpu.dot_dimension_numbers<[1], [0], [0], [1], [0, 0, 1, 1], [], []>} : vector<16x128xbf16>, vector<128x128xbf16>, vector<16x128xf32> -> vector<16x128xf32>
    %c1_25 = arith.constant 1 : index
    %c0_26 = arith.constant 0 : index
    %c0_27 = arith.constant 0 : index
    %28 = vector.load %arg2[%c1_25, %c0_26, %c0_27] : memref<2x16x128xbf16, #tpu.memory_space<vmem>>, vector<1x16x128xbf16>
    %29 = vector.shape_cast %28 : vector<1x16x128xbf16> to vector<16x128xbf16>
    %c128_28 = arith.constant 128 : index
    %c0_29 = arith.constant 0 : index
    %30 = vector.load %arg4[%c128_28, %c0_29] : memref<384x128xbf16, #tpu.memory_space<vmem>>, vector<128x128xbf16>
    %cst_30 = arith.constant dense<0.000000e+00> : vector<16x128xf32>
    %31 = tpu.matmul %29, %30, %cst_30 {dimension_numbers = #tpu.dot_dimension_numbers<[1], [0], [0], [1], [0, 0, 1, 1], [], []>} : vector<16x128xbf16>, vector<128x128xbf16>, vector<16x128xf32> -> vector<16x128xf32>
    %32 = arith.addf %27, %31 : vector<16x128xf32>
    %c1_31 = arith.constant 1 : index
    %c0_32 = arith.constant 0 : index
    %c0_33 = arith.constant 0 : index
    %33 = vector.load %arg3[%c1_31, %c0_32, %c0_33] : memref<2x16x128xbf16, #tpu.memory_space<vmem>>, vector<1x16x128xbf16>
    %34 = vector.shape_cast %33 : vector<1x16x128xbf16> to vector<16x128xbf16>
    %c256_34 = arith.constant 256 : index
    %c0_35 = arith.constant 0 : index
    %35 = vector.load %arg4[%c256_34, %c0_35] : memref<384x128xbf16, #tpu.memory_space<vmem>>, vector<128x128xbf16>
    %cst_36 = arith.constant dense<0.000000e+00> : vector<16x128xf32>
    %36 = tpu.matmul %34, %35, %cst_36 {dimension_numbers = #tpu.dot_dimension_numbers<[1], [0], [0], [1], [0, 0, 1, 1], [], []>} : vector<16x128xbf16>, vector<128x128xbf16>, vector<16x128xf32> -> vector<16x128xf32>
    %37 = arith.addf %32, %36 : vector<16x128xf32>
    %c0_37 = arith.constant 0 : index
    %c0_38 = arith.constant 0 : index
    %38 = vector.load %arg5[%c0_37, %c0_38] : memref<1x128xf32, #tpu.memory_space<vmem>>, vector<1x128xf32>
    %cst_39 = arith.constant 0.000000e+00 : f32
    %39 = vector.broadcast %cst_39 : f32 to vector<16x128xf32>
    %40 = arith.cmpf oge, %37, %39 : vector<16x128xf32>
    %41 = vector.broadcast %38 : vector<1x128xf32> to vector<16x128xf32>
    %42 = arith.mulf %41, %37 : vector<16x128xf32>
    %43 = arith.select %40, %37, %42 : vector<16x128xi1>, vector<16x128xf32>
    %44 = arith.truncf %43 : vector<16x128xf32> to vector<16x128xbf16>
    %c1_40 = arith.constant 1 : index
    %c0_41 = arith.constant 0 : index
    %c0_42 = arith.constant 0 : index
    %45 = vector.load %arg6[%c1_40, %c0_41, %c0_42] : memref<2x16x128xbf16, #tpu.memory_space<vmem>>, vector<1x16x128xbf16>
    %46 = vector.shape_cast %45 : vector<1x16x128xbf16> to vector<16x128xbf16>
    %47 = vector.shape_cast %44 : vector<16x128xbf16> to vector<1x16x128xbf16>
    tpu.vector_store %arg6[%c1_40, %c0_41, %c0_42], %47 {strides = array<i32>} : memref<2x16x128xbf16, #tpu.memory_space<vmem>>, vector<1x16x128xbf16>,
    return
  }
  func.func @transform_0(%arg0: i32) -> (i32, i32, i32) {
    %c0_i32 = arith.constant 0 : i32
    %c0_i32_0 = arith.constant 0 : i32
    %c0_i32_1 = arith.constant 0 : i32
    return %arg0, %c0_i32, %c0_i32_0 : i32, i32, i32
  }
  func.func @transform_1(%arg0: i32) -> (i32, i32, i32) {
    %c0_i32 = arith.constant 0 : i32
    %c0_i32_0 = arith.constant 0 : i32
    %c0_i32_1 = arith.constant 0 : i32
    return %arg0, %c0_i32, %c0_i32_0 : i32, i32, i32
  }
  func.func @transform_2(%arg0: i32) -> (i32, i32, i32) {
    %c0_i32 = arith.constant 0 : i32
    %c0_i32_0 = arith.constant 0 : i32
    %c0_i32_1 = arith.constant 0 : i32
    return %arg0, %c0_i32, %c0_i32_0 : i32, i32, i32
  }
  func.func @transform_3(%arg0: i32) -> (i32, i32) {
    %c0_i32 = arith.constant 0 : i32
    %c0_i32_0 = arith.constant 0 : i32
    %c0_i32_1 = arith.constant 0 : i32
    return %c0_i32, %c0_i32_0 : i32, i32
  }
  func.func @transform_4(%arg0: i32) -> (i32, i32) {
    %c0_i32 = arith.constant 0 : i32
    %c0_i32_0 = arith.constant 0 : i32
    %c0_i32_1 = arith.constant 0 : i32
    return %c0_i32, %c0_i32_0 : i32, i32
  }
  func.func @transform_5(%arg0: i32) -> (i32, i32, i32) {
    %c0_i32 = arith.constant 0 : i32
    %c0_i32_0 = arith.constant 0 : i32
    %c0_i32_1 = arith.constant 0 : i32
    return %arg0, %c0_i32, %c0_i32_0 : i32, i32, i32
  }
}

module attributes {stable_mosaic.version = 11 : i64} {
  func.func @kernel(%arg0: i32, %arg1: memref<2x16x128xbf16, #tpu.memory_space<vmem>>, %arg2: memref<2x16x128xbf16, #tpu.memory_space<vmem>>, %arg3: memref<5x256x128xbf16, #tpu.memory_space<vmem>>, %arg4: memref<1x128xf32, #tpu.memory_space<vmem>>, %arg5: memref<1x128xf32, #tpu.memory_space<vmem>>, %arg6: memref<1x128xf32, #tpu.memory_space<vmem>>, %arg7: memref<5x128x128xbf16, #tpu.memory_space<vmem>>, %arg8: memref<1x128xf32, #tpu.memory_space<vmem>>, %arg9: memref<1x128xf32, #tpu.memory_space<vmem>>, %arg10: memref<1x128xf32, #tpu.memory_space<vmem>>, %arg11: memref<256x128xbf16, #tpu.memory_space<vmem>>, %arg12: memref<1x128xf32, #tpu.memory_space<vmem>>, %arg13: memref<1x128xf32, #tpu.memory_space<vmem>>, %arg14: memref<2x16x128xbf16, #tpu.memory_space<vmem>>, %arg15: memref<64x256xbf16, #tpu.memory_space<vmem>>, %arg16: memref<64x128xbf16, #tpu.memory_space<vmem>>) attributes {dimension_semantics = [#tpu.dimension_semantics<parallel>], iteration_bounds = array<i64: 1>, scalar_prefetch = 0 : i64, scratch_operands = 2 : i64, tpu.core_type = #tpu.core_type<tc>, window_params = [{transform_indices = @transform_0, window_bounds = array<i64: 2, 16, 128>}, {transform_indices = @transform_1, window_bounds = array<i64: 2, 16, 128>}, {pipeline_mode = #tpu.pipeline_mode<synchronous>, transform_indices = @transform_2, window_bounds = array<i64: 5, 256, 128>}, {pipeline_mode = #tpu.pipeline_mode<synchronous>, transform_indices = @transform_3, window_bounds = array<i64: 1, 128>}, {pipeline_mode = #tpu.pipeline_mode<synchronous>, transform_indices = @transform_4, window_bounds = array<i64: 1, 128>}, {pipeline_mode = #tpu.pipeline_mode<synchronous>, transform_indices = @transform_5, window_bounds = array<i64: 1, 128>}, {pipeline_mode = #tpu.pipeline_mode<synchronous>, transform_indices = @transform_6, window_bounds = array<i64: 5, 128, 128>}, {pipeline_mode = #tpu.pipeline_mode<synchronous>, transform_indices = @transform_7, window_bounds = array<i64: 1, 128>}, {pipeline_mode = #tpu.pipeline_mode<synchronous>, transform_indices = @transform_8, window_bounds = array<i64: 1, 128>}, {pipeline_mode = #tpu.pipeline_mode<synchronous>, transform_indices = @transform_9, window_bounds = array<i64: 1, 128>}, {pipeline_mode = #tpu.pipeline_mode<synchronous>, transform_indices = @transform_10, window_bounds = array<i64: 256, 128>}, {pipeline_mode = #tpu.pipeline_mode<synchronous>, transform_indices = @transform_11, window_bounds = array<i64: 1, 128>}, {pipeline_mode = #tpu.pipeline_mode<synchronous>, transform_indices = @transform_12, window_bounds = array<i64: 1, 128>}, {transform_indices = @transform_13, window_bounds = array<i64: 2, 16, 128>}]} {
    %c0 = arith.constant 0 : index
    %c0_0 = arith.constant 0 : index
    %c0_1 = arith.constant 0 : index
    %0 = vector.load %arg1[%c0, %c0_0, %c0_1] : memref<2x16x128xbf16, #tpu.memory_space<vmem>>, vector<1x16x128xbf16>
    %1 = vector.shape_cast %0 : vector<1x16x128xbf16> to vector<16x128xbf16>
    %c0_i32 = arith.constant 0 : i32
    %2 = arith.sitofp %c0_i32 : i32 to bf16
    %3 = vector.broadcast %2 : bf16 to vector<8x128xbf16>
    %4 = tpu.concatenate %3, %1 in 0 : vector<8x128xbf16>, vector<16x128xbf16> -> vector<24x128xbf16>
    %5 = vector.broadcast %2 : bf16 to vector<8x128xbf16>
    %6 = tpu.concatenate %4, %5 in 0 : vector<24x128xbf16>, vector<8x128xbf16> -> vector<32x128xbf16>
    %c0_2 = arith.constant 0 : index
    %c0_3 = arith.constant 0 : index
    %7 = vector.load %arg15[%c0_2, %c0_3] : memref<64x256xbf16, #tpu.memory_space<vmem>>, vector<32x128xbf16>
    tpu.vector_store %arg15[%c0_2, %c0_3], %6 {strides = array<i32>} : memref<64x256xbf16, #tpu.memory_space<vmem>>, vector<32x128xbf16>,
    %c0_4 = arith.constant 0 : index
    %c0_5 = arith.constant 0 : index
    %c0_6 = arith.constant 0 : index
    %8 = vector.load %arg2[%c0_4, %c0_5, %c0_6] : memref<2x16x128xbf16, #tpu.memory_space<vmem>>, vector<1x16x128xbf16>
    %9 = vector.shape_cast %8 : vector<1x16x128xbf16> to vector<16x128xbf16>
    %c0_i32_7 = arith.constant 0 : i32
    %10 = arith.sitofp %c0_i32_7 : i32 to bf16
    %11 = vector.broadcast %10 : bf16 to vector<8x128xbf16>
    %12 = tpu.concatenate %11, %9 in 0 : vector<8x128xbf16>, vector<16x128xbf16> -> vector<24x128xbf16>
    %13 = vector.broadcast %10 : bf16 to vector<8x128xbf16>
    %14 = tpu.concatenate %12, %13 in 0 : vector<24x128xbf16>, vector<8x128xbf16> -> vector<32x128xbf16>
    %c0_8 = arith.constant 0 : index
    %c128 = arith.constant 128 : index
    %15 = vector.load %arg15[%c0_8, %c128] : memref<64x256xbf16, #tpu.memory_space<vmem>>, vector<32x128xbf16>
    tpu.vector_store %arg15[%c0_8, %c128], %14 {strides = array<i32>} : memref<64x256xbf16, #tpu.memory_space<vmem>>, vector<32x128xbf16>,
    %c1 = arith.constant 1 : index
    %c0_9 = arith.constant 0 : index
    %c0_10 = arith.constant 0 : index
    %16 = vector.load %arg1[%c1, %c0_9, %c0_10] : memref<2x16x128xbf16, #tpu.memory_space<vmem>>, vector<1x16x128xbf16>
    %17 = vector.shape_cast %16 : vector<1x16x128xbf16> to vector<16x128xbf16>
    %c0_i32_11 = arith.constant 0 : i32
    %18 = arith.sitofp %c0_i32_11 : i32 to bf16
    %19 = vector.broadcast %18 : bf16 to vector<8x128xbf16>
    %20 = tpu.concatenate %19, %17 in 0 : vector<8x128xbf16>, vector<16x128xbf16> -> vector<24x128xbf16>
    %21 = vector.broadcast %18 : bf16 to vector<8x128xbf16>
    %22 = tpu.concatenate %20, %21 in 0 : vector<24x128xbf16>, vector<8x128xbf16> -> vector<32x128xbf16>
    %c32 = arith.constant 32 : index
    %c0_12 = arith.constant 0 : index
    %23 = vector.load %arg15[%c32, %c0_12] : memref<64x256xbf16, #tpu.memory_space<vmem>>, vector<32x128xbf16>
    tpu.vector_store %arg15[%c32, %c0_12], %22 {strides = array<i32>} : memref<64x256xbf16, #tpu.memory_space<vmem>>, vector<32x128xbf16>,
    %c1_13 = arith.constant 1 : index
    %c0_14 = arith.constant 0 : index
    %c0_15 = arith.constant 0 : index
    %24 = vector.load %arg2[%c1_13, %c0_14, %c0_15] : memref<2x16x128xbf16, #tpu.memory_space<vmem>>, vector<1x16x128xbf16>
    %25 = vector.shape_cast %24 : vector<1x16x128xbf16> to vector<16x128xbf16>
    %c0_i32_16 = arith.constant 0 : i32
    %26 = arith.sitofp %c0_i32_16 : i32 to bf16
    %27 = vector.broadcast %26 : bf16 to vector<8x128xbf16>
    %28 = tpu.concatenate %27, %25 in 0 : vector<8x128xbf16>, vector<16x128xbf16> -> vector<24x128xbf16>
    %29 = vector.broadcast %26 : bf16 to vector<8x128xbf16>
    %30 = tpu.concatenate %28, %29 in 0 : vector<24x128xbf16>, vector<8x128xbf16> -> vector<32x128xbf16>
    %c32_17 = arith.constant 32 : index
    %c128_18 = arith.constant 128 : index
    %31 = vector.load %arg15[%c32_17, %c128_18] : memref<64x256xbf16, #tpu.memory_space<vmem>>, vector<32x128xbf16>
    tpu.vector_store %arg15[%c32_17, %c128_18], %30 {strides = array<i32>} : memref<64x256xbf16, #tpu.memory_space<vmem>>, vector<32x128xbf16>,
    %c4 = arith.constant 4 : index
    %c0_19 = arith.constant 0 : index
    %32 = vector.load %arg15[%c4, %c0_19] : memref<64x256xbf16, #tpu.memory_space<vmem>>, vector<48x256xbf16>
    %c0_20 = arith.constant 0 : index
    %c0_21 = arith.constant 0 : index
    %c0_22 = arith.constant 0 : index
    %33 = vector.load %arg3[%c0_20, %c0_21, %c0_22] : memref<5x256x128xbf16, #tpu.memory_space<vmem>>, vector<1x256x128xbf16>
    %34 = vector.shape_cast %33 : vector<1x256x128xbf16> to vector<256x128xbf16>
    %cst = arith.constant dense<0.000000e+00> : vector<48x128xf32>
    %35 = tpu.matmul %32, %34, %cst {dimension_numbers = #tpu.dot_dimension_numbers<[1], [0], [0], [1], [0, 0, 1, 1], [], []>} : vector<48x256xbf16>, vector<256x128xbf16>, vector<48x128xf32> -> vector<48x128xf32>
    %c6 = arith.constant 6 : index
    %c0_23 = arith.constant 0 : index
    %36 = vector.load %arg15[%c6, %c0_23] : memref<64x256xbf16, #tpu.memory_space<vmem>>, vector<48x256xbf16>
    %c1_24 = arith.constant 1 : index
    %c0_25 = arith.constant 0 : index
    %c0_26 = arith.constant 0 : index
    %37 = vector.load %arg3[%c1_24, %c0_25, %c0_26] : memref<5x256x128xbf16, #tpu.memory_space<vmem>>, vector<1x256x128xbf16>
    %38 = vector.shape_cast %37 : vector<1x256x128xbf16> to vector<256x128xbf16>
    %cst_27 = arith.constant dense<0.000000e+00> : vector<48x128xf32>
    %39 = tpu.matmul %36, %38, %cst_27 {dimension_numbers = #tpu.dot_dimension_numbers<[1], [0], [0], [1], [0, 0, 1, 1], [], []>} : vector<48x256xbf16>, vector<256x128xbf16>, vector<48x128xf32> -> vector<48x128xf32>
    %40 = arith.addf %35, %39 : vector<48x128xf32>
    %c8 = arith.constant 8 : index
    %c0_28 = arith.constant 0 : index
    %41 = vector.load %arg15[%c8, %c0_28] : memref<64x256xbf16, #tpu.memory_space<vmem>>, vector<48x256xbf16>
    %c2 = arith.constant 2 : index
    %c0_29 = arith.constant 0 : index
    %c0_30 = arith.constant 0 : index
    %42 = vector.load %arg3[%c2, %c0_29, %c0_30] : memref<5x256x128xbf16, #tpu.memory_space<vmem>>, vector<1x256x128xbf16>
    %43 = vector.shape_cast %42 : vector<1x256x128xbf16> to vector<256x128xbf16>
    %cst_31 = arith.constant dense<0.000000e+00> : vector<48x128xf32>
    %44 = tpu.matmul %41, %43, %cst_31 {dimension_numbers = #tpu.dot_dimension_numbers<[1], [0], [0], [1], [0, 0, 1, 1], [], []>} : vector<48x256xbf16>, vector<256x128xbf16>, vector<48x128xf32> -> vector<48x128xf32>
    %45 = arith.addf %40, %44 : vector<48x128xf32>
    %c10 = arith.constant 10 : index
    %c0_32 = arith.constant 0 : index
    %46 = vector.load %arg15[%c10, %c0_32] : memref<64x256xbf16, #tpu.memory_space<vmem>>, vector<48x256xbf16>
    %c3 = arith.constant 3 : index
    %c0_33 = arith.constant 0 : index
    %c0_34 = arith.constant 0 : index
    %47 = vector.load %arg3[%c3, %c0_33, %c0_34] : memref<5x256x128xbf16, #tpu.memory_space<vmem>>, vector<1x256x128xbf16>
    %48 = vector.shape_cast %47 : vector<1x256x128xbf16> to vector<256x128xbf16>
    %cst_35 = arith.constant dense<0.000000e+00> : vector<48x128xf32>
    %49 = tpu.matmul %46, %48, %cst_35 {dimension_numbers = #tpu.dot_dimension_numbers<[1], [0], [0], [1], [0, 0, 1, 1], [], []>} : vector<48x256xbf16>, vector<256x128xbf16>, vector<48x128xf32> -> vector<48x128xf32>
    %50 = arith.addf %45, %49 : vector<48x128xf32>
    %c12 = arith.constant 12 : index
    %c0_36 = arith.constant 0 : index
    %51 = vector.load %arg15[%c12, %c0_36] : memref<64x256xbf16, #tpu.memory_space<vmem>>, vector<48x256xbf16>
    %c4_37 = arith.constant 4 : index
    %c0_38 = arith.constant 0 : index
    %c0_39 = arith.constant 0 : index
    %52 = vector.load %arg3[%c4_37, %c0_38, %c0_39] : memref<5x256x128xbf16, #tpu.memory_space<vmem>>, vector<1x256x128xbf16>
    %53 = vector.shape_cast %52 : vector<1x256x128xbf16> to vector<256x128xbf16>
    %cst_40 = arith.constant dense<0.000000e+00> : vector<48x128xf32>
    %54 = tpu.matmul %51, %53, %cst_40 {dimension_numbers = #tpu.dot_dimension_numbers<[1], [0], [0], [1], [0, 0, 1, 1], [], []>} : vector<48x256xbf16>, vector<256x128xbf16>, vector<48x128xf32> -> vector<48x128xf32>
    %55 = arith.addf %50, %54 : vector<48x128xf32>
    %c0_41 = arith.constant 0 : index
    %c0_42 = arith.constant 0 : index
    %56 = vector.load %arg4[%c0_41, %c0_42] : memref<1x128xf32, #tpu.memory_space<vmem>>, vector<1x128xf32>
    %57 = vector.broadcast %56 : vector<1x128xf32> to vector<48x128xf32>
    %58 = arith.mulf %55, %57 : vector<48x128xf32>
    %c0_43 = arith.constant 0 : index
    %c0_44 = arith.constant 0 : index
    %59 = vector.load %arg5[%c0_43, %c0_44] : memref<1x128xf32, #tpu.memory_space<vmem>>, vector<1x128xf32>
    %60 = vector.broadcast %59 : vector<1x128xf32> to vector<48x128xf32>
    %61 = arith.addf %58, %60 : vector<48x128xf32>
    %c0_45 = arith.constant 0 : index
    %c0_46 = arith.constant 0 : index
    %62 = vector.load %arg6[%c0_45, %c0_46] : memref<1x128xf32, #tpu.memory_space<vmem>>, vector<1x128xf32>
    %cst_47 = arith.constant 0.000000e+00 : f32
    %63 = vector.broadcast %cst_47 : f32 to vector<48x128xf32>
    %64 = arith.cmpf oge, %61, %63 : vector<48x128xf32>
    %65 = vector.broadcast %62 : vector<1x128xf32> to vector<48x128xf32>
    %66 = arith.mulf %65, %61 : vector<48x128xf32>
    %67 = arith.select %64, %61, %66 : vector<48x128xi1>, vector<48x128xf32>
    %68 = vector.extract_strided_slice %67 {offsets = [0, 0], sizes = [8, 128], strides = [1, 1]} : vector<48x128xf32> to vector<8x128xf32>
    %c0_i32_48 = arith.constant 0 : i32
    %69 = arith.sitofp %c0_i32_48 : i32 to f32
    %70 = vector.broadcast %69 : f32 to vector<8x128xf32>
    %71 = tpu.concatenate %70, %68 in 0 : vector<8x128xf32>, vector<8x128xf32> -> vector<16x128xf32>
    %72 = vector.broadcast %69 : f32 to vector<16x128xf32>
    %73 = tpu.concatenate %71, %72 in 0 : vector<16x128xf32>, vector<16x128xf32> -> vector<32x128xf32>
    %74 = arith.truncf %73 : vector<32x128xf32> to vector<32x128xbf16>
    %c0_49 = arith.constant 0 : index
    %c0_50 = arith.constant 0 : index
    %75 = vector.load %arg16[%c0_49, %c0_50] : memref<64x128xbf16, #tpu.memory_space<vmem>>, vector<32x128xbf16>
    tpu.vector_store %arg16[%c0_49, %c0_50], %74 {strides = array<i32>} : memref<64x128xbf16, #tpu.memory_space<vmem>>, vector<32x128xbf16>,
    %76 = vector.extract_strided_slice %67 {offsets = [32, 0], sizes = [8, 128], strides = [1, 1]} : vector<48x128xf32> to vector<8x128xf32>
    %c0_i32_51 = arith.constant 0 : i32
    %77 = arith.sitofp %c0_i32_51 : i32 to f32
    %78 = vector.broadcast %77 : f32 to vector<8x128xf32>
    %79 = tpu.concatenate %78, %76 in 0 : vector<8x128xf32>, vector<8x128xf32> -> vector<16x128xf32>
    %80 = vector.broadcast %77 : f32 to vector<16x128xf32>
    %81 = tpu.concatenate %79, %80 in 0 : vector<16x128xf32>, vector<16x128xf32> -> vector<32x128xf32>
    %82 = arith.truncf %81 : vector<32x128xf32> to vector<32x128xbf16>
    %c32_52 = arith.constant 32 : index
    %c0_53 = arith.constant 0 : index
    %83 = vector.load %arg16[%c32_52, %c0_53] : memref<64x128xbf16, #tpu.memory_space<vmem>>, vector<32x128xbf16>
    tpu.vector_store %arg16[%c32_52, %c0_53], %82 {strides = array<i32>} : memref<64x128xbf16, #tpu.memory_space<vmem>>, vector<32x128xbf16>,
    %c4_54 = arith.constant 4 : index
    %c0_55 = arith.constant 0 : index
    %84 = vector.load %arg16[%c4_54, %c0_55] : memref<64x128xbf16, #tpu.memory_space<vmem>>, vector<48x128xbf16>
    %c0_56 = arith.constant 0 : index
    %c0_57 = arith.constant 0 : index
    %c0_58 = arith.constant 0 : index
    %85 = vector.load %arg7[%c0_56, %c0_57, %c0_58] : memref<5x128x128xbf16, #tpu.memory_space<vmem>>, vector<1x128x128xbf16>
    %86 = vector.shape_cast %85 : vector<1x128x128xbf16> to vector<128x128xbf16>
    %cst_59 = arith.constant dense<0.000000e+00> : vector<48x128xf32>
    %87 = tpu.matmul %84, %86, %cst_59 {dimension_numbers = #tpu.dot_dimension_numbers<[1], [0], [0], [1], [0, 0, 1, 1], [], []>} : vector<48x128xbf16>, vector<128x128xbf16>, vector<48x128xf32> -> vector<48x128xf32>
    %c6_60 = arith.constant 6 : index
    %c0_61 = arith.constant 0 : index
    %88 = vector.load %arg16[%c6_60, %c0_61] : memref<64x128xbf16, #tpu.memory_space<vmem>>, vector<48x128xbf16>
    %c1_62 = arith.constant 1 : index
    %c0_63 = arith.constant 0 : index
    %c0_64 = arith.constant 0 : index
    %89 = vector.load %arg7[%c1_62, %c0_63, %c0_64] : memref<5x128x128xbf16, #tpu.memory_space<vmem>>, vector<1x128x128xbf16>
    %90 = vector.shape_cast %89 : vector<1x128x128xbf16> to vector<128x128xbf16>
    %cst_65 = arith.constant dense<0.000000e+00> : vector<48x128xf32>
    %91 = tpu.matmul %88, %90, %cst_65 {dimension_numbers = #tpu.dot_dimension_numbers<[1], [0], [0], [1], [0, 0, 1, 1], [], []>} : vector<48x128xbf16>, vector<128x128xbf16>, vector<48x128xf32> -> vector<48x128xf32>
    %92 = arith.addf %87, %91 : vector<48x128xf32>
    %c8_66 = arith.constant 8 : index
    %c0_67 = arith.constant 0 : index
    %93 = vector.load %arg16[%c8_66, %c0_67] : memref<64x128xbf16, #tpu.memory_space<vmem>>, vector<48x128xbf16>
    %c2_68 = arith.constant 2 : index
    %c0_69 = arith.constant 0 : index
    %c0_70 = arith.constant 0 : index
    %94 = vector.load %arg7[%c2_68, %c0_69, %c0_70] : memref<5x128x128xbf16, #tpu.memory_space<vmem>>, vector<1x128x128xbf16>
    %95 = vector.shape_cast %94 : vector<1x128x128xbf16> to vector<128x128xbf16>
    %cst_71 = arith.constant dense<0.000000e+00> : vector<48x128xf32>
    %96 = tpu.matmul %93, %95, %cst_71 {dimension_numbers = #tpu.dot_dimension_numbers<[1], [0], [0], [1], [0, 0, 1, 1], [], []>} : vector<48x128xbf16>, vector<128x128xbf16>, vector<48x128xf32> -> vector<48x128xf32>
    %97 = arith.addf %92, %96 : vector<48x128xf32>
    %c10_72 = arith.constant 10 : index
    %c0_73 = arith.constant 0 : index
    %98 = vector.load %arg16[%c10_72, %c0_73] : memref<64x128xbf16, #tpu.memory_space<vmem>>, vector<48x128xbf16>
    %c3_74 = arith.constant 3 : index
    %c0_75 = arith.constant 0 : index
    %c0_76 = arith.constant 0 : index
    %99 = vector.load %arg7[%c3_74, %c0_75, %c0_76] : memref<5x128x128xbf16, #tpu.memory_space<vmem>>, vector<1x128x128xbf16>
    %100 = vector.shape_cast %99 : vector<1x128x128xbf16> to vector<128x128xbf16>
    %cst_77 = arith.constant dense<0.000000e+00> : vector<48x128xf32>
    %101 = tpu.matmul %98, %100, %cst_77 {dimension_numbers = #tpu.dot_dimension_numbers<[1], [0], [0], [1], [0, 0, 1, 1], [], []>} : vector<48x128xbf16>, vector<128x128xbf16>, vector<48x128xf32> -> vector<48x128xf32>
    %102 = arith.addf %97, %101 : vector<48x128xf32>
    %c12_78 = arith.constant 12 : index
    %c0_79 = arith.constant 0 : index
    %103 = vector.load %arg16[%c12_78, %c0_79] : memref<64x128xbf16, #tpu.memory_space<vmem>>, vector<48x128xbf16>
    %c4_80 = arith.constant 4 : index
    %c0_81 = arith.constant 0 : index
    %c0_82 = arith.constant 0 : index
    %104 = vector.load %arg7[%c4_80, %c0_81, %c0_82] : memref<5x128x128xbf16, #tpu.memory_space<vmem>>, vector<1x128x128xbf16>
    %105 = vector.shape_cast %104 : vector<1x128x128xbf16> to vector<128x128xbf16>
    %cst_83 = arith.constant dense<0.000000e+00> : vector<48x128xf32>
    %106 = tpu.matmul %103, %105, %cst_83 {dimension_numbers = #tpu.dot_dimension_numbers<[1], [0], [0], [1], [0, 0, 1, 1], [], []>} : vector<48x128xbf16>, vector<128x128xbf16>, vector<48x128xf32> -> vector<48x128xf32>
    %107 = arith.addf %102, %106 : vector<48x128xf32>
    %c0_84 = arith.constant 0 : index
    %c0_85 = arith.constant 0 : index
    %108 = vector.load %arg8[%c0_84, %c0_85] : memref<1x128xf32, #tpu.memory_space<vmem>>, vector<1x128xf32>
    %109 = vector.broadcast %108 : vector<1x128xf32> to vector<48x128xf32>
    %110 = arith.mulf %107, %109 : vector<48x128xf32>
    %c0_86 = arith.constant 0 : index
    %c0_87 = arith.constant 0 : index
    %111 = vector.load %arg9[%c0_86, %c0_87] : memref<1x128xf32, #tpu.memory_space<vmem>>, vector<1x128xf32>
    %112 = vector.broadcast %111 : vector<1x128xf32> to vector<48x128xf32>
    %113 = arith.addf %110, %112 : vector<48x128xf32>
    %c0_88 = arith.constant 0 : index
    %c0_89 = arith.constant 0 : index
    %114 = vector.load %arg10[%c0_88, %c0_89] : memref<1x128xf32, #tpu.memory_space<vmem>>, vector<1x128xf32>
    %cst_90 = arith.constant 0.000000e+00 : f32
    %115 = vector.broadcast %cst_90 : f32 to vector<48x128xf32>
    %116 = arith.cmpf oge, %113, %115 : vector<48x128xf32>
    %117 = vector.broadcast %114 : vector<1x128xf32> to vector<48x128xf32>
    %118 = arith.mulf %117, %113 : vector<48x128xf32>
    %119 = arith.select %116, %113, %118 : vector<48x128xi1>, vector<48x128xf32>
    %c8_91 = arith.constant 8 : index
    %c0_92 = arith.constant 0 : index
    %120 = vector.load %arg15[%c8_91, %c0_92] : memref<64x256xbf16, #tpu.memory_space<vmem>>, vector<48x256xbf16>
    %c0_93 = arith.constant 0 : index
    %c0_94 = arith.constant 0 : index
    %121 = vector.load %arg11[%c0_93, %c0_94] : memref<256x128xbf16, #tpu.memory_space<vmem>>, vector<256x128xbf16>
    %cst_95 = arith.constant dense<0.000000e+00> : vector<48x128xf32>
    %122 = tpu.matmul %120, %121, %cst_95 {dimension_numbers = #tpu.dot_dimension_numbers<[1], [0], [0], [1], [0, 0, 1, 1], [], []>} : vector<48x256xbf16>, vector<256x128xbf16>, vector<48x128xf32> -> vector<48x128xf32>
    %c0_96 = arith.constant 0 : index
    %c0_97 = arith.constant 0 : index
    %123 = vector.load %arg12[%c0_96, %c0_97] : memref<1x128xf32, #tpu.memory_space<vmem>>, vector<1x128xf32>
    %124 = vector.broadcast %123 : vector<1x128xf32> to vector<48x128xf32>
    %125 = arith.addf %122, %124 : vector<48x128xf32>
    %126 = vector.extract_strided_slice %119 {offsets = [0, 0], sizes = [8, 128], strides = [1, 1]} : vector<48x128xf32> to vector<8x128xf32>
    %127 = vector.extract_strided_slice %125 {offsets = [0, 0], sizes = [8, 128], strides = [1, 1]} : vector<48x128xf32> to vector<8x128xf32>
    %128 = arith.addf %126, %127 : vector<8x128xf32>
    %c0_98 = arith.constant 0 : index
    %c0_99 = arith.constant 0 : index
    %129 = vector.load %arg13[%c0_98, %c0_99] : memref<1x128xf32, #tpu.memory_space<vmem>>, vector<1x128xf32>
    %cst_100 = arith.constant 0.000000e+00 : f32
    %130 = vector.broadcast %cst_100 : f32 to vector<8x128xf32>
    %131 = arith.cmpf oge, %128, %130 : vector<8x128xf32>
    %132 = vector.broadcast %129 : vector<1x128xf32> to vector<8x128xf32>
    %133 = arith.mulf %132, %128 : vector<8x128xf32>
    %134 = arith.select %131, %128, %133 : vector<8x128xi1>, vector<8x128xf32>
    %c0_i32_101 = arith.constant 0 : i32
    %135 = arith.sitofp %c0_i32_101 : i32 to f32
    %136 = vector.broadcast %135 : f32 to vector<8x128xf32>
    %137 = tpu.concatenate %134, %136 in 0 : vector<8x128xf32>, vector<8x128xf32> -> vector<16x128xf32>
    %138 = arith.truncf %137 : vector<16x128xf32> to vector<16x128xbf16>
    %c0_102 = arith.constant 0 : index
    %c0_103 = arith.constant 0 : index
    %c0_104 = arith.constant 0 : index
    %139 = vector.load %arg14[%c0_102, %c0_103, %c0_104] : memref<2x16x128xbf16, #tpu.memory_space<vmem>>, vector<1x16x128xbf16>
    %140 = vector.shape_cast %139 : vector<1x16x128xbf16> to vector<16x128xbf16>
    %141 = vector.shape_cast %138 : vector<16x128xbf16> to vector<1x16x128xbf16>
    tpu.vector_store %arg14[%c0_102, %c0_103, %c0_104], %141 {strides = array<i32>} : memref<2x16x128xbf16, #tpu.memory_space<vmem>>, vector<1x16x128xbf16>,
    %142 = vector.extract_strided_slice %119 {offsets = [32, 0], sizes = [8, 128], strides = [1, 1]} : vector<48x128xf32> to vector<8x128xf32>
    %143 = vector.extract_strided_slice %125 {offsets = [32, 0], sizes = [8, 128], strides = [1, 1]} : vector<48x128xf32> to vector<8x128xf32>
    %144 = arith.addf %142, %143 : vector<8x128xf32>
    %c0_105 = arith.constant 0 : index
    %c0_106 = arith.constant 0 : index
    %145 = vector.load %arg13[%c0_105, %c0_106] : memref<1x128xf32, #tpu.memory_space<vmem>>, vector<1x128xf32>
    %cst_107 = arith.constant 0.000000e+00 : f32
    %146 = vector.broadcast %cst_107 : f32 to vector<8x128xf32>
    %147 = arith.cmpf oge, %144, %146 : vector<8x128xf32>
    %148 = vector.broadcast %145 : vector<1x128xf32> to vector<8x128xf32>
    %149 = arith.mulf %148, %144 : vector<8x128xf32>
    %150 = arith.select %147, %144, %149 : vector<8x128xi1>, vector<8x128xf32>
    %c0_i32_108 = arith.constant 0 : i32
    %151 = arith.sitofp %c0_i32_108 : i32 to f32
    %152 = vector.broadcast %151 : f32 to vector<8x128xf32>
    %153 = tpu.concatenate %150, %152 in 0 : vector<8x128xf32>, vector<8x128xf32> -> vector<16x128xf32>
    %154 = arith.truncf %153 : vector<16x128xf32> to vector<16x128xbf16>
    %c1_109 = arith.constant 1 : index
    %c0_110 = arith.constant 0 : index
    %c0_111 = arith.constant 0 : index
    %155 = vector.load %arg14[%c1_109, %c0_110, %c0_111] : memref<2x16x128xbf16, #tpu.memory_space<vmem>>, vector<1x16x128xbf16>
    %156 = vector.shape_cast %155 : vector<1x16x128xbf16> to vector<16x128xbf16>
    %157 = vector.shape_cast %154 : vector<16x128xbf16> to vector<1x16x128xbf16>
    tpu.vector_store %arg14[%c1_109, %c0_110, %c0_111], %157 {strides = array<i32>} : memref<2x16x128xbf16, #tpu.memory_space<vmem>>, vector<1x16x128xbf16>,
    return
  }
  func.func @transform_0(%arg0: i32) -> (i32, i32, i32) {
    %c0_i32 = arith.constant 0 : i32
    %c0_i32_0 = arith.constant 0 : i32
    %c0_i32_1 = arith.constant 0 : i32
    return %arg0, %c0_i32, %c0_i32_0 : i32, i32, i32
  }
  func.func @transform_1(%arg0: i32) -> (i32, i32, i32) {
    %c0_i32 = arith.constant 0 : i32
    %c0_i32_0 = arith.constant 0 : i32
    %c0_i32_1 = arith.constant 0 : i32
    return %arg0, %c0_i32, %c0_i32_0 : i32, i32, i32
  }
  func.func @transform_2(%arg0: i32) -> (i32, i32, i32) {
    %c0_i32 = arith.constant 0 : i32
    %c0_i32_0 = arith.constant 0 : i32
    %c0_i32_1 = arith.constant 0 : i32
    %c0_i32_2 = arith.constant 0 : i32
    return %c0_i32, %c0_i32_0, %c0_i32_1 : i32, i32, i32
  }
  func.func @transform_3(%arg0: i32) -> (i32, i32) {
    %c0_i32 = arith.constant 0 : i32
    %c0_i32_0 = arith.constant 0 : i32
    %c0_i32_1 = arith.constant 0 : i32
    return %c0_i32, %c0_i32_0 : i32, i32
  }
  func.func @transform_4(%arg0: i32) -> (i32, i32) {
    %c0_i32 = arith.constant 0 : i32
    %c0_i32_0 = arith.constant 0 : i32
    %c0_i32_1 = arith.constant 0 : i32
    return %c0_i32, %c0_i32_0 : i32, i32
  }
  func.func @transform_5(%arg0: i32) -> (i32, i32) {
    %c0_i32 = arith.constant 0 : i32
    %c0_i32_0 = arith.constant 0 : i32
    %c0_i32_1 = arith.constant 0 : i32
    return %c0_i32, %c0_i32_0 : i32, i32
  }
  func.func @transform_6(%arg0: i32) -> (i32, i32, i32) {
    %c0_i32 = arith.constant 0 : i32
    %c0_i32_0 = arith.constant 0 : i32
    %c0_i32_1 = arith.constant 0 : i32
    %c0_i32_2 = arith.constant 0 : i32
    return %c0_i32, %c0_i32_0, %c0_i32_1 : i32, i32, i32
  }
  func.func @transform_7(%arg0: i32) -> (i32, i32) {
    %c0_i32 = arith.constant 0 : i32
    %c0_i32_0 = arith.constant 0 : i32
    %c0_i32_1 = arith.constant 0 : i32
    return %c0_i32, %c0_i32_0 : i32, i32
  }
  func.func @transform_8(%arg0: i32) -> (i32, i32) {
    %c0_i32 = arith.constant 0 : i32
    %c0_i32_0 = arith.constant 0 : i32
    %c0_i32_1 = arith.constant 0 : i32
    return %c0_i32, %c0_i32_0 : i32, i32
  }
  func.func @transform_9(%arg0: i32) -> (i32, i32) {
    %c0_i32 = arith.constant 0 : i32
    %c0_i32_0 = arith.constant 0 : i32
    %c0_i32_1 = arith.constant 0 : i32
    return %c0_i32, %c0_i32_0 : i32, i32
  }
  func.func @transform_10(%arg0: i32) -> (i32, i32) {
    %c0_i32 = arith.constant 0 : i32
    %c0_i32_0 = arith.constant 0 : i32
    %c0_i32_1 = arith.constant 0 : i32
    return %c0_i32, %c0_i32_0 : i32, i32
  }
  func.func @transform_11(%arg0: i32) -> (i32, i32) {
    %c0_i32 = arith.constant 0 : i32
    %c0_i32_0 = arith.constant 0 : i32
    %c0_i32_1 = arith.constant 0 : i32
    return %c0_i32, %c0_i32_0 : i32, i32
  }
  func.func @transform_12(%arg0: i32) -> (i32, i32) {
    %c0_i32 = arith.constant 0 : i32
    %c0_i32_0 = arith.constant 0 : i32
    %c0_i32_1 = arith.constant 0 : i32
    return %c0_i32, %c0_i32_0 : i32, i32
  }
  func.func @transform_13(%arg0: i32) -> (i32, i32, i32) {
    %c0_i32 = arith.constant 0 : i32
    %c0_i32_0 = arith.constant 0 : i32
    %c0_i32_1 = arith.constant 0 : i32
    return %arg0, %c0_i32, %c0_i32_0 : i32, i32, i32
  }
}

module attributes {stable_mosaic.version = 11 : i64} {
  func.func @_scale_shift_kernel(%arg0: i32, %arg1: memref<2x16x128xbf16, #tpu.memory_space<vmem>>, %arg2: memref<1x128xf32, #tpu.memory_space<vmem>>, %arg3: memref<1x128xf32, #tpu.memory_space<vmem>>, %arg4: memref<2x16x128xf32, #tpu.memory_space<vmem>>) attributes {dimension_semantics = [#tpu.dimension_semantics<parallel>], iteration_bounds = array<i64: 1>, scalar_prefetch = 0 : i64, scratch_operands = 0 : i64, tpu.core_type = #tpu.core_type<tc>, window_params = [{transform_indices = @transform_0, window_bounds = array<i64: 2, 16, 128>}, {pipeline_mode = #tpu.pipeline_mode<synchronous>, transform_indices = @transform_1, window_bounds = array<i64: 1, 128>}, {pipeline_mode = #tpu.pipeline_mode<synchronous>, transform_indices = @transform_2, window_bounds = array<i64: 1, 128>}, {transform_indices = @transform_3, window_bounds = array<i64: 2, 16, 128>}]} {
    %c0 = arith.constant 0 : index
    %c0_0 = arith.constant 0 : index
    %c0_1 = arith.constant 0 : index
    %0 = vector.load %arg1[%c0, %c0_0, %c0_1] : memref<2x16x128xbf16, #tpu.memory_space<vmem>>, vector<2x16x128xbf16>
    %1 = arith.extf %0 : vector<2x16x128xbf16> to vector<2x16x128xf32>
    %c0_2 = arith.constant 0 : index
    %c0_3 = arith.constant 0 : index
    %2 = vector.load %arg2[%c0_2, %c0_3] : memref<1x128xf32, #tpu.memory_space<vmem>>, vector<1x128xf32>
    %3 = vector.shape_cast %2 : vector<1x128xf32> to vector<1x1x128xf32>
    %4 = vector.broadcast %3 : vector<1x1x128xf32> to vector<2x16x128xf32>
    %5 = arith.mulf %1, %4 : vector<2x16x128xf32>
    %c0_4 = arith.constant 0 : index
    %c0_5 = arith.constant 0 : index
    %6 = vector.load %arg3[%c0_4, %c0_5] : memref<1x128xf32, #tpu.memory_space<vmem>>, vector<1x128xf32>
    %7 = vector.shape_cast %6 : vector<1x128xf32> to vector<1x1x128xf32>
    %8 = vector.broadcast %7 : vector<1x1x128xf32> to vector<2x16x128xf32>
    %9 = arith.addf %5, %8 : vector<2x16x128xf32>
    %c0_6 = arith.constant 0 : index
    %c0_7 = arith.constant 0 : index
    %c0_8 = arith.constant 0 : index
    %10 = vector.load %arg4[%c0_6, %c0_7, %c0_8] : memref<2x16x128xf32, #tpu.memory_space<vmem>>, vector<2x16x128xf32>
    tpu.vector_store %arg4[%c0_6, %c0_7, %c0_8], %9 {strides = array<i32>} : memref<2x16x128xf32, #tpu.memory_space<vmem>>, vector<2x16x128xf32>,
    return
  }
  func.func @transform_0(%arg0: i32) -> (i32, i32, i32) {
    %c0_i32 = arith.constant 0 : i32
    %c0_i32_0 = arith.constant 0 : i32
    %c0_i32_1 = arith.constant 0 : i32
    return %arg0, %c0_i32, %c0_i32_0 : i32, i32, i32
  }
  func.func @transform_1(%arg0: i32) -> (i32, i32) {
    %c0_i32 = arith.constant 0 : i32
    %c0_i32_0 = arith.constant 0 : i32
    %c0_i32_1 = arith.constant 0 : i32
    return %c0_i32, %c0_i32_0 : i32, i32
  }
  func.func @transform_2(%arg0: i32) -> (i32, i32) {
    %c0_i32 = arith.constant 0 : i32
    %c0_i32_0 = arith.constant 0 : i32
    %c0_i32_1 = arith.constant 0 : i32
    return %c0_i32, %c0_i32_0 : i32, i32
  }
  func.func @transform_3(%arg0: i32) -> (i32, i32, i32) {
    %c0_i32 = arith.constant 0 : i32
    %c0_i32_0 = arith.constant 0 : i32
    %c0_i32_1 = arith.constant 0 : i32
    return %arg0, %c0_i32, %c0_i32_0 : i32, i32, i32
  }
}

</mosaic_0001>

<llo_original>
// kernel: dense_tcn_feature_forward.9
$region0: #{dense_tcn_feature_forward.9}
  #allocation0 [shape = 'u32[]', space=smem, size = 0x4, offset = 0x4, fixed_abs, tag = 'smem constant byte address 0x4 - core index']
  #allocation1 [shape = 'u32[72,128]{1,0:T(1,128)}', space=vmem, size = 0x9000, scoped, tag = 'internal scratch']
  %s0 = inlined_call_operand.vmem [shape: bf16[2,16,16], index: 0, kind: input, shape index: {}]
  %s1 = inlined_call_operand.vmem [shape: bf16[16,128], index: 1, kind: input, shape index: {}]
  %s2 = inlined_call_operand.vmem [shape: f32[1,128], index: 2, kind: input, shape index: {}]
  %s3 = inlined_call_operand.vmem [shape: bf16[2,16,128], index: 3, kind: output, shape index: {}]
  %s4 = sld [smem:[#allocation0]]
  $region22: #{dense_tcn_feature_forward.9} parent=0
    _
  %s6 = ssub.s32 1, %s4
  %s7 = scalar_select 0, %s6, %s4
  // Predicated region
  $region2: #{dense_tcn_feature_forward.9} parent=0 // pred_check
    _
  $region3: #{dense_tcn_feature_forward.9} parent=0 // pred_check_branch
    %9 = sbr.rel (0) target = $region5
  $region4: #{dense_tcn_feature_forward.9} parent=0 // pred_region
    _
  $region5: #{dense_tcn_feature_forward.9} parent=0 // pred_fallthru
    _
  // Predicated region
  $region6: #{dense_tcn_feature_forward.9} parent=0 // pred_check
    _
  $region7: #{dense_tcn_feature_forward.9} parent=0 // pred_check_branch
    %11 = sbr.rel (0) target = $region9
  $region8: #{dense_tcn_feature_forward.9} parent=0 // pred_region
    _
  $region9: #{dense_tcn_feature_forward.9} parent=0 // pred_fallthru
    _
  // Predicated region
  $region10: #{dense_tcn_feature_forward.9} parent=0 // pred_check
    _
  $region11: #{dense_tcn_feature_forward.9} parent=0 // pred_check_branch
    %13 = sbr.rel (0) target = $region13
  $region12: #{dense_tcn_feature_forward.9} parent=0 // pred_region
    _
  $region13: #{dense_tcn_feature_forward.9} parent=0 // pred_fallthru
    _
  %v15 = vld [vmem:[%s0] sm:$0xf]
  %v16 = vld [vmem:[%s0 + $0x4] sm:$0xf]
  %v17 = vld [vmem:[%s1] sm:$0xf]
  %v18 = vld [vmem:[%s1 + $0x4] sm:$0xf]
  %v21 = vunpack.c.l.b16 %v15
  %v22 = vunpack.c.l.b16 %v16
  %v23 = vpack.c.b16 %v22, %v21
  %v26 = vunpack.c.l.b16 %v17
  %v27 = vunpack.c.l.b16 %v18
  %v28 = vpack.c.b16 %v27, %v26
  %vm30 = vcmask 130048
  %v32 = vsel %vm30, %v23, 0
  %34 = vmatpush.bf16.msra.mxu0 0
  %35 = vmatpush.bf16.msra.mxu0 0
  %36 = vmatpush.bf16.msra.mxu0 0
  %37 = vmatpush.bf16.msra.mxu0 0
  %38 = vmatpush.bf16.msra.mxu0 0
  %39 = vmatpush.bf16.msra.mxu0 0
  %40 = vmatpush.bf16.msra.mxu0 0
  %41 = vmatpush.bf16.msra.mxu0 %v28
  %42 = vmatmul.bf16.gmra.mxu0 %v32
  %v43 = vpop.f32.mrf.mxu0
  %v44 = vadd.f32 0.0, %v43
  %v45 = vpop.f32.mrf.mxu0
  %v46 = vadd.f32 0.0, %v45
  %47 = vdwg.mxu0
  %v48 = vld [vmem:[%s2] sm:$0x1]
  %vm49 = vcmp.ge.f32.partialorder %v44, 0.0
  %vm50 = vcmp.ge.f32.partialorder %v46, 0.0
  %v52 = vperm.slane %v48, 0
  %v54 = vmul.f32 %v52, %v44
  %v55 = vmul.f32 %v52, %v46
  %v56 = vsel %vm49, %v44, %v54
  %v57 = vsel %vm50, %v46, %v55
  %v58 = vpack.c.bf16 %v56, %v56
  %v59 = vpack.c.bf16 %v57, %v57
  %60 = vst [vmem:[%s3] sm:$0xf] %v58
  %61 = vst [vmem:[%s3 + $0x4] sm:$0xf] %v59
  %s62 = scalar_lea.vmem %s0, 8
  %v63 = vld [vmem:[%s62] sm:$0xf]
  %v64 = vld [vmem:[%s62 + $0x4] sm:$0xf]
  %v65 = vld [vmem:[%s1] sm:$0xf]
  %v66 = vld [vmem:[%s1 + $0x4] sm:$0xf]
  %v69 = vunpack.c.l.b16 %v63
  %v70 = vunpack.c.l.b16 %v64
  %v71 = vpack.c.b16 %v70, %v69
  %v74 = vunpack.c.l.b16 %v65
  %v75 = vunpack.c.l.b16 %v66
  %v76 = vpack.c.b16 %v75, %v74
  %v79 = vsel %vm30, %v71, 0
  %81 = vmatpush.bf16.msra.mxu0 0
  %82 = vmatpush.bf16.msra.mxu0 0
  %83 = vmatpush.bf16.msra.mxu0 0
  %84 = vmatpush.bf16.msra.mxu0 0
  %85 = vmatpush.bf16.msra.mxu0 0
  %86 = vmatpush.bf16.msra.mxu0 0
  %87 = vmatpush.bf16.msra.mxu0 0
  %88 = vmatpush.bf16.msra.mxu0 %v76
  %89 = vmatmul.bf16.gmra.mxu0 %v79
  %v90 = vpop.f32.mrf.mxu0
  %v91 = vadd.f32 0.0, %v90
  %v92 = vpop.f32.mrf.mxu0
  %v93 = vadd.f32 0.0, %v92
  %94 = vdwg.mxu0
  %v95 = vld [vmem:[%s2] sm:$0x1]
  %vm96 = vcmp.ge.f32.partialorder %v91, 0.0
  %vm97 = vcmp.ge.f32.partialorder %v93, 0.0
  %v99 = vperm.slane %v95, 0
  %v101 = vmul.f32 %v99, %v91
  %v102 = vmul.f32 %v99, %v93
  %v103 = vsel %vm96, %v91, %v101
  %v104 = vsel %vm97, %v93, %v102
  %v105 = vpack.c.bf16 %v103, %v103
  %v106 = vpack.c.bf16 %v104, %v104
  %s107 = scalar_lea.vmem %s3, 8
  %108 = vst [vmem:[%s107] sm:$0xf] %v105
  %109 = vst [vmem:[%s107 + $0x4] sm:$0xf] %v106
  // Predicated region
  $region14: #{dense_tcn_feature_forward.9} parent=0 // pred_check
    _
  $region15: #{dense_tcn_feature_forward.9} parent=0 // pred_check_branch
    %111 = sbr.rel (0) target = $region17
  $region16: #{dense_tcn_feature_forward.9} parent=0 // pred_region
    _
  $region17: #{dense_tcn_feature_forward.9} parent=0 // pred_fallthru
    _
  // Predicated region
  $region18: #{dense_tcn_feature_forward.9} parent=0 // pred_check
    _
  $region19: #{dense_tcn_feature_forward.9} parent=0 // pred_check_branch
    %113 = sbr.rel (0) target = $region21
  $region20: #{dense_tcn_feature_forward.9} parent=0 // pred_region
    _
  $region21: #{dense_tcn_feature_forward.9} parent=0 // pred_fallthru
    _

// kernel: dense_tcn_feature_forward.12
$region0: #{dense_tcn_feature_forward.12}
  #allocation0 [shape = 'u32[]', space=smem, size = 0x4, offset = 0x4, fixed_abs, tag = 'smem constant byte address 0x4 - core index']
  #allocation1 [shape = 'u32[72,128]{1,0:T(1,128)}', space=vmem, size = 0x9000, scoped, tag = 'internal scratch']
  %s0 = inlined_call_operand.vmem [shape: bf16[2,16,128], index: 0, kind: input, shape index: {}]
  %s1 = inlined_call_operand.vmem [shape: bf16[2,16,128], index: 1, kind: input, shape index: {}]
  %s2 = inlined_call_operand.vmem [shape: bf16[2,16,128], index: 2, kind: input, shape index: {}]
  %s3 = inlined_call_operand.hbm [shape: bf16[384,128], index: 3, kind: input, shape index: {}]
  %s4 = inlined_call_operand.vmem [shape: f32[1,128], index: 4, kind: input, shape index: {}]
  %s5 = inlined_call_operand.vmem [shape: bf16[2,16,128], index: 5, kind: output, shape index: {}]
  %s6 = sld [smem:[#allocation0]]
  $region34: #{dense_tcn_feature_forward.12} parent=0
    _
  %s8 = ssub.s32 1, %s6
  %s9 = scalar_select 0, %s8, %s6
  $region1: #{dense_tcn_feature_forward.12} parent=0
    #allocation2 [shape = 'u8[98304]{0}', space=vmem, size = 0x18000, scoped, tag = 'input window, operand 3, single buffered']
    #allocation3 [shape = 's32[1]{0}', space=sflag, size = 0x4, scoped, tag = 'scoped memory for dense_tcn_feature_forward.12']
    %10 = vsyncpa [#allocation3], 0
    // Predicated region
    $region2: #{dense_tcn_feature_forward.12} parent=1 // pred_check
      _
    $region3: #{dense_tcn_feature_forward.12} parent=1 // pred_check_branch
      %12 = sbr.rel (0) target = $region5
    $region4: #{dense_tcn_feature_forward.12} parent=1 // pred_region
      _
    $region5: #{dense_tcn_feature_forward.12} parent=1 // pred_fallthru
      _
    // Predicated region
    $region6: #{dense_tcn_feature_forward.12} parent=1 // pred_check
      _
    $region7: #{dense_tcn_feature_forward.12} parent=1 // pred_check_branch
      %14 = sbr.rel (0) target = $region9
    $region8: #{dense_tcn_feature_forward.12} parent=1 // pred_region
      _
    $region9: #{dense_tcn_feature_forward.12} parent=1 // pred_fallthru
      _
    // Predicated region
    $region10: #{dense_tcn_feature_forward.12} parent=1 // pred_check
      _
    $region11: #{dense_tcn_feature_forward.12} parent=1 // pred_check_branch
      %16 = sbr.rel (0) target = $region13
    $region12: #{dense_tcn_feature_forward.12} parent=1 // pred_region
      _
    $region13: #{dense_tcn_feature_forward.12} parent=1 // pred_fallthru
      _
    // Predicated region
    $region14: #{dense_tcn_feature_forward.12} parent=1 // pred_check
      _
    $region15: #{dense_tcn_feature_forward.12} parent=1 // pred_check_branch
      %18 = sbr.rel (0) target = $region17
    $region16: #{dense_tcn_feature_forward.12} parent=1 // pred_region
      %20 = vsyncadd [#allocation3], 0
      %s21 = sshll.u32 %s3, 4
      %s22 = int_to_ptr.hbm [resolvable:$true] %s21
      %s23 = sshll.u32 [#allocation2], 4
      %s24 = int_to_ptr.vmem [resolvable:$true] %s23
      %29 = dma.hbm_to_vmem [thread:$0]  %s22, 3072, %s24, [#allocation3], 64, 64, 4
    $region17: #{dense_tcn_feature_forward.12} parent=1 // pred_fallthru
      _
    // Predicated region
    $region18: #{dense_tcn_feature_forward.12} parent=1 // pred_check
      _
    $region19: #{dense_tcn_feature_forward.12} parent=1 // pred_check_branch
      %31 = sbr.rel (0) target = $region21
    $region20: #{dense_tcn_feature_forward.12} parent=1 // pred_region
      _
    $region21: #{dense_tcn_feature_forward.12} parent=1 // pred_fallthru
      _
    // Predicated region
    $region22: #{dense_tcn_feature_forward.12} parent=1 // pred_check
      _
    $region23: #{dense_tcn_feature_forward.12} parent=1 // pred_check_branch
      %33 = sbr.rel (0) target = $region25
    $region24: #{dense_tcn_feature_forward.12} parent=1 // pred_region
      %35 = dma.done [#allocation3], 3072
    $region25: #{dense_tcn_feature_forward.12} parent=1 // pred_fallthru
      _
    %v36 = vld [vmem:[%s0] sm:$0xf]
    %v37 = vld [vmem:[%s0 + $0x4] sm:$0xf]
    %v38 = vld [vmem:[#allocation2] sm:$0xf]
    %v39 = vld [vmem:[#allocation2 + $0x4] sm:$0xf]
    %v40 = vld [vmem:[#allocation2 + $0x8] sm:$0xf]
    %v41 = vld [vmem:[#allocation2 + $0xc] sm:$0xf]
    %v42 = vld [vmem:[#allocation2 + $0x10] sm:$0xf]
    %v43 = vld [vmem:[#allocation2 + $0x14] sm:$0xf]
    %v44 = vld [vmem:[#allocation2 + $0x18] sm:$0xf]
    %v45 = vld [vmem:[#allocation2 + $0x1c] sm:$0xf]
    %v46 = vld [vmem:[#allocation2 + $0x20] sm:$0xf]
    %v47 = vld [vmem:[#allocation2 + $0x24] sm:$0xf]
    %v48 = vld [vmem:[#allocation2 + $0x28] sm:$0xf]
    %v49 = vld [vmem:[#allocation2 + $0x2c] sm:$0xf]
    %v50 = vld [vmem:[#allocation2 + $0x30] sm:$0xf]
    %v51 = vld [vmem:[#allocation2 + $0x34] sm:$0xf]
    %v52 = vld [vmem:[#allocation2 + $0x38] sm:$0xf]
    %v53 = vld [vmem:[#allocation2 + $0x3c] sm:$0xf]
    %v54 = vld [vmem:[%s1] sm:$0xf]
    %v55 = vld [vmem:[%s1 + $0x4] sm:$0xf]
    %v56 = vld [vmem:[#allocation2 + $0x40] sm:$0xf]
    %v57 = vld [vmem:[#allocation2 + $0x44] sm:$0xf]
    %v58 = vld [vmem:[#allocation2 + $0x48] sm:$0xf]
    %v59 = vld [vmem:[#allocation2 + $0x4c] sm:$0xf]
    %v60 = vld [vmem:[#allocation2 + $0x50] sm:$0xf]
    %v61 = vld [vmem:[#allocation2 + $0x54] sm:$0xf]
    %v62 = vld [vmem:[#allocation2 + $0x58] sm:$0xf]
    %v63 = vld [vmem:[#allocation2 + $0x5c] sm:$0xf]
    %v64 = vld [vmem:[#allocation2 + $0x60] sm:$0xf]
    %v65 = vld [vmem:[#allocation2 + $0x64] sm:$0xf]
    %v66 = vld [vmem:[#allocation2 + $0x68] sm:$0xf]
    %v67 = vld [vmem:[#allocation2 + $0x6c] sm:$0xf]
    %v68 = vld [vmem:[#allocation2 + $0x70] sm:$0xf]
    %v69 = vld [vmem:[#allocation2 + $0x74] sm:$0xf]
    %v70 = vld [vmem:[#allocation2 + $0x78] sm:$0xf]
    %v71 = vld [vmem:[#allocation2 + $0x7c] sm:$0xf]
    %v74 = vunpack.c.l.b16 %v54
    %v75 = vunpack.c.l.b16 %v55
    %v76 = vpack.c.b16 %v75, %v74
    %v94 = vunpack.c.l.b16 %v56
    %v95 = vunpack.c.l.b16 %v57
    %v96 = vunpack.c.l.b16 %v58
    %v97 = vunpack.c.l.b16 %v59
    %v98 = vunpack.c.l.b16 %v60
    %v99 = vunpack.c.l.b16 %v61
    %v100 = vunpack.c.l.b16 %v62
    %v101 = vunpack.c.l.b16 %v63
    %v102 = vunpack.c.l.b16 %v64
    %v103 = vunpack.c.l.b16 %v65
    %v104 = vunpack.c.l.b16 %v66
    %v105 = vunpack.c.l.b16 %v67
    %v106 = vunpack.c.l.b16 %v68
    %v107 = vunpack.c.l.b16 %v69
    %v108 = vunpack.c.l.b16 %v70
    %v109 = vunpack.c.l.b16 %v71
    %v110 = vpack.c.b16 %v95, %v94
    %v111 = vpack.c.b16 %v97, %v96
    %v112 = vpack.c.b16 %v99, %v98
    %v113 = vpack.c.b16 %v101, %v100
    %v114 = vpack.c.b16 %v103, %v102
    %v115 = vpack.c.b16 %v105, %v104
    %v116 = vpack.c.b16 %v107, %v106
    %v117 = vpack.c.b16 %v109, %v108
    %126 = vmatpush.bf16.msra.mxu0 %v117
    %127 = vmatpush.bf16.msra.mxu0 %v116
    %128 = vmatpush.bf16.msra.mxu0 %v115
    %129 = vmatpush.bf16.msra.mxu0 %v114
    %130 = vmatpush.bf16.msra.mxu0 %v113
    %131 = vmatpush.bf16.msra.mxu0 %v112
    %132 = vmatpush.bf16.msra.mxu0 %v111
    %133 = vmatpush.bf16.msra.mxu0 %v110
    %134 = vmatmul.bf16.gmra.mxu0 %v76
    %v135 = vpop.f32.mrf.mxu0
    %v136 = vadd.f32 0.0, %v135
    %v137 = vpop.f32.mrf.mxu0
    %v138 = vadd.f32 0.0, %v137
    %139 = vdwg.mxu0
    %v142 = vunpack.c.l.b16 %v36
    %v143 = vunpack.c.l.b16 %v37
    %v144 = vpack.c.b16 %v143, %v142
    %v162 = vunpack.c.l.b16 %v38
    %v163 = vunpack.c.l.b16 %v39
    %v164 = vunpack.c.l.b16 %v40
    %v165 = vunpack.c.l.b16 %v41
    %v166 = vunpack.c.l.b16 %v42
    %v167 = vunpack.c.l.b16 %v43
    %v168 = vunpack.c.l.b16 %v44
    %v169 = vunpack.c.l.b16 %v45
    %v170 = vunpack.c.l.b16 %v46
    %v171 = vunpack.c.l.b16 %v47
    %v172 = vunpack.c.l.b16 %v48
    %v173 = vunpack.c.l.b16 %v49
    %v174 = vunpack.c.l.b16 %v50
    %v175 = vunpack.c.l.b16 %v51
    %v176 = vunpack.c.l.b16 %v52
    %v177 = vunpack.c.l.b16 %v53
    %v178 = vpack.c.b16 %v163, %v162
    %v179 = vpack.c.b16 %v165, %v164
    %v180 = vpack.c.b16 %v167, %v166
    %v181 = vpack.c.b16 %v169, %v168
    %v182 = vpack.c.b16 %v171, %v170
    %v183 = vpack.c.b16 %v173, %v172
    %v184 = vpack.c.b16 %v175, %v174
    %v185 = vpack.c.b16 %v177, %v176
    %194 = vmatpush.bf16.msra.mxu0 %v185
    %195 = vmatpush.bf16.msra.mxu0 %v184
    %196 = vmatpush.bf16.msra.mxu0 %v183
    %197 = vmatpush.bf16.msra.mxu0 %v182
    %198 = vmatpush.bf16.msra.mxu0 %v181
    %199 = vmatpush.bf16.msra.mxu0 %v180
    %200 = vmatpush.bf16.msra.mxu0 %v179
    %201 = vmatpush.bf16.msra.mxu0 %v178
    %202 = vmatmul.bf16.gmra.mxu0 %v144
    %v203 = vpop.f32.mrf.mxu0
    %v204 = vadd.f32 %v136, %v203
    %v205 = vpop.f32.mrf.mxu0
    %v206 = vadd.f32 %v138, %v205
    %207 = vdwg.mxu0
    %v208 = vld [vmem:[%s2] sm:$0xf]
    %v209 = vld [vmem:[%s2 + $0x4] sm:$0xf]
    %v210 = vld [vmem:[#allocation2 + $0x80] sm:$0xf]
    %v211 = vld [vmem:[#allocation2 + $0x84] sm:$0xf]
    %v212 = vld [vmem:[#allocation2 + $0x88] sm:$0xf]
    %v213 = vld [vmem:[#allocation2 + $0x8c] sm:$0xf]
    %v214 = vld [vmem:[#allocation2 + $0x90] sm:$0xf]
    %v215 = vld [vmem:[#allocation2 + $0x94] sm:$0xf]
    %v216 = vld [vmem:[#allocation2 + $0x98] sm:$0xf]
    %v217 = vld [vmem:[#allocation2 + $0x9c] sm:$0xf]
    %v218 = vld [vmem:[#allocation2 + $0xa0] sm:$0xf]
    %v219 = vld [vmem:[#allocation2 + $0xa4] sm:$0xf]
    %v220 = vld [vmem:[#allocation2 + $0xa8] sm:$0xf]
    %v221 = vld [vmem:[#allocation2 + $0xac] sm:$0xf]
    %v222 = vld [vmem:[#allocation2 + $0xb0] sm:$0xf]
    %v223 = vld [vmem:[#allocation2 + $0xb4] sm:$0xf]
    %v224 = vld [vmem:[#allocation2 + $0xb8] sm:$0xf]
    %v225 = vld [vmem:[#allocation2 + $0xbc] sm:$0xf]
    %v228 = vunpack.c.l.b16 %v208
    %v229 = vunpack.c.l.b16 %v209
    %v230 = vpack.c.b16 %v229, %v228
    %v248 = vunpack.c.l.b16 %v210
    %v249 = vunpack.c.l.b16 %v211
    %v250 = vunpack.c.l.b16 %v212
    %v251 = vunpack.c.l.b16 %v213
    %v252 = vunpack.c.l.b16 %v214
    %v253 = vunpack.c.l.b16 %v215
    %v254 = vunpack.c.l.b16 %v216
    %v255 = vunpack.c.l.b16 %v217
    %v256 = vunpack.c.l.b16 %v218
    %v257 = vunpack.c.l.b16 %v219
    %v258 = vunpack.c.l.b16 %v220
    %v259 = vunpack.c.l.b16 %v221
    %v260 = vunpack.c.l.b16 %v222
    %v261 = vunpack.c.l.b16 %v223
    %v262 = vunpack.c.l.b16 %v224
    %v263 = vunpack.c.l.b16 %v225
    %v264 = vpack.c.b16 %v249, %v248
    %v265 = vpack.c.b16 %v251, %v250
    %v266 = vpack.c.b16 %v253, %v252
    %v267 = vpack.c.b16 %v255, %v254
    %v268 = vpack.c.b16 %v257, %v256
    %v269 = vpack.c.b16 %v259, %v258
    %v270 = vpack.c.b16 %v261, %v260
    %v271 = vpack.c.b16 %v263, %v262
    %280 = vmatpush.bf16.msra.mxu0 %v271
    %281 = vmatpush.bf16.msra.mxu0 %v270
    %282 = vmatpush.bf16.msra.mxu0 %v269
    %283 = vmatpush.bf16.msra.mxu0 %v268
    %284 = vmatpush.bf16.msra.mxu0 %v267
    %285 = vmatpush.bf16.msra.mxu0 %v266
    %286 = vmatpush.bf16.msra.mxu0 %v265
    %287 = vmatpush.bf16.msra.mxu0 %v264
    %288 = vmatmul.bf16.gmra.mxu0 %v230
    %v289 = vpop.f32.mrf.mxu0
    %v290 = vadd.f32 0.0, %v289
    %v291 = vpop.f32.mrf.mxu0
    %v292 = vadd.f32 0.0, %v291
    %293 = vdwg.mxu0
    %v294 = vadd.f32 %v204, %v290
    %v295 = vadd.f32 %v206, %v292
    %v296 = vld [vmem:[%s4] sm:$0x1]
    %vm297 = vcmp.ge.f32.partialorder %v294, 0.0
    %vm298 = vcmp.ge.f32.partialorder %v295, 0.0
    %v300 = vperm.slane %v296, 0
    %v302 = vmul.f32 %v300, %v294
    %v303 = vmul.f32 %v300, %v295
    %v304 = vsel %vm297, %v294, %v302
    %v305 = vsel %vm298, %v295, %v303
    %v306 = vpack.c.bf16 %v304, %v304
    %v307 = vpack.c.bf16 %v305, %v305
    %308 = vst [vmem:[%s5] sm:$0xf] %v306
    %309 = vst [vmem:[%s5 + $0x4] sm:$0xf] %v307
    %s310 = scalar_lea.vmem %s0, 8
    %v311 = vld [vmem:[%s310] sm:$0xf]
    %v312 = vld [vmem:[%s310 + $0x4] sm:$0xf]
    %v313 = vld [vmem:[#allocation2] sm:$0xf]
    %v314 = vld [vmem:[#allocation2 + $0x4] sm:$0xf]
    %v315 = vld [vmem:[#allocation2 + $0x8] sm:$0xf]
    %v316 = vld [vmem:[#allocation2 + $0xc] sm:$0xf]
    %v317 = vld [vmem:[#allocation2 + $0x10] sm:$0xf]
    %v318 = vld [vmem:[#allocation2 + $0x14] sm:$0xf]
    %v319 = vld [vmem:[#allocation2 + $0x18] sm:$0xf]
    %v320 = vld [vmem:[#allocation2 + $0x1c] sm:$0xf]
    %v321 = vld [vmem:[#allocation2 + $0x20] sm:$0xf]
    %v322 = vld [vmem:[#allocation2 + $0x24] sm:$0xf]
    %v323 = vld [vmem:[#allocation2 + $0x28] sm:$0xf]
    %v324 = vld [vmem:[#allocation2 + $0x2c] sm:$0xf]
    %v325 = vld [vmem:[#allocation2 + $0x30] sm:$0xf]
    %v326 = vld [vmem:[#allocation2 + $0x34] sm:$0xf]
    %v327 = vld [vmem:[#allocation2 + $0x38] sm:$0xf]
    %v328 = vld [vmem:[#allocation2 + $0x3c] sm:$0xf]
    %s329 = scalar_lea.vmem %s1, 8
    %v330 = vld [vmem:[%s329] sm:$0xf]
    %v331 = vld [vmem:[%s329 + $0x4] sm:$0xf]
    %v332 = vld [vmem:[#allocation2 + $0x40] sm:$0xf]
    %v333 = vld [vmem:[#allocation2 + $0x44] sm:$0xf]
    %v334 = vld [vmem:[#allocation2 + $0x48] sm:$0xf]
    %v335 = vld [vmem:[#allocation2 + $0x4c] sm:$0xf]
    %v336 = vld [vmem:[#allocation2 + $0x50] sm:$0xf]
    %v337 = vld [vmem:[#allocation2 + $0x54] sm:$0xf]
    %v338 = vld [vmem:[#allocation2 + $0x58] sm:$0xf]
    %v339 = vld [vmem:[#allocation2 + $0x5c] sm:$0xf]
    %v340 = vld [vmem:[#allocation2 + $0x60] sm:$0xf]
    %v341 = vld [vmem:[#allocation2 + $0x64] sm:$0xf]
    %v342 = vld [vmem:[#allocation2 + $0x68] sm:$0xf]
    %v343 = vld [vmem:[#allocation2 + $0x6c] sm:$0xf]
    %v344 = vld [vmem:[#allocation2 + $0x70] sm:$0xf]
    %v345 = vld [vmem:[#allocation2 + $0x74] sm:$0xf]
    %v346 = vld [vmem:[#allocation2 + $0x78] sm:$0xf]
    %v347 = vld [vmem:[#allocation2 + $0x7c] sm:$0xf]
    %v350 = vunpack.c.l.b16 %v330
    %v351 = vunpack.c.l.b16 %v331
    %v352 = vpack.c.b16 %v351, %v350
    %v370 = vunpack.c.l.b16 %v332
    %v371 = vunpack.c.l.b16 %v333
    %v372 = vunpack.c.l.b16 %v334
    %v373 = vunpack.c.l.b16 %v335
    %v374 = vunpack.c.l.b16 %v336
    %v375 = vunpack.c.l.b16 %v337
    %v376 = vunpack.c.l.b16 %v338
    %v377 = vunpack.c.l.b16 %v339
    %v378 = vunpack.c.l.b16 %v340
    %v379 = vunpack.c.l.b16 %v341
    %v380 = vunpack.c.l.b16 %v342
    %v381 = vunpack.c.l.b16 %v343
    %v382 = vunpack.c.l.b16 %v344
    %v383 = vunpack.c.l.b16 %v345
    %v384 = vunpack.c.l.b16 %v346
    %v385 = vunpack.c.l.b16 %v347
    %v386 = vpack.c.b16 %v371, %v370
    %v387 = vpack.c.b16 %v373, %v372
    %v388 = vpack.c.b16 %v375, %v374
    %v389 = vpack.c.b16 %v377, %v376
    %v390 = vpack.c.b16 %v379, %v378
    %v391 = vpack.c.b16 %v381, %v380
    %v392 = vpack.c.b16 %v383, %v382
    %v393 = vpack.c.b16 %v385, %v384
    %402 = vmatpush.bf16.msra.mxu0 %v393
    %403 = vmatpush.bf16.msra.mxu0 %v392
    %404 = vmatpush.bf16.msra.mxu0 %v391
    %405 = vmatpush.bf16.msra.mxu0 %v390
    %406 = vmatpush.bf16.msra.mxu0 %v389
    %407 = vmatpush.bf16.msra.mxu0 %v388
    %408 = vmatpush.bf16.msra.mxu0 %v387
    %409 = vmatpush.bf16.msra.mxu0 %v386
    %410 = vmatmul.bf16.gmra.mxu0 %v352
    %v411 = vpop.f32.mrf.mxu0
    %v412 = vadd.f32 0.0, %v411
    %v413 = vpop.f32.mrf.mxu0
    %v414 = vadd.f32 0.0, %v413
    %415 = vdwg.mxu0
    %v418 = vunpack.c.l.b16 %v311
    %v419 = vunpack.c.l.b16 %v312
    %v420 = vpack.c.b16 %v419, %v418
    %v438 = vunpack.c.l.b16 %v313
    %v439 = vunpack.c.l.b16 %v314
    %v440 = vunpack.c.l.b16 %v315
    %v441 = vunpack.c.l.b16 %v316
    %v442 = vunpack.c.l.b16 %v317
    %v443 = vunpack.c.l.b16 %v318
    %v444 = vunpack.c.l.b16 %v319
    %v445 = vunpack.c.l.b16 %v320
    %v446 = vunpack.c.l.b16 %v321
    %v447 = vunpack.c.l.b16 %v322
    %v448 = vunpack.c.l.b16 %v323
    %v449 = vunpack.c.l.b16 %v324
    %v450 = vunpack.c.l.b16 %v325
    %v451 = vunpack.c.l.b16 %v326
    %v452 = vunpack.c.l.b16 %v327
    %v453 = vunpack.c.l.b16 %v328
    %v454 = vpack.c.b16 %v439, %v438
    %v455 = vpack.c.b16 %v441, %v440
    %v456 = vpack.c.b16 %v443, %v442
    %v457 = vpack.c.b16 %v445, %v444
    %v458 = vpack.c.b16 %v447, %v446
    %v459 = vpack.c.b16 %v449, %v448
    %v460 = vpack.c.b16 %v451, %v450
    %v461 = vpack.c.b16 %v453, %v452
    %470 = vmatpush.bf16.msra.mxu0 %v461
    %471 = vmatpush.bf16.msra.mxu0 %v460
    %472 = vmatpush.bf16.msra.mxu0 %v459
    %473 = vmatpush.bf16.msra.mxu0 %v458
    %474 = vmatpush.bf16.msra.mxu0 %v457
    %475 = vmatpush.bf16.msra.mxu0 %v456
    %476 = vmatpush.bf16.msra.mxu0 %v455
    %477 = vmatpush.bf16.msra.mxu0 %v454
    %478 = vmatmul.bf16.gmra.mxu0 %v420
    %v479 = vpop.f32.mrf.mxu0
    %v480 = vadd.f32 %v412, %v479
    %v481 = vpop.f32.mrf.mxu0
    %v482 = vadd.f32 %v414, %v481
    %483 = vdwg.mxu0
    %s484 = scalar_lea.vmem %s2, 8
    %v485 = vld [vmem:[%s484] sm:$0xf]
    %v486 = vld [vmem:[%s484 + $0x4] sm:$0xf]
    %v487 = vld [vmem:[#allocation2 + $0x80] sm:$0xf]
    %v488 = vld [vmem:[#allocation2 + $0x84] sm:$0xf]
    %v489 = vld [vmem:[#allocation2 + $0x88] sm:$0xf]
    %v490 = vld [vmem:[#allocation2 + $0x8c] sm:$0xf]
    %v491 = vld [vmem:[#allocation2 + $0x90] sm:$0xf]
    %v492 = vld [vmem:[#allocation2 + $0x94] sm:$0xf]
    %v493 = vld [vmem:[#allocation2 + $0x98] sm:$0xf]
    %v494 = vld [vmem:[#allocation2 + $0x9c] sm:$0xf]
    %v495 = vld [vmem:[#allocation2 + $0xa0] sm:$0xf]
    %v496 = vld [vmem:[#allocation2 + $0xa4] sm:$0xf]
    %v497 = vld [vmem:[#allocation2 + $0xa8] sm:$0xf]
    %v498 = vld [vmem:[#allocation2 + $0xac] sm:$0xf]
    %v499 = vld [vmem:[#allocation2 + $0xb0] sm:$0xf]
    %v500 = vld [vmem:[#allocation2 + $0xb4] sm:$0xf]
    %v501 = vld [vmem:[#allocation2 + $0xb8] sm:$0xf]
    %v502 = vld [vmem:[#allocation2 + $0xbc] sm:$0xf]
    %v505 = vunpack.c.l.b16 %v485
    %v506 = vunpack.c.l.b16 %v486
    %v507 = vpack.c.b16 %v506, %v505
    %v525 = vunpack.c.l.b16 %v487
    %v526 = vunpack.c.l.b16 %v488
    %v527 = vunpack.c.l.b16 %v489
    %v528 = vunpack.c.l.b16 %v490
    %v529 = vunpack.c.l.b16 %v491
    %v530 = vunpack.c.l.b16 %v492
    %v531 = vunpack.c.l.b16 %v493
    %v532 = vunpack.c.l.b16 %v494
    %v533 = vunpack.c.l.b16 %v495
    %v534 = vunpack.c.l.b16 %v496
    %v535 = vunpack.c.l.b16 %v497
    %v536 = vunpack.c.l.b16 %v498
    %v537 = vunpack.c.l.b16 %v499
    %v538 = vunpack.c.l.b16 %v500
    %v539 = vunpack.c.l.b16 %v501
    %v540 = vunpack.c.l.b16 %v502
    %v541 = vpack.c.b16 %v526, %v525
    %v542 = vpack.c.b16 %v528, %v527
    %v543 = vpack.c.b16 %v530, %v529
    %v544 = vpack.c.b16 %v532, %v531
    %v545 = vpack.c.b16 %v534, %v533
    %v546 = vpack.c.b16 %v536, %v535
    %v547 = vpack.c.b16 %v538, %v537
    %v548 = vpack.c.b16 %v540, %v539
    %557 = vmatpush.bf16.msra.mxu0 %v548
    %558 = vmatpush.bf16.msra.mxu0 %v547
    %559 = vmatpush.bf16.msra.mxu0 %v546
    %560 = vmatpush.bf16.msra.mxu0 %v545
    %561 = vmatpush.bf16.msra.mxu0 %v544
    %562 = vmatpush.bf16.msra.mxu0 %v543
    %563 = vmatpush.bf16.msra.mxu0 %v542
    %564 = vmatpush.bf16.msra.mxu0 %v541
    %565 = vmatmul.bf16.gmra.mxu0 %v507
    %v566 = vpop.f32.mrf.mxu0
    %v567 = vadd.f32 0.0, %v566
    %v568 = vpop.f32.mrf.mxu0
    %v569 = vadd.f32 0.0, %v568
    %570 = vdwg.mxu0
    %v571 = vadd.f32 %v480, %v567
    %v572 = vadd.f32 %v482, %v569
    %v573 = vld [vmem:[%s4] sm:$0x1]
    %vm574 = vcmp.ge.f32.partialorder %v571, 0.0
    %vm575 = vcmp.ge.f32.partialorder %v572, 0.0
    %v577 = vperm.slane %v573, 0
    %v579 = vmul.f32 %v577, %v571
    %v580 = vmul.f32 %v577, %v572
    %v581 = vsel %vm574, %v571, %v579
    %v582 = vsel %vm575, %v572, %v580
    %v583 = vpack.c.bf16 %v581, %v581
    %v584 = vpack.c.bf16 %v582, %v582
    %s585 = scalar_lea.vmem %s5, 8
    %586 = vst [vmem:[%s585] sm:$0xf] %v583
    %587 = vst [vmem:[%s585 + $0x4] sm:$0xf] %v584
    // Predicated region
    $region26: #{dense_tcn_feature_forward.12} parent=1 // pred_check
      _
    $region27: #{dense_tcn_feature_forward.12} parent=1 // pred_check_branch
      %589 = sbr.rel (0) target = $region29
    $region28: #{dense_tcn_feature_forward.12} parent=1 // pred_region
      _
    $region29: #{dense_tcn_feature_forward.12} parent=1 // pred_fallthru
      _
    // Predicated region
    $region30: #{dense_tcn_feature_forward.12} parent=1 // pred_check
      _
    $region31: #{dense_tcn_feature_forward.12} parent=1 // pred_check_branch
      %591 = sbr.rel (0) target = $region33
    $region32: #{dense_tcn_feature_forward.12} parent=1 // pred_region
      _
    $region33: #{dense_tcn_feature_forward.12} parent=1 // pred_fallthru
      _
    %592 = vsyncpa [#allocation3], 1

// kernel: dense_tcn_feature_forward.10
$region0: #{dense_tcn_feature_forward.10}
  #allocation0 [shape = 'u32[]', space=smem, size = 0x4, offset = 0x4, fixed_abs, tag = 'smem constant byte address 0x4 - core index']
  #allocation1 [shape = 'u32[72,128]{1,0:T(1,128)}', space=vmem, size = 0x9000, scoped, tag = 'internal scratch']
  #allocation2 [shape = 'bf16[64,128]{1,0:T(8,128)(2,1)}', space=vmem, size = 0x4000, scoped, tag = 'scratch operand']
  #allocation3 [shape = 'bf16[64,128]{1,0:T(8,128)(2,1)}', space=vmem, size = 0x4000, scoped, tag = 'scratch operand']
  %s0 = inlined_call_operand.vmem [shape: bf16[2,16,128], index: 0, kind: input, shape index: {}]
  %s1 = inlined_call_operand.hbm [shape: bf16[5,128,128], index: 1, kind: input, shape index: {}]
  %s2 = inlined_call_operand.vmem [shape: f32[1,128], index: 2, kind: input, shape index: {}]
  %s3 = inlined_call_operand.vmem [shape: f32[1,128], index: 3, kind: input, shape index: {}]
  %s4 = inlined_call_operand.vmem [shape: f32[1,128], index: 4, kind: input, shape index: {}]
  %s5 = inlined_call_operand.hbm [shape: bf16[5,128,128], index: 5, kind: input, shape index: {}]
  %s6 = inlined_call_operand.vmem [shape: f32[1,128], index: 6, kind: input, shape index: {}]
  %s7 = inlined_call_operand.vmem [shape: f32[1,128], index: 7, kind: input, shape index: {}]
  %s8 = inlined_call_operand.vmem [shape: f32[1,128], index: 8, kind: input, shape index: {}]
  %s9 = inlined_call_operand.vmem [shape: f32[1,128], index: 9, kind: input, shape index: {}]
  %s10 = inlined_call_operand.vmem [shape: bf16[2,16,128], index: 10, kind: output, shape index: {}]
  %s11 = sld [smem:[#allocation0]]
  $region58: #{dense_tcn_feature_forward.10} parent=0
    _
  %s13 = ssub.s32 1, %s11
  %s14 = scalar_select 0, %s13, %s11
  $region1: #{dense_tcn_feature_forward.10} parent=0
    #allocation4 [shape = 'u8[163840]{0}', space=vmem, size = 0x28000, scoped, tag = 'input window, operand 1, single buffered']
    #allocation5 [shape = 's32[1]{0}', space=sflag, size = 0x4, scoped, tag = 'scoped memory for dense_tcn_feature_forward.10']
    #allocation6 [shape = 'u8[163840]{0}', space=vmem, size = 0x28000, scoped, tag = 'input window, operand 5, single buffered']
    #allocation7 [shape = 's32[1]{0}', space=sflag, size = 0x4, scoped, tag = 'scoped memory for dense_tcn_feature_forward.10']
    %15 = vsyncpa [#allocation5], 0
    %16 = vsyncpa [#allocation7], 0
    // Predicated region
    $region2: #{dense_tcn_feature_forward.10} parent=1 // pred_check
      _
    $region3: #{dense_tcn_feature_forward.10} parent=1 // pred_check_branch
      %18 = sbr.rel (0) target = $region5
    $region4: #{dense_tcn_feature_forward.10} parent=1 // pred_region
      _
    $region5: #{dense_tcn_feature_forward.10} parent=1 // pred_fallthru
      _
    // Predicated region
    $region6: #{dense_tcn_feature_forward.10} parent=1 // pred_check
      _
    $region7: #{dense_tcn_feature_forward.10} parent=1 // pred_check_branch
      %20 = sbr.rel (0) target = $region9
    $region8: #{dense_tcn_feature_forward.10} parent=1 // pred_region
      %22 = vsyncadd [#allocation5], 0
      %s23 = sshll.u32 %s1, 4
      %s24 = int_to_ptr.hbm [resolvable:$true] %s23
      %s25 = sshll.u32 [#allocation4], 4
      %s26 = int_to_ptr.vmem [resolvable:$true] %s25
      %31 = dma.hbm_to_vmem [thread:$0]  %s24, 5120, %s26, [#allocation5], 64, 64, 4
    $region9: #{dense_tcn_feature_forward.10} parent=1 // pred_fallthru
      _
    // Predicated region
    $region10: #{dense_tcn_feature_forward.10} parent=1 // pred_check
      _
    $region11: #{dense_tcn_feature_forward.10} parent=1 // pred_check_branch
      %33 = sbr.rel (0) target = $region13
    $region12: #{dense_tcn_feature_forward.10} parent=1 // pred_region
      _
    $region13: #{dense_tcn_feature_forward.10} parent=1 // pred_fallthru
      _
    // Predicated region
    $region14: #{dense_tcn_feature_forward.10} parent=1 // pred_check
      _
    $region15: #{dense_tcn_feature_forward.10} parent=1 // pred_check_branch
      %35 = sbr.rel (0) target = $region17
    $region16: #{dense_tcn_feature_forward.10} parent=1 // pred_region
      _
    $region17: #{dense_tcn_feature_forward.10} parent=1 // pred_fallthru
      _
    // Predicated region
    $region18: #{dense_tcn_feature_forward.10} parent=1 // pred_check
      _
    $region19: #{dense_tcn_feature_forward.10} parent=1 // pred_check_branch
      %37 = sbr.rel (0) target = $region21
    $region20: #{dense_tcn_feature_forward.10} parent=1 // pred_region
      _
    $region21: #{dense_tcn_feature_forward.10} parent=1 // pred_fallthru
      _
    // Predicated region
    $region22: #{dense_tcn_feature_forward.10} parent=1 // pred_check
      _
    $region23: #{dense_tcn_feature_forward.10} parent=1 // pred_check_branch
      %39 = sbr.rel (0) target = $region25
    $region24: #{dense_tcn_feature_forward.10} parent=1 // pred_region
      %41 = vsyncadd [#allocation7], 0
      %s42 = sshll.u32 %s5, 4
      %s43 = int_to_ptr.hbm [resolvable:$true] %s42
      %s44 = sshll.u32 [#allocation6], 4
      %s45 = int_to_ptr.vmem [resolvable:$true] %s44
      %50 = dma.hbm_to_vmem [thread:$0]  %s43, 5120, %s45, [#allocation7], 64, 64, 4
    $region25: #{dense_tcn_feature_forward.10} parent=1 // pred_fallthru
      _
    // Predicated region
    $region26: #{dense_tcn_feature_forward.10} parent=1 // pred_check
      _
    $region27: #{dense_tcn_feature_forward.10} parent=1 // pred_check_branch
      %52 = sbr.rel (0) target = $region29
    $region28: #{dense_tcn_feature_forward.10} parent=1 // pred_region
      _
    $region29: #{dense_tcn_feature_forward.10} parent=1 // pred_fallthru
      _
    // Predicated region
    $region30: #{dense_tcn_feature_forward.10} parent=1 // pred_check
      _
    $region31: #{dense_tcn_feature_forward.10} parent=1 // pred_check_branch
      %54 = sbr.rel (0) target = $region33
    $region32: #{dense_tcn_feature_forward.10} parent=1 // pred_region
      _
    $region33: #{dense_tcn_feature_forward.10} parent=1 // pred_fallthru
      _
    // Predicated region
    $region34: #{dense_tcn_feature_forward.10} parent=1 // pred_check
      _
    $region35: #{dense_tcn_feature_forward.10} parent=1 // pred_check_branch
      %56 = sbr.rel (0) target = $region37
    $region36: #{dense_tcn_feature_forward.10} parent=1 // pred_region
      _
    $region37: #{dense_tcn_feature_forward.10} parent=1 // pred_fallthru
      _
    // Predicated region
    $region38: #{dense_tcn_feature_forward.10} parent=1 // pred_check
      _
    $region39: #{dense_tcn_feature_forward.10} parent=1 // pred_check_branch
      %58 = sbr.rel (0) target = $region41
    $region40: #{dense_tcn_feature_forward.10} parent=1 // pred_region
      _
    $region41: #{dense_tcn_feature_forward.10} parent=1 // pred_fallthru
      _
    // Predicated region
    $region42: #{dense_tcn_feature_forward.10} parent=1 // pred_check
      _
    $region43: #{dense_tcn_feature_forward.10} parent=1 // pred_check_branch
      %60 = sbr.rel (0) target = $region45
    $region44: #{dense_tcn_feature_forward.10} parent=1 // pred_region
      %62 = dma.done [#allocation5], 5120
    $region45: #{dense_tcn_feature_forward.10} parent=1 // pred_fallthru
      _
    // Predicated region
    $region46: #{dense_tcn_feature_forward.10} parent=1 // pred_check
      _
    $region47: #{dense_tcn_feature_forward.10} parent=1 // pred_check_branch
      %64 = sbr.rel (0) target = $region49
    $region48: #{dense_tcn_feature_forward.10} parent=1 // pred_region
      %66 = dma.done [#allocation7], 5120
    $region49: #{dense_tcn_feature_forward.10} parent=1 // pred_fallthru
      _
    %v68 = vld [vmem:[%s0] sm:$0xf]
    %v69 = vld [vmem:[%s0 + $0x4] sm:$0xf]
    %v72 = vunpack.c.l.b16 %v68
    %v73 = vunpack.c.l.b16 %v69
    %v74 = vpack.c.b16 %v72, %v72
    %v75 = vpack.c.b16 %v73, %v73
    %vm76 = vcmask 1043456
    %v79 = vsel %vm76, 0, %v74
    %v81 = vsel %vm76, %v75, 0
    %v84 = vunpack.c.l.b16 %v79
    %v85 = vunpack.c.h.b16 %v79
    %v86 = vunpack.c.l.b16 %v81
    %v87 = vunpack.c.h.b16 %v81
    %v88 = vpack.c.b16 %v84, %v84
    %v89 = vpack.c.b16 %v85, %v85
    %v90 = vpack.c.b16 %v86, %v86
    %v91 = vpack.c.b16 %v87, %v87
    %96 = vst [vmem:[#allocation2] sm:$0xf] %v88
    %97 = vst [vmem:[#allocation2 + $0x4] sm:$0xf] %v89
    %98 = vst [vmem:[#allocation2 + $0x8] sm:$0xf] %v90
    %99 = vst [vmem:[#allocation2 + $0xc] sm:$0xf] %v91
    %s100 = scalar_lea.vmem %s0, 8
    %v101 = vld [vmem:[%s100] sm:$0xf]
    %v102 = vld [vmem:[%s100 + $0x4] sm:$0xf]
    %v105 = vunpack.c.l.b16 %v101
    %v106 = vunpack.c.l.b16 %v102
    %v107 = vpack.c.b16 %v105, %v105
    %v108 = vpack.c.b16 %v106, %v106
    %v110 = vsel %vm76, 0, %v107
    %v112 = vsel %vm76, %v108, 0
    %v115 = vunpack.c.l.b16 %v110
    %v116 = vunpack.c.h.b16 %v110
    %v117 = vunpack.c.l.b16 %v112
    %v118 = vunpack.c.h.b16 %v112
    %v119 = vpack.c.b16 %v115, %v115
    %v120 = vpack.c.b16 %v116, %v116
    %v121 = vpack.c.b16 %v117, %v117
    %v122 = vpack.c.b16 %v118, %v118
    %127 = vst [vmem:[#allocation2 + $0x10] sm:$0xf] %v119
    %128 = vst [vmem:[#allocation2 + $0x14] sm:$0xf] %v120
    %129 = vst [vmem:[#allocation2 + $0x18] sm:$0xf] %v121
    %130 = vst [vmem:[#allocation2 + $0x1c] sm:$0xf] %v122
    %v131 = vld [vmem:[#allocation2] sm:$0x8]
    %v132 = vld [vmem:[#allocation2 + $0x4] sm:$0xf]
    %v133 = vld [vmem:[#allocation2 + $0x8] sm:$0xf]
    %v134 = vld [vmem:[#allocation2 + $0xc] sm:$0xf]
    %v135 = vld [vmem:[#allocation2 + $0x10] sm:$0xf]
    %v136 = vld [vmem:[#allocation2 + $0x14] sm:$0xf]
    %v137 = vld [vmem:[#allocation2 + $0x18] sm:$0x7]
    %v138 = vld [vmem:[#allocation4] sm:$0xf]
    %v139 = vld [vmem:[#allocation4 + $0x4] sm:$0xf]
    %v140 = vld [vmem:[#allocation4 + $0x8] sm:$0xf]
    %v141 = vld [vmem:[#allocation4 + $0xc] sm:$0xf]
    %v142 = vld [vmem:[#allocation4 + $0x10] sm:$0xf]
    %v143 = vld [vmem:[#allocation4 + $0x14] sm:$0xf]
    %v144 = vld [vmem:[#allocation4 + $0x18] sm:$0xf]
    %v145 = vld [vmem:[#allocation4 + $0x1c] sm:$0xf]
    %v146 = vld [vmem:[#allocation4 + $0x20] sm:$0xf]
    %v147 = vld [vmem:[#allocation4 + $0x24] sm:$0xf]
    %v148 = vld [vmem:[#allocation4 + $0x28] sm:$0xf]
    %v149 = vld [vmem:[#allocation4 + $0x2c] sm:$0xf]
    %v150 = vld [vmem:[#allocation4 + $0x30] sm:$0xf]
    %v151 = vld [vmem:[#allocation4 + $0x34] sm:$0xf]
    %v152 = vld [vmem:[#allocation4 + $0x38] sm:$0xf]
    %v153 = vld [vmem:[#allocation4 + $0x3c] sm:$0xf]
    %v154 = vld [vmem:[#allocation2 + $0x18] sm:$0xf]
    %s155 = scalar_lea.vmem [#allocation4], 64
    %v156 = vld [vmem:[%s155] sm:$0xf]
    %v157 = vld [vmem:[%s155 + $0x4] sm:$0xf]
    %v158 = vld [vmem:[%s155 + $0x8] sm:$0xf]
    %v159 = vld [vmem:[%s155 + $0xc] sm:$0xf]
    %v160 = vld [vmem:[%s155 + $0x10] sm:$0xf]
    %v161 = vld [vmem:[%s155 + $0x14] sm:$0xf]
    %v162 = vld [vmem:[%s155 + $0x18] sm:$0xf]
    %v163 = vld [vmem:[%s155 + $0x1c] sm:$0xf]
    %v164 = vld [vmem:[%s155 + $0x20] sm:$0xf]
    %v165 = vld [vmem:[%s155 + $0x24] sm:$0xf]
    %v166 = vld [vmem:[%s155 + $0x28] sm:$0xf]
    %v167 = vld [vmem:[%s155 + $0x2c] sm:$0xf]
    %v168 = vld [vmem:[%s155 + $0x30] sm:$0xf]
    %v169 = vld [vmem:[%s155 + $0x34] sm:$0xf]
    %v170 = vld [vmem:[%s155 + $0x38] sm:$0xf]
    %v171 = vld [vmem:[%s155 + $0x3c] sm:$0xf]
    %v179 = vunpack.c.l.b16 %v131
    %v180 = vunpack.c.l.b16 %v132
    %v181 = vunpack.c.l.b16 %v133
    %v182 = vunpack.c.l.b16 %v134
    %v183 = vunpack.c.l.b16 %v135
    %v184 = vunpack.c.l.b16 %v136
    %v185 = vunpack.c.l.b16 %v154
    %v186 = vpack.c.b16 %v180, %v179
    %v187 = vpack.c.b16 %v182, %v181
    %v188 = vpack.c.b16 %v184, %v183
    %v189 = vpack.c.b16 %v185, %v185
    %vm190 = vsmask.f32 4352
    %v192 = vshrl.u32 %v186, 16
    %v194 = vrot.slane %v192, 3
    %v195 = vshll.u32 %v186, 16
    %v197 = vrot.slane %v195, 4
    %v198 = vor.u32 %v194, %v197
    %v200 = vshrl.u32 %v187, 16
    %v202 = vrot.slane %v200, 3
    %v203 = vshll.u32 %v187, 16
    %v205 = vrot.slane %v203, 4
    %v206 = vor.u32 %v202, %v205
    %v207 = vsel %vm190, %v198, %v206
    %v209 = vshrl.u32 %v188, 16
    %v211 = vrot.slane %v209, 3
    %v212 = vshll.u32 %v188, 16
    %v214 = vrot.slane %v212, 4
    %v215 = vor.u32 %v211, %v214
    %v216 = vsel %vm190, %v206, %v215
    %v218 = vshrl.u32 %v189, 16
    %v220 = vrot.slane %v218, 3
    %v221 = vshll.u32 %v189, 16
    %v223 = vrot.slane %v221, 4
    %v224 = vor.u32 %v220, %v223
    %v225 = vsel %vm190, %v215, %v224
    %v245 = vunpack.c.l.b16 %v156
    %v246 = vunpack.c.l.b16 %v157
    %v247 = vunpack.c.l.b16 %v158
    %v248 = vunpack.c.l.b16 %v159
    %v249 = vunpack.c.l.b16 %v160
    %v250 = vunpack.c.l.b16 %v161
    %v251 = vunpack.c.l.b16 %v162
    %v252 = vunpack.c.l.b16 %v163
    %v253 = vunpack.c.l.b16 %v164
    %v254 = vunpack.c.l.b16 %v165
    %v255 = vunpack.c.l.b16 %v166
    %v256 = vunpack.c.l.b16 %v167
    %v257 = vunpack.c.l.b16 %v168
    %v258 = vunpack.c.l.b16 %v169
    %v259 = vunpack.c.l.b16 %v170
    %v260 = vunpack.c.l.b16 %v171
    %v261 = vpack.c.b16 %v246, %v245
    %v262 = vpack.c.b16 %v248, %v247
    %v263 = vpack.c.b16 %v250, %v249
    %v264 = vpack.c.b16 %v252, %v251
    %v265 = vpack.c.b16 %v254, %v253
    %v266 = vpack.c.b16 %v256, %v255
    %v267 = vpack.c.b16 %v258, %v257
    %v268 = vpack.c.b16 %v260, %v259
    %277 = vmatpush.bf16.msra.mxu0 %v268
    %278 = vmatpush.bf16.msra.mxu0 %v267
    %279 = vmatpush.bf16.msra.mxu0 %v266
    %280 = vmatpush.bf16.msra.mxu0 %v265
    %281 = vmatpush.bf16.msra.mxu0 %v264
    %282 = vmatpush.bf16.msra.mxu0 %v263
    %283 = vmatpush.bf16.msra.mxu0 %v262
    %284 = vmatpush.bf16.msra.mxu0 %v261
    %285 = vmatmul.bf16.gmra.mxu0 %v207
    %v286 = vpop.f32.mrf.mxu0
    %v287 = vadd.f32 0.0, %v286
    %v288 = vpop.f32.mrf.mxu0
    %289 = vmatmul.bf16.gmra.mxu0 %v216
    %v290 = vpop.f32.mrf.mxu0
    %v291 = vpop.f32.mrf.mxu0
    %292 = vmatmul.bf16.gmra.mxu0 %v225
    %v293 = vpop.f32.mrf.mxu0
    %v294 = vadd.f32 0.0, %v293
    %v295 = vpop.f32.mrf.mxu0
    %296 = vdwg.mxu0
    %v298 = vunpack.c.l.b16 %v137
    %v299 = vpack.c.b16 %v298, %v298
    %vm300 = vcmask 1044480
    %v301 = vrot.slane %v186, 3
    %v302 = vrot.slane %v187, 3
    %v303 = vsel %vm300, %v301, %v302
    %v304 = vrot.slane %v188, 3
    %v305 = vsel %vm300, %v302, %v304
    %v306 = vrot.slane %v299, 3
    %v307 = vsel %vm300, %v304, %v306
    %v327 = vunpack.c.l.b16 %v138
    %v328 = vunpack.c.l.b16 %v139
    %v329 = vunpack.c.l.b16 %v140
    %v330 = vunpack.c.l.b16 %v141
    %v331 = vunpack.c.l.b16 %v142
    %v332 = vunpack.c.l.b16 %v143
    %v333 = vunpack.c.l.b16 %v144
    %v334 = vunpack.c.l.b16 %v145
    %v335 = vunpack.c.l.b16 %v146
    %v336 = vunpack.c.l.b16 %v147
    %v337 = vunpack.c.l.b16 %v148
    %v338 = vunpack.c.l.b16 %v149
    %v339 = vunpack.c.l.b16 %v150
    %v340 = vunpack.c.l.b16 %v151
    %v341 = vunpack.c.l.b16 %v152
    %v342 = vunpack.c.l.b16 %v153
    %v343 = vpack.c.b16 %v328, %v327
    %v344 = vpack.c.b16 %v330, %v329
    %v345 = vpack.c.b16 %v332, %v331
    %v346 = vpack.c.b16 %v334, %v333
    %v347 = vpack.c.b16 %v336, %v335
    %v348 = vpack.c.b16 %v338, %v337
    %v349 = vpack.c.b16 %v340, %v339
    %v350 = vpack.c.b16 %v342, %v341
    %359 = vmatpush.bf16.msra.mxu0 %v350
    %360 = vmatpush.bf16.msra.mxu0 %v349
    %361 = vmatpush.bf16.msra.mxu0 %v348
    %362 = vmatpush.bf16.msra.mxu0 %v347
    %363 = vmatpush.bf16.msra.mxu0 %v346
    %364 = vmatpush.bf16.msra.mxu0 %v345
    %365 = vmatpush.bf16.msra.mxu0 %v344
    %366 = vmatpush.bf16.msra.mxu0 %v343
    %367 = vmatmul.bf16.gmra.mxu0 %v303
    %v368 = vpop.f32.mrf.mxu0
    %v369 = vadd.f32 %v287, %v368
    %v370 = vpop.f32.mrf.mxu0
    %371 = vmatmul.bf16.gmra.mxu0 %v305
    %v372 = vpop.f32.mrf.mxu0
    %v373 = vpop.f32.mrf.mxu0
    %374 = vmatmul.bf16.gmra.mxu0 %v307
    %v375 = vpop.f32.mrf.mxu0
    %v376 = vadd.f32 %v294, %v375
    %v377 = vpop.f32.mrf.mxu0
    %378 = vdwg.mxu0
    %s379 = scalar_lea.vmem [#allocation4], 128
    %v380 = vld [vmem:[%s379] sm:$0xf]
    %v381 = vld [vmem:[%s379 + $0x4] sm:$0xf]
    %v382 = vld [vmem:[%s379 + $0x8] sm:$0xf]
    %v383 = vld [vmem:[%s379 + $0xc] sm:$0xf]
    %v384 = vld [vmem:[%s379 + $0x10] sm:$0xf]
    %v385 = vld [vmem:[%s379 + $0x14] sm:$0xf]
    %v386 = vld [vmem:[%s379 + $0x18] sm:$0xf]
    %v387 = vld [vmem:[%s379 + $0x1c] sm:$0xf]
    %v388 = vld [vmem:[%s379 + $0x20] sm:$0xf]
    %v389 = vld [vmem:[%s379 + $0x24] sm:$0xf]
    %v390 = vld [vmem:[%s379 + $0x28] sm:$0xf]
    %v391 = vld [vmem:[%s379 + $0x2c] sm:$0xf]
    %v392 = vld [vmem:[%s379 + $0x30] sm:$0xf]
    %v393 = vld [vmem:[%s379 + $0x34] sm:$0xf]
    %v394 = vld [vmem:[%s379 + $0x38] sm:$0xf]
    %v395 = vld [vmem:[%s379 + $0x3c] sm:$0xf]
    %v396 = vpack.c.b16 %v181, %v180
    %v397 = vpack.c.b16 %v183, %v182
    %v398 = vpack.c.b16 %v185, %v184
    %v418 = vunpack.c.l.b16 %v380
    %v419 = vunpack.c.l.b16 %v381
    %v420 = vunpack.c.l.b16 %v382
    %v421 = vunpack.c.l.b16 %v383
    %v422 = vunpack.c.l.b16 %v384
    %v423 = vunpack.c.l.b16 %v385
    %v424 = vunpack.c.l.b16 %v386
    %v425 = vunpack.c.l.b16 %v387
    %v426 = vunpack.c.l.b16 %v388
    %v427 = vunpack.c.l.b16 %v389
    %v428 = vunpack.c.l.b16 %v390
    %v429 = vunpack.c.l.b16 %v391
    %v430 = vunpack.c.l.b16 %v392
    %v431 = vunpack.c.l.b16 %v393
    %v432 = vunpack.c.l.b16 %v394
    %v433 = vunpack.c.l.b16 %v395
    %v434 = vpack.c.b16 %v419, %v418
    %v435 = vpack.c.b16 %v421, %v420
    %v436 = vpack.c.b16 %v423, %v422
    %v437 = vpack.c.b16 %v425, %v424
    %v438 = vpack.c.b16 %v427, %v426
    %v439 = vpack.c.b16 %v429, %v428
    %v440 = vpack.c.b16 %v431, %v430
    %v441 = vpack.c.b16 %v433, %v432
    %450 = vmatpush.bf16.msra.mxu0 %v441
    %451 = vmatpush.bf16.msra.mxu0 %v440
    %452 = vmatpush.bf16.msra.mxu0 %v439
    %453 = vmatpush.bf16.msra.mxu0 %v438
    %454 = vmatpush.bf16.msra.mxu0 %v437
    %455 = vmatpush.bf16.msra.mxu0 %v436
    %456 = vmatpush.bf16.msra.mxu0 %v435
    %457 = vmatpush.bf16.msra.mxu0 %v434
    %458 = vmatmul.bf16.gmra.mxu0 %v396
    %v459 = vpop.f32.mrf.mxu0
    %v460 = vadd.f32 0.0, %v459
    %v461 = vpop.f32.mrf.mxu0
    %462 = vmatmul.bf16.gmra.mxu0 %v397
    %v463 = vpop.f32.mrf.mxu0
    %v464 = vpop.f32.mrf.mxu0
    %465 = vmatmul.bf16.gmra.mxu0 %v398
    %v466 = vpop.f32.mrf.mxu0
    %v467 = vadd.f32 0.0, %v466
    %v468 = vpop.f32.mrf.mxu0
    %469 = vdwg.mxu0
    %v470 = vadd.f32 %v369, %v460
    %v471 = vadd.f32 %v376, %v467
    %v472 = vld [vmem:[#allocation2 + $0x4] sm:$0xf]
    %v473 = vld [vmem:[#allocation2 + $0x8] sm:$0xf]
    %v474 = vld [vmem:[#allocation2 + $0xc] sm:$0xf]
    %v475 = vld [vmem:[#allocation2 + $0x10] sm:$0xf]
    %v476 = vld [vmem:[#allocation2 + $0x14] sm:$0xf]
    %v477 = vld [vmem:[#allocation2 + $0x18] sm:$0xf]
    %v478 = vld [vmem:[#allocation2 + $0x1c] sm:$0x1]
    %s479 = scalar_lea.vmem [#allocation4], 192
    %v480 = vld [vmem:[%s479] sm:$0xf]
    %v481 = vld [vmem:[%s479 + $0x4] sm:$0xf]
    %v482 = vld [vmem:[%s479 + $0x8] sm:$0xf]
    %v483 = vld [vmem:[%s479 + $0xc] sm:$0xf]
    %v484 = vld [vmem:[%s479 + $0x10] sm:$0xf]
    %v485 = vld [vmem:[%s479 + $0x14] sm:$0xf]
    %v486 = vld [vmem:[%s479 + $0x18] sm:$0xf]
    %v487 = vld [vmem:[%s479 + $0x1c] sm:$0xf]
    %v488 = vld [vmem:[%s479 + $0x20] sm:$0xf]
    %v489 = vld [vmem:[%s479 + $0x24] sm:$0xf]
    %v490 = vld [vmem:[%s479 + $0x28] sm:$0xf]
    %v491 = vld [vmem:[%s479 + $0x2c] sm:$0xf]
    %v492 = vld [vmem:[%s479 + $0x30] sm:$0xf]
    %v493 = vld [vmem:[%s479 + $0x34] sm:$0xf]
    %v494 = vld [vmem:[%s479 + $0x38] sm:$0xf]
    %v495 = vld [vmem:[%s479 + $0x3c] sm:$0xf]
    %v503 = vunpack.c.l.b16 %v472
    %v504 = vunpack.c.l.b16 %v473
    %v505 = vunpack.c.l.b16 %v474
    %v506 = vunpack.c.l.b16 %v475
    %v507 = vunpack.c.l.b16 %v476
    %v508 = vunpack.c.l.b16 %v477
    %v509 = vunpack.c.l.b16 %v478
    %v510 = vpack.c.b16 %v504, %v503
    %v511 = vpack.c.b16 %v506, %v505
    %v512 = vpack.c.b16 %v508, %v507
    %v513 = vpack.c.b16 %v509, %v509
    %vm514 = vsmask.f32 7424
    %v516 = vshrl.u32 %v510, 16
    %v518 = vshll.u32 %v510, 16
    %v520 = vrot.slane %v518, 1
    %v521 = vor.u32 %v516, %v520
    %v523 = vshll.u32 %v511, 16
    %v525 = vrot.slane %v523, 1
    %v526 = vsel %vm514, %v521, %v525
    %v527 = vshrl.u32 %v511, 16
    %v529 = vor.u32 %v527, %v525
    %v531 = vshll.u32 %v512, 16
    %v533 = vrot.slane %v531, 1
    %v534 = vsel %vm514, %v529, %v533
    %v535 = vshrl.u32 %v512, 16
    %v537 = vor.u32 %v535, %v533
    %v539 = vshll.u32 %v513, 16
    %v541 = vrot.slane %v539, 1
    %v542 = vsel %vm514, %v537, %v541
    %v562 = vunpack.c.l.b16 %v480
    %v563 = vunpack.c.l.b16 %v481
    %v564 = vunpack.c.l.b16 %v482
    %v565 = vunpack.c.l.b16 %v483
    %v566 = vunpack.c.l.b16 %v484
    %v567 = vunpack.c.l.b16 %v485
    %v568 = vunpack.c.l.b16 %v486
    %v569 = vunpack.c.l.b16 %v487
    %v570 = vunpack.c.l.b16 %v488
    %v571 = vunpack.c.l.b16 %v489
    %v572 = vunpack.c.l.b16 %v490
    %v573 = vunpack.c.l.b16 %v491
    %v574 = vunpack.c.l.b16 %v492
    %v575 = vunpack.c.l.b16 %v493
    %v576 = vunpack.c.l.b16 %v494
    %v577 = vunpack.c.l.b16 %v495
    %v578 = vpack.c.b16 %v563, %v562
    %v579 = vpack.c.b16 %v565, %v564
    %v580 = vpack.c.b16 %v567, %v566
    %v581 = vpack.c.b16 %v569, %v568
    %v582 = vpack.c.b16 %v571, %v570
    %v583 = vpack.c.b16 %v573, %v572
    %v584 = vpack.c.b16 %v575, %v574
    %v585 = vpack.c.b16 %v577, %v576
    %594 = vmatpush.bf16.msra.mxu0 %v585
    %595 = vmatpush.bf16.msra.mxu0 %v584
    %596 = vmatpush.bf16.msra.mxu0 %v583
    %597 = vmatpush.bf16.msra.mxu0 %v582
    %598 = vmatpush.bf16.msra.mxu0 %v581
    %599 = vmatpush.bf16.msra.mxu0 %v580
    %600 = vmatpush.bf16.msra.mxu0 %v579
    %601 = vmatpush.bf16.msra.mxu0 %v578
    %602 = vmatmul.bf16.gmra.mxu0 %v526
    %v603 = vpop.f32.mrf.mxu0
    %v604 = vadd.f32 0.0, %v603
    %v605 = vpop.f32.mrf.mxu0
    %606 = vmatmul.bf16.gmra.mxu0 %v534
    %v607 = vpop.f32.mrf.mxu0
    %v608 = vpop.f32.mrf.mxu0
    %609 = vmatmul.bf16.gmra.mxu0 %v542
    %v610 = vpop.f32.mrf.mxu0
    %v611 = vadd.f32 0.0, %v610
    %v612 = vpop.f32.mrf.mxu0
    %613 = vdwg.mxu0
    %v614 = vadd.f32 %v470, %v604
    %v615 = vadd.f32 %v471, %v611
    %v616 = vld [vmem:[#allocation2 + $0x4] sm:$0xe]
    %s617 = scalar_lea.vmem [#allocation4], 256
    %v618 = vld [vmem:[%s617] sm:$0xf]
    %v619 = vld [vmem:[%s617 + $0x4] sm:$0xf]
    %v620 = vld [vmem:[%s617 + $0x8] sm:$0xf]
    %v621 = vld [vmem:[%s617 + $0xc] sm:$0xf]
    %v622 = vld [vmem:[%s617 + $0x10] sm:$0xf]
    %v623 = vld [vmem:[%s617 + $0x14] sm:$0xf]
    %v624 = vld [vmem:[%s617 + $0x18] sm:$0xf]
    %v625 = vld [vmem:[%s617 + $0x1c] sm:$0xf]
    %v626 = vld [vmem:[%s617 + $0x20] sm:$0xf]
    %v627 = vld [vmem:[%s617 + $0x24] sm:$0xf]
    %v628 = vld [vmem:[%s617 + $0x28] sm:$0xf]
    %v629 = vld [vmem:[%s617 + $0x2c] sm:$0xf]
    %v630 = vld [vmem:[%s617 + $0x30] sm:$0xf]
    %v631 = vld [vmem:[%s617 + $0x34] sm:$0xf]
    %v632 = vld [vmem:[%s617 + $0x38] sm:$0xf]
    %v633 = vld [vmem:[%s617 + $0x3c] sm:$0xf]
    %v635 = vunpack.c.l.b16 %v616
    %v636 = vpack.c.b16 %v504, %v635
    %vm637 = vcmask 1046528
    %v638 = vrot.slane %v636, 1
    %v639 = vrot.slane %v511, 1
    %v640 = vsel %vm637, %v638, %v639
    %v641 = vrot.slane %v512, 1
    %v642 = vsel %vm637, %v639, %v641
    %v643 = vrot.slane %v513, 1
    %v644 = vsel %vm637, %v641, %v643
    %v664 = vunpack.c.l.b16 %v618
    %v665 = vunpack.c.l.b16 %v619
    %v666 = vunpack.c.l.b16 %v620
    %v667 = vunpack.c.l.b16 %v621
    %v668 = vunpack.c.l.b16 %v622
    %v669 = vunpack.c.l.b16 %v623
    %v670 = vunpack.c.l.b16 %v624
    %v671 = vunpack.c.l.b16 %v625
    %v672 = vunpack.c.l.b16 %v626
    %v673 = vunpack.c.l.b16 %v627
    %v674 = vunpack.c.l.b16 %v628
    %v675 = vunpack.c.l.b16 %v629
    %v676 = vunpack.c.l.b16 %v630
    %v677 = vunpack.c.l.b16 %v631
    %v678 = vunpack.c.l.b16 %v632
    %v679 = vunpack.c.l.b16 %v633
    %v680 = vpack.c.b16 %v665, %v664
    %v681 = vpack.c.b16 %v667, %v666
    %v682 = vpack.c.b16 %v669, %v668
    %v683 = vpack.c.b16 %v671, %v670
    %v684 = vpack.c.b16 %v673, %v672
    %v685 = vpack.c.b16 %v675, %v674
    %v686 = vpack.c.b16 %v677, %v676
    %v687 = vpack.c.b16 %v679, %v678
    %696 = vmatpush.bf16.msra.mxu0 %v687
    %697 = vmatpush.bf16.msra.mxu0 %v686
    %698 = vmatpush.bf16.msra.mxu0 %v685
    %699 = vmatpush.bf16.msra.mxu0 %v684
    %700 = vmatpush.bf16.msra.mxu0 %v683
    %701 = vmatpush.bf16.msra.mxu0 %v682
    %702 = vmatpush.bf16.msra.mxu0 %v681
    %703 = vmatpush.bf16.msra.mxu0 %v680
    %704 = vmatmul.bf16.gmra.mxu0 %v640
    %v705 = vpop.f32.mrf.mxu0
    %v706 = vadd.f32 0.0, %v705
    %v707 = vpop.f32.mrf.mxu0
    %708 = vmatmul.bf16.gmra.mxu0 %v642
    %v709 = vpop.f32.mrf.mxu0
    %v710 = vpop.f32.mrf.mxu0
    %711 = vmatmul.bf16.gmra.mxu0 %v644
    %v712 = vpop.f32.mrf.mxu0
    %v713 = vadd.f32 0.0, %v712
    %v714 = vpop.f32.mrf.mxu0
    %715 = vdwg.mxu0
    %v716 = vadd.f32 %v614, %v706
    %v717 = vadd.f32 %v615, %v713
    %v718 = vld [vmem:[%s2] sm:$0x1]
    %v720 = vperm.slane %v718, 0
    %v722 = vmul.f32 %v716, %v720
    %v723 = vmul.f32 %v717, %v720
    %v724 = vld [vmem:[%s3] sm:$0x1]
    %v726 = vperm.slane %v724, 0
    %v728 = vadd.f32 %v722, %v726
    %v729 = vadd.f32 %v723, %v726
    %v730 = vld [vmem:[%s4] sm:$0x1]
    %vm731 = vcmp.ge.f32.partialorder %v728, 0.0
    %vm732 = vcmp.ge.f32.partialorder %v729, 0.0
    %v734 = vperm.slane %v730, 0
    %v736 = vmul.f32 %v734, %v728
    %v737 = vmul.f32 %v734, %v729
    %v738 = vsel %vm731, %v728, %v736
    %v739 = vsel %vm732, %v729, %v737
    %v740 = vpack.c.bf16 0.0, 0.0
    %v741 = vpack.c.bf16 %v738, %v738
    %742 = vst [vmem:[#allocation3] sm:$0xf] %v740
    %743 = vst [vmem:[#allocation3 + $0x4] sm:$0xf] %v741
    %744 = vst [vmem:[#allocation3 + $0x8] sm:$0xf] %v740
    %745 = vst [vmem:[#allocation3 + $0xc] sm:$0xf] %v740
    %v746 = vpack.c.bf16 %v739, %v739
    %747 = vst [vmem:[#allocation3 + $0x10] sm:$0xf] %v740
    %748 = vst [vmem:[#allocation3 + $0x14] sm:$0xf] %v746
    %749 = vst [vmem:[#allocation3 + $0x18] sm:$0xf] %v740
    %750 = vst [vmem:[#allocation3 + $0x1c] sm:$0xf] %v740
    %v751 = vld [vmem:[#allocation3] sm:$0x8]
    %v752 = vld [vmem:[#allocation3 + $0x4] sm:$0xf]
    %v753 = vld [vmem:[#allocation3 + $0x8] sm:$0xf]
    %v754 = vld [vmem:[#allocation3 + $0xc] sm:$0xf]
    %v755 = vld [vmem:[#allocation3 + $0x10] sm:$0xf]
    %v756 = vld [vmem:[#allocation3 + $0x14] sm:$0xf]
    %v757 = vld [vmem:[#allocation3 + $0x18] sm:$0x7]
    %v758 = vld [vmem:[#allocation6] sm:$0xf]
    %v759 = vld [vmem:[#allocation6 + $0x4] sm:$0xf]
    %v760 = vld [vmem:[#allocation6 + $0x8] sm:$0xf]
    %v761 = vld [vmem:[#allocation6 + $0xc] sm:$0xf]
    %v762 = vld [vmem:[#allocation6 + $0x10] sm:$0xf]
    %v763 = vld [vmem:[#allocation6 + $0x14] sm:$0xf]
    %v764 = vld [vmem:[#allocation6 + $0x18] sm:$0xf]
    %v765 = vld [vmem:[#allocation6 + $0x1c] sm:$0xf]
    %v766 = vld [vmem:[#allocation6 + $0x20] sm:$0xf]
    %v767 = vld [vmem:[#allocation6 + $0x24] sm:$0xf]
    %v768 = vld [vmem:[#allocation6 + $0x28] sm:$0xf]
    %v769 = vld [vmem:[#allocation6 + $0x2c] sm:$0xf]
    %v770 = vld [vmem:[#allocation6 + $0x30] sm:$0xf]
    %v771 = vld [vmem:[#allocation6 + $0x34] sm:$0xf]
    %v772 = vld [vmem:[#allocation6 + $0x38] sm:$0xf]
    %v773 = vld [vmem:[#allocation6 + $0x3c] sm:$0xf]
    %v774 = vld [vmem:[#allocation3 + $0x18] sm:$0xf]
    %s775 = scalar_lea.vmem [#allocation6], 64
    %v776 = vld [vmem:[%s775] sm:$0xf]
    %v777 = vld [vmem:[%s775 + $0x4] sm:$0xf]
    %v778 = vld [vmem:[%s775 + $0x8] sm:$0xf]
    %v779 = vld [vmem:[%s775 + $0xc] sm:$0xf]
    %v780 = vld [vmem:[%s775 + $0x10] sm:$0xf]
    %v781 = vld [vmem:[%s775 + $0x14] sm:$0xf]
    %v782 = vld [vmem:[%s775 + $0x18] sm:$0xf]
    %v783 = vld [vmem:[%s775 + $0x1c] sm:$0xf]
    %v784 = vld [vmem:[%s775 + $0x20] sm:$0xf]
    %v785 = vld [vmem:[%s775 + $0x24] sm:$0xf]
    %v786 = vld [vmem:[%s775 + $0x28] sm:$0xf]
    %v787 = vld [vmem:[%s775 + $0x2c] sm:$0xf]
    %v788 = vld [vmem:[%s775 + $0x30] sm:$0xf]
    %v789 = vld [vmem:[%s775 + $0x34] sm:$0xf]
    %v790 = vld [vmem:[%s775 + $0x38] sm:$0xf]
    %v791 = vld [vmem:[%s775 + $0x3c] sm:$0xf]
    %v799 = vunpack.c.l.b16 %v751
    %v800 = vunpack.c.l.b16 %v752
    %v801 = vunpack.c.l.b16 %v753
    %v802 = vunpack.c.l.b16 %v754
    %v803 = vunpack.c.l.b16 %v755
    %v804 = vunpack.c.l.b16 %v756
    %v805 = vunpack.c.l.b16 %v774
    %v806 = vpack.c.b16 %v800, %v799
    %v807 = vpack.c.b16 %v802, %v801
    %v808 = vpack.c.b16 %v804, %v803
    %v809 = vpack.c.b16 %v805, %v805
    %v811 = vshrl.u32 %v806, 16
    %v813 = vrot.slane %v811, 3
    %v814 = vshll.u32 %v806, 16
    %v816 = vrot.slane %v814, 4
    %v817 = vor.u32 %v813, %v816
    %v819 = vshrl.u32 %v807, 16
    %v821 = vrot.slane %v819, 3
    %v822 = vshll.u32 %v807, 16
    %v824 = vrot.slane %v822, 4
    %v825 = vor.u32 %v821, %v824
    %v826 = vsel %vm190, %v817, %v825
    %v828 = vshrl.u32 %v808, 16
    %v830 = vrot.slane %v828, 3
    %v831 = vshll.u32 %v808, 16
    %v833 = vrot.slane %v831, 4
    %v834 = vor.u32 %v830, %v833
    %v835 = vsel %vm190, %v825, %v834
    %v837 = vshrl.u32 %v809, 16
    %v839 = vrot.slane %v837, 3
    %v840 = vshll.u32 %v809, 16
    %v842 = vrot.slane %v840, 4
    %v843 = vor.u32 %v839, %v842
    %v844 = vsel %vm190, %v834, %v843
    %v864 = vunpack.c.l.b16 %v776
    %v865 = vunpack.c.l.b16 %v777
    %v866 = vunpack.c.l.b16 %v778
    %v867 = vunpack.c.l.b16 %v779
    %v868 = vunpack.c.l.b16 %v780
    %v869 = vunpack.c.l.b16 %v781
    %v870 = vunpack.c.l.b16 %v782
    %v871 = vunpack.c.l.b16 %v783
    %v872 = vunpack.c.l.b16 %v784
    %v873 = vunpack.c.l.b16 %v785
    %v874 = vunpack.c.l.b16 %v786
    %v875 = vunpack.c.l.b16 %v787
    %v876 = vunpack.c.l.b16 %v788
    %v877 = vunpack.c.l.b16 %v789
    %v878 = vunpack.c.l.b16 %v790
    %v879 = vunpack.c.l.b16 %v791
    %v880 = vpack.c.b16 %v865, %v864
    %v881 = vpack.c.b16 %v867, %v866
    %v882 = vpack.c.b16 %v869, %v868
    %v883 = vpack.c.b16 %v871, %v870
    %v884 = vpack.c.b16 %v873, %v872
    %v885 = vpack.c.b16 %v875, %v874
    %v886 = vpack.c.b16 %v877, %v876
    %v887 = vpack.c.b16 %v879, %v878
    %896 = vmatpush.bf16.msra.mxu0 %v887
    %897 = vmatpush.bf16.msra.mxu0 %v886
    %898 = vmatpush.bf16.msra.mxu0 %v885
    %899 = vmatpush.bf16.msra.mxu0 %v884
    %900 = vmatpush.bf16.msra.mxu0 %v883
    %901 = vmatpush.bf16.msra.mxu0 %v882
    %902 = vmatpush.bf16.msra.mxu0 %v881
    %903 = vmatpush.bf16.msra.mxu0 %v880
    %904 = vmatmul.bf16.gmra.mxu0 %v826
    %v905 = vpop.f32.mrf.mxu0
    %v906 = vadd.f32 0.0, %v905
    %v907 = vpop.f32.mrf.mxu0
    %908 = vmatmul.bf16.gmra.mxu0 %v835
    %v909 = vpop.f32.mrf.mxu0
    %v910 = vpop.f32.mrf.mxu0
    %911 = vmatmul.bf16.gmra.mxu0 %v844
    %v912 = vpop.f32.mrf.mxu0
    %v913 = vadd.f32 0.0, %v912
    %v914 = vpop.f32.mrf.mxu0
    %915 = vdwg.mxu0
    %v917 = vunpack.c.l.b16 %v757
    %v918 = vpack.c.b16 %v917, %v917
    %v919 = vrot.slane %v806, 3
    %v920 = vrot.slane %v807, 3
    %v921 = vsel %vm300, %v919, %v920
    %v922 = vrot.slane %v808, 3
    %v923 = vsel %vm300, %v920, %v922
    %v924 = vrot.slane %v918, 3
    %v925 = vsel %vm300, %v922, %v924
    %v945 = vunpack.c.l.b16 %v758
    %v946 = vunpack.c.l.b16 %v759
    %v947 = vunpack.c.l.b16 %v760
    %v948 = vunpack.c.l.b16 %v761
    %v949 = vunpack.c.l.b16 %v762
    %v950 = vunpack.c.l.b16 %v763
    %v951 = vunpack.c.l.b16 %v764
    %v952 = vunpack.c.l.b16 %v765
    %v953 = vunpack.c.l.b16 %v766
    %v954 = vunpack.c.l.b16 %v767
    %v955 = vunpack.c.l.b16 %v768
    %v956 = vunpack.c.l.b16 %v769
    %v957 = vunpack.c.l.b16 %v770
    %v958 = vunpack.c.l.b16 %v771
    %v959 = vunpack.c.l.b16 %v772
    %v960 = vunpack.c.l.b16 %v773
    %v961 = vpack.c.b16 %v946, %v945
    %v962 = vpack.c.b16 %v948, %v947
    %v963 = vpack.c.b16 %v950, %v949
    %v964 = vpack.c.b16 %v952, %v951
    %v965 = vpack.c.b16 %v954, %v953
    %v966 = vpack.c.b16 %v956, %v955
    %v967 = vpack.c.b16 %v958, %v957
    %v968 = vpack.c.b16 %v960, %v959
    %977 = vmatpush.bf16.msra.mxu0 %v968
    %978 = vmatpush.bf16.msra.mxu0 %v967
    %979 = vmatpush.bf16.msra.mxu0 %v966
    %980 = vmatpush.bf16.msra.mxu0 %v965
    %981 = vmatpush.bf16.msra.mxu0 %v964
    %982 = vmatpush.bf16.msra.mxu0 %v963
    %983 = vmatpush.bf16.msra.mxu0 %v962
    %984 = vmatpush.bf16.msra.mxu0 %v961
    %985 = vmatmul.bf16.gmra.mxu0 %v921
    %v986 = vpop.f32.mrf.mxu0
    %v987 = vadd.f32 %v906, %v986
    %v988 = vpop.f32.mrf.mxu0
    %989 = vmatmul.bf16.gmra.mxu0 %v923
    %v990 = vpop.f32.mrf.mxu0
    %v991 = vpop.f32.mrf.mxu0
    %992 = vmatmul.bf16.gmra.mxu0 %v925
    %v993 = vpop.f32.mrf.mxu0
    %v994 = vadd.f32 %v913, %v993
    %v995 = vpop.f32.mrf.mxu0
    %996 = vdwg.mxu0
    %s997 = scalar_lea.vmem [#allocation6], 128
    %v998 = vld [vmem:[%s997] sm:$0xf]
    %v999 = vld [vmem:[%s997 + $0x4] sm:$0xf]
    %v1000 = vld [vmem:[%s997 + $0x8] sm:$0xf]
    %v1001 = vld [vmem:[%s997 + $0xc] sm:$0xf]
    %v1002 = vld [vmem:[%s997 + $0x10] sm:$0xf]
    %v1003 = vld [vmem:[%s997 + $0x14] sm:$0xf]
    %v1004 = vld [vmem:[%s997 + $0x18] sm:$0xf]
    %v1005 = vld [vmem:[%s997 + $0x1c] sm:$0xf]
    %v1006 = vld [vmem:[%s997 + $0x20] sm:$0xf]
    %v1007 = vld [vmem:[%s997 + $0x24] sm:$0xf]
    %v1008 = vld [vmem:[%s997 + $0x28] sm:$0xf]
    %v1009 = vld [vmem:[%s997 + $0x2c] sm:$0xf]
    %v1010 = vld [vmem:[%s997 + $0x30] sm:$0xf]
    %v1011 = vld [vmem:[%s997 + $0x34] sm:$0xf]
    %v1012 = vld [vmem:[%s997 + $0x38] sm:$0xf]
    %v1013 = vld [vmem:[%s997 + $0x3c] sm:$0xf]
    %v1014 = vpack.c.b16 %v801, %v800
    %v1015 = vpack.c.b16 %v803, %v802
    %v1016 = vpack.c.b16 %v805, %v804
    %v1036 = vunpack.c.l.b16 %v998
    %v1037 = vunpack.c.l.b16 %v999
    %v1038 = vunpack.c.l.b16 %v1000
    %v1039 = vunpack.c.l.b16 %v1001
    %v1040 = vunpack.c.l.b16 %v1002
    %v1041 = vunpack.c.l.b16 %v1003
    %v1042 = vunpack.c.l.b16 %v1004
    %v1043 = vunpack.c.l.b16 %v1005
    %v1044 = vunpack.c.l.b16 %v1006
    %v1045 = vunpack.c.l.b16 %v1007
    %v1046 = vunpack.c.l.b16 %v1008
    %v1047 = vunpack.c.l.b16 %v1009
    %v1048 = vunpack.c.l.b16 %v1010
    %v1049 = vunpack.c.l.b16 %v1011
    %v1050 = vunpack.c.l.b16 %v1012
    %v1051 = vunpack.c.l.b16 %v1013
    %v1052 = vpack.c.b16 %v1037, %v1036
    %v1053 = vpack.c.b16 %v1039, %v1038
    %v1054 = vpack.c.b16 %v1041, %v1040
    %v1055 = vpack.c.b16 %v1043, %v1042
    %v1056 = vpack.c.b16 %v1045, %v1044
    %v1057 = vpack.c.b16 %v1047, %v1046
    %v1058 = vpack.c.b16 %v1049, %v1048
    %v1059 = vpack.c.b16 %v1051, %v1050
    %1068 = vmatpush.bf16.msra.mxu0 %v1059
    %1069 = vmatpush.bf16.msra.mxu0 %v1058
    %1070 = vmatpush.bf16.msra.mxu0 %v1057
    %1071 = vmatpush.bf16.msra.mxu0 %v1056
    %1072 = vmatpush.bf16.msra.mxu0 %v1055
    %1073 = vmatpush.bf16.msra.mxu0 %v1054
    %1074 = vmatpush.bf16.msra.mxu0 %v1053
    %1075 = vmatpush.bf16.msra.mxu0 %v1052
    %1076 = vmatmul.bf16.gmra.mxu0 %v1014
    %v1077 = vpop.f32.mrf.mxu0
    %v1078 = vadd.f32 0.0, %v1077
    %v1079 = vpop.f32.mrf.mxu0
    %1080 = vmatmul.bf16.gmra.mxu0 %v1015
    %v1081 = vpop.f32.mrf.mxu0
    %v1082 = vpop.f32.mrf.mxu0
    %1083 = vmatmul.bf16.gmra.mxu0 %v1016
    %v1084 = vpop.f32.mrf.mxu0
    %v1085 = vadd.f32 0.0, %v1084
    %v1086 = vpop.f32.mrf.mxu0
    %1087 = vdwg.mxu0
    %v1088 = vadd.f32 %v987, %v1078
    %v1089 = vadd.f32 %v994, %v1085
    %v1090 = vld [vmem:[#allocation3 + $0x4] sm:$0xf]
    %v1091 = vld [vmem:[#allocation3 + $0x8] sm:$0xf]
    %v1092 = vld [vmem:[#allocation3 + $0xc] sm:$0xf]
    %v1093 = vld [vmem:[#allocation3 + $0x10] sm:$0xf]
    %v1094 = vld [vmem:[#allocation3 + $0x14] sm:$0xf]
    %v1095 = vld [vmem:[#allocation3 + $0x18] sm:$0xf]
    %v1096 = vld [vmem:[#allocation3 + $0x1c] sm:$0x1]
    %s1097 = scalar_lea.vmem [#allocation6], 192
    %v1098 = vld [vmem:[%s1097] sm:$0xf]
    %v1099 = vld [vmem:[%s1097 + $0x4] sm:$0xf]
    %v1100 = vld [vmem:[%s1097 + $0x8] sm:$0xf]
    %v1101 = vld [vmem:[%s1097 + $0xc] sm:$0xf]
    %v1102 = vld [vmem:[%s1097 + $0x10] sm:$0xf]
    %v1103 = vld [vmem:[%s1097 + $0x14] sm:$0xf]
    %v1104 = vld [vmem:[%s1097 + $0x18] sm:$0xf]
    %v1105 = vld [vmem:[%s1097 + $0x1c] sm:$0xf]
    %v1106 = vld [vmem:[%s1097 + $0x20] sm:$0xf]
    %v1107 = vld [vmem:[%s1097 + $0x24] sm:$0xf]
    %v1108 = vld [vmem:[%s1097 + $0x28] sm:$0xf]
    %v1109 = vld [vmem:[%s1097 + $0x2c] sm:$0xf]
    %v1110 = vld [vmem:[%s1097 + $0x30] sm:$0xf]
    %v1111 = vld [vmem:[%s1097 + $0x34] sm:$0xf]
    %v1112 = vld [vmem:[%s1097 + $0x38] sm:$0xf]
    %v1113 = vld [vmem:[%s1097 + $0x3c] sm:$0xf]
    %v1121 = vunpack.c.l.b16 %v1090
    %v1122 = vunpack.c.l.b16 %v1091
    %v1123 = vunpack.c.l.b16 %v1092
    %v1124 = vunpack.c.l.b16 %v1093
    %v1125 = vunpack.c.l.b16 %v1094
    %v1126 = vunpack.c.l.b16 %v1095
    %v1127 = vunpack.c.l.b16 %v1096
    %v1128 = vpack.c.b16 %v1122, %v1121
    %v1129 = vpack.c.b16 %v1124, %v1123
    %v1130 = vpack.c.b16 %v1126, %v1125
    %v1131 = vpack.c.b16 %v1127, %v1127
    %v1133 = vshrl.u32 %v1128, 16
    %v1135 = vshll.u32 %v1128, 16
    %v1137 = vrot.slane %v1135, 1
    %v1138 = vor.u32 %v1133, %v1137
    %v1140 = vshll.u32 %v1129, 16
    %v1142 = vrot.slane %v1140, 1
    %v1143 = vsel %vm514, %v1138, %v1142
    %v1144 = vshrl.u32 %v1129, 16
    %v1146 = vor.u32 %v1144, %v1142
    %v1148 = vshll.u32 %v1130, 16
    %v1150 = vrot.slane %v1148, 1
    %v1151 = vsel %vm514, %v1146, %v1150
    %v1152 = vshrl.u32 %v1130, 16
    %v1154 = vor.u32 %v1152, %v1150
    %v1156 = vshll.u32 %v1131, 16
    %v1158 = vrot.slane %v1156, 1
    %v1159 = vsel %vm514, %v1154, %v1158
    %v1179 = vunpack.c.l.b16 %v1098
    %v1180 = vunpack.c.l.b16 %v1099
    %v1181 = vunpack.c.l.b16 %v1100
    %v1182 = vunpack.c.l.b16 %v1101
    %v1183 = vunpack.c.l.b16 %v1102
    %v1184 = vunpack.c.l.b16 %v1103
    %v1185 = vunpack.c.l.b16 %v1104
    %v1186 = vunpack.c.l.b16 %v1105
    %v1187 = vunpack.c.l.b16 %v1106
    %v1188 = vunpack.c.l.b16 %v1107
    %v1189 = vunpack.c.l.b16 %v1108
    %v1190 = vunpack.c.l.b16 %v1109
    %v1191 = vunpack.c.l.b16 %v1110
    %v1192 = vunpack.c.l.b16 %v1111
    %v1193 = vunpack.c.l.b16 %v1112
    %v1194 = vunpack.c.l.b16 %v1113
    %v1195 = vpack.c.b16 %v1180, %v1179
    %v1196 = vpack.c.b16 %v1182, %v1181
    %v1197 = vpack.c.b16 %v1184, %v1183
    %v1198 = vpack.c.b16 %v1186, %v1185
    %v1199 = vpack.c.b16 %v1188, %v1187
    %v1200 = vpack.c.b16 %v1190, %v1189
    %v1201 = vpack.c.b16 %v1192, %v1191
    %v1202 = vpack.c.b16 %v1194, %v1193
    %1211 = vmatpush.bf16.msra.mxu0 %v1202
    %1212 = vmatpush.bf16.msra.mxu0 %v1201
    %1213 = vmatpush.bf16.msra.mxu0 %v1200
    %1214 = vmatpush.bf16.msra.mxu0 %v1199
    %1215 = vmatpush.bf16.msra.mxu0 %v1198
    %1216 = vmatpush.bf16.msra.mxu0 %v1197
    %1217 = vmatpush.bf16.msra.mxu0 %v1196
    %1218 = vmatpush.bf16.msra.mxu0 %v1195
    %1219 = vmatmul.bf16.gmra.mxu0 %v1143
    %v1220 = vpop.f32.mrf.mxu0
    %v1221 = vadd.f32 0.0, %v1220
    %v1222 = vpop.f32.mrf.mxu0
    %1223 = vmatmul.bf16.gmra.mxu0 %v1151
    %v1224 = vpop.f32.mrf.mxu0
    %v1225 = vpop.f32.mrf.mxu0
    %1226 = vmatmul.bf16.gmra.mxu0 %v1159
    %v1227 = vpop.f32.mrf.mxu0
    %v1228 = vadd.f32 0.0, %v1227
    %v1229 = vpop.f32.mrf.mxu0
    %1230 = vdwg.mxu0
    %v1231 = vadd.f32 %v1088, %v1221
    %v1232 = vadd.f32 %v1089, %v1228
    %v1233 = vld [vmem:[#allocation3 + $0x4] sm:$0xe]
    %s1234 = scalar_lea.vmem [#allocation6], 256
    %v1235 = vld [vmem:[%s1234] sm:$0xf]
    %v1236 = vld [vmem:[%s1234 + $0x4] sm:$0xf]
    %v1237 = vld [vmem:[%s1234 + $0x8] sm:$0xf]
    %v1238 = vld [vmem:[%s1234 + $0xc] sm:$0xf]
    %v1239 = vld [vmem:[%s1234 + $0x10] sm:$0xf]
    %v1240 = vld [vmem:[%s1234 + $0x14] sm:$0xf]
    %v1241 = vld [vmem:[%s1234 + $0x18] sm:$0xf]
    %v1242 = vld [vmem:[%s1234 + $0x1c] sm:$0xf]
    %v1243 = vld [vmem:[%s1234 + $0x20] sm:$0xf]
    %v1244 = vld [vmem:[%s1234 + $0x24] sm:$0xf]
    %v1245 = vld [vmem:[%s1234 + $0x28] sm:$0xf]
    %v1246 = vld [vmem:[%s1234 + $0x2c] sm:$0xf]
    %v1247 = vld [vmem:[%s1234 + $0x30] sm:$0xf]
    %v1248 = vld [vmem:[%s1234 + $0x34] sm:$0xf]
    %v1249 = vld [vmem:[%s1234 + $0x38] sm:$0xf]
    %v1250 = vld [vmem:[%s1234 + $0x3c] sm:$0xf]
    %v1252 = vunpack.c.l.b16 %v1233
    %v1253 = vpack.c.b16 %v1122, %v1252
    %v1254 = vrot.slane %v1253, 1
    %v1255 = vrot.slane %v1129, 1
    %v1256 = vsel %vm637, %v1254, %v1255
    %v1257 = vrot.slane %v1130, 1
    %v1258 = vsel %vm637, %v1255, %v1257
    %v1259 = vrot.slane %v1131, 1
    %v1260 = vsel %vm637, %v1257, %v1259
    %v1280 = vunpack.c.l.b16 %v1235
    %v1281 = vunpack.c.l.b16 %v1236
    %v1282 = vunpack.c.l.b16 %v1237
    %v1283 = vunpack.c.l.b16 %v1238
    %v1284 = vunpack.c.l.b16 %v1239
    %v1285 = vunpack.c.l.b16 %v1240
    %v1286 = vunpack.c.l.b16 %v1241
    %v1287 = vunpack.c.l.b16 %v1242
    %v1288 = vunpack.c.l.b16 %v1243
    %v1289 = vunpack.c.l.b16 %v1244
    %v1290 = vunpack.c.l.b16 %v1245
    %v1291 = vunpack.c.l.b16 %v1246
    %v1292 = vunpack.c.l.b16 %v1247
    %v1293 = vunpack.c.l.b16 %v1248
    %v1294 = vunpack.c.l.b16 %v1249
    %v1295 = vunpack.c.l.b16 %v1250
    %v1296 = vpack.c.b16 %v1281, %v1280
    %v1297 = vpack.c.b16 %v1283, %v1282
    %v1298 = vpack.c.b16 %v1285, %v1284
    %v1299 = vpack.c.b16 %v1287, %v1286
    %v1300 = vpack.c.b16 %v1289, %v1288
    %v1301 = vpack.c.b16 %v1291, %v1290
    %v1302 = vpack.c.b16 %v1293, %v1292
    %v1303 = vpack.c.b16 %v1295, %v1294
    %1312 = vmatpush.bf16.msra.mxu0 %v1303
    %1313 = vmatpush.bf16.msra.mxu0 %v1302
    %1314 = vmatpush.bf16.msra.mxu0 %v1301
    %1315 = vmatpush.bf16.msra.mxu0 %v1300
    %1316 = vmatpush.bf16.msra.mxu0 %v1299
    %1317 = vmatpush.bf16.msra.mxu0 %v1298
    %1318 = vmatpush.bf16.msra.mxu0 %v1297
    %1319 = vmatpush.bf16.msra.mxu0 %v1296
    %1320 = vmatmul.bf16.gmra.mxu0 %v1256
    %v1321 = vpop.f32.mrf.mxu0
    %v1322 = vadd.f32 0.0, %v1321
    %v1323 = vpop.f32.mrf.mxu0
    %1324 = vmatmul.bf16.gmra.mxu0 %v1258
    %v1325 = vpop.f32.mrf.mxu0
    %v1326 = vpop.f32.mrf.mxu0
    %1327 = vmatmul.bf16.gmra.mxu0 %v1260
    %v1328 = vpop.f32.mrf.mxu0
    %v1329 = vadd.f32 0.0, %v1328
    %v1330 = vpop.f32.mrf.mxu0
    %1331 = vdwg.mxu0
    %v1332 = vadd.f32 %v1231, %v1322
    %v1333 = vadd.f32 %v1232, %v1329
    %v1334 = vld [vmem:[%s6] sm:$0x1]
    %v1336 = vperm.slane %v1334, 0
    %v1338 = vmul.f32 %v1332, %v1336
    %v1339 = vmul.f32 %v1333, %v1336
    %v1340 = vld [vmem:[%s7] sm:$0x1]
    %v1342 = vperm.slane %v1340, 0
    %v1344 = vadd.f32 %v1338, %v1342
    %v1345 = vadd.f32 %v1339, %v1342
    %v1346 = vld [vmem:[%s8] sm:$0x1]
    %vm1347 = vcmp.ge.f32.partialorder %v1344, 0.0
    %vm1348 = vcmp.ge.f32.partialorder %v1345, 0.0
    %v1350 = vperm.slane %v1346, 0
    %v1352 = vmul.f32 %v1350, %v1344
    %v1353 = vmul.f32 %v1350, %v1345
    %v1354 = vsel %vm1347, %v1344, %v1352
    %v1355 = vsel %vm1348, %v1345, %v1353
    %v1356 = vld [vmem:[%s0] sm:$0xf]
    %v1357 = vunpack.c.l.bf16 %v1356
    %v1358 = vadd.f32 %v1354, %v1357
    %v1359 = vld [vmem:[%s9] sm:$0x1]
    %vm1360 = vcmp.ge.f32.partialorder %v1358, 0.0
    %v1362 = vperm.slane %v1359, 0
    %v1364 = vmul.f32 %v1362, %v1358
    %v1365 = vsel %vm1360, %v1358, %v1364
    %v1366 = vpack.c.bf16 %v1365, %v1365
    %1367 = vst [vmem:[%s10] sm:$0xf] %v1366
    %1368 = vst [vmem:[%s10 + $0x4] sm:$0xf] %v740
    %v1369 = vld [vmem:[%s100] sm:$0xf]
    %v1370 = vunpack.c.l.bf16 %v1369
    %v1371 = vadd.f32 %v1355, %v1370
    %v1372 = vld [vmem:[%s9] sm:$0x1]
    %vm1373 = vcmp.ge.f32.partialorder %v1371, 0.0
    %v1375 = vperm.slane %v1372, 0
    %v1377 = vmul.f32 %v1375, %v1371
    %v1378 = vsel %vm1373, %v1371, %v1377
    %v1379 = vpack.c.bf16 %v1378, %v1378
    %s1380 = scalar_lea.vmem %s10, 8
    %1381 = vst [vmem:[%s1380] sm:$0xf] %v1379
    %1382 = vst [vmem:[%s1380 + $0x4] sm:$0xf] %v740
    // Predicated region
    $region50: #{dense_tcn_feature_forward.10} parent=1 // pred_check
      _
    $region51: #{dense_tcn_feature_forward.10} parent=1 // pred_check_branch
      %1384 = sbr.rel (0) target = $region53
    $region52: #{dense_tcn_feature_forward.10} parent=1 // pred_region
      _
    $region53: #{dense_tcn_feature_forward.10} parent=1 // pred_fallthru
      _
    // Predicated region
    $region54: #{dense_tcn_feature_forward.10} parent=1 // pred_check
      _
    $region55: #{dense_tcn_feature_forward.10} parent=1 // pred_check_branch
      %1386 = sbr.rel (0) target = $region57
    $region56: #{dense_tcn_feature_forward.10} parent=1 // pred_region
      _
    $region57: #{dense_tcn_feature_forward.10} parent=1 // pred_fallthru
      _
    %1387 = vsyncpa [#allocation5], 1
    %1388 = vsyncpa [#allocation7], 1

// kernel: dense_tcn_feature_forward.16
$region0: #{dense_tcn_feature_forward.16}
  #allocation0 [shape = 'u32[]', space=smem, size = 0x4, offset = 0x4, fixed_abs, tag = 'smem constant byte address 0x4 - core index']
  #allocation1 [shape = 'u32[72,128]{1,0:T(1,128)}', space=vmem, size = 0x9000, scoped, tag = 'internal scratch']
  %s0 = inlined_call_operand.vmem [shape: bf16[2,16,128], index: 0, kind: input, shape index: {}]
  %s1 = inlined_call_operand.vmem [shape: f32[1,128], index: 1, kind: input, shape index: {}]
  %s2 = inlined_call_operand.vmem [shape: f32[1,128], index: 2, kind: input, shape index: {}]
  %s3 = inlined_call_operand.vmem [shape: f32[2,16,128], index: 3, kind: output, shape index: {}]
  %s4 = sld [smem:[#allocation0]]
  $region22: #{dense_tcn_feature_forward.16} parent=0
    _
  %s6 = ssub.s32 1, %s4
  %s7 = scalar_select 0, %s6, %s4
  // Predicated region
  $region2: #{dense_tcn_feature_forward.16} parent=0 // pred_check
    _
  $region3: #{dense_tcn_feature_forward.16} parent=0 // pred_check_branch
    %9 = sbr.rel (0) target = $region5
  $region4: #{dense_tcn_feature_forward.16} parent=0 // pred_region
    _
  $region5: #{dense_tcn_feature_forward.16} parent=0 // pred_fallthru
    _
  // Predicated region
  $region6: #{dense_tcn_feature_forward.16} parent=0 // pred_check
    _
  $region7: #{dense_tcn_feature_forward.16} parent=0 // pred_check_branch
    %11 = sbr.rel (0) target = $region9
  $region8: #{dense_tcn_feature_forward.16} parent=0 // pred_region
    _
  $region9: #{dense_tcn_feature_forward.16} parent=0 // pred_fallthru
    _
  // Predicated region
  $region10: #{dense_tcn_feature_forward.16} parent=0 // pred_check
    _
  $region11: #{dense_tcn_feature_forward.16} parent=0 // pred_check_branch
    %13 = sbr.rel (0) target = $region13
  $region12: #{dense_tcn_feature_forward.16} parent=0 // pred_region
    _
  $region13: #{dense_tcn_feature_forward.16} parent=0 // pred_fallthru
    _
  %v14 = vld [vmem:[%s0] sm:$0xf]
  %v15 = vld [vmem:[%s0 + $0x4] sm:$0xf]
  %v16 = vld [vmem:[%s0 + $0x8] sm:$0xf]
  %v17 = vld [vmem:[%s0 + $0xc] sm:$0xf]
  %v18 = vunpack.c.l.bf16 %v14
  %v19 = vunpack.c.l.bf16 %v15
  %v20 = vunpack.c.l.bf16 %v16
  %v21 = vunpack.c.l.bf16 %v17
  %v22 = vld [vmem:[%s1] sm:$0x1]
  %v24 = vperm.slane %v22, 0
  %v26 = vmul.f32 %v18, %v24
  %v27 = vmul.f32 %v19, %v24
  %v28 = vmul.f32 %v20, %v24
  %v29 = vmul.f32 %v21, %v24
  %v30 = vld [vmem:[%s2] sm:$0x1]
  %v32 = vperm.slane %v30, 0
  %v34 = vadd.f32 %v26, %v32
  %v35 = vadd.f32 %v27, %v32
  %v36 = vadd.f32 %v28, %v32
  %v37 = vadd.f32 %v29, %v32
  %38 = vst [vmem:[%s3] sm:$0xff] %v34
  %39 = vst [vmem:[%s3 + $0x8] sm:$0xff] %v35
  %40 = vst [vmem:[%s3 + $0x10] sm:$0xff] %v36
  %41 = vst [vmem:[%s3 + $0x18] sm:$0xff] %v37
  // Predicated region
  $region14: #{dense_tcn_feature_forward.16} parent=0 // pred_check
    _
  $region15: #{dense_tcn_feature_forward.16} parent=0 // pred_check_branch
    %43 = sbr.rel (0) target = $region17
  $region16: #{dense_tcn_feature_forward.16} parent=0 // pred_region
    _
  $region17: #{dense_tcn_feature_forward.16} parent=0 // pred_fallthru
    _
  // Predicated region
  $region18: #{dense_tcn_feature_forward.16} parent=0 // pred_check
    _
  $region19: #{dense_tcn_feature_forward.16} parent=0 // pred_check_branch
    %45 = sbr.rel (0) target = $region21
  $region20: #{dense_tcn_feature_forward.16} parent=0 // pred_region
    _
  $region21: #{dense_tcn_feature_forward.16} parent=0 // pred_fallthru
    _

// kernel: dense_tcn_feature_forward.11
$region0: #{dense_tcn_feature_forward.11}
  #allocation0 [shape = 'u32[]', space=smem, size = 0x4, offset = 0x4, fixed_abs, tag = 'smem constant byte address 0x4 - core index']
  #allocation1 [shape = 'u32[72,128]{1,0:T(1,128)}', space=vmem, size = 0x9000, scoped, tag = 'internal scratch']
  #allocation2 [shape = 'bf16[64,256]{1,0:T(8,128)(2,1)}', space=vmem, size = 0x8000, scoped, tag = 'scratch operand']
  #allocation3 [shape = 'bf16[64,128]{1,0:T(8,128)(2,1)}', space=vmem, size = 0x4000, scoped, tag = 'scratch operand']
  %s0 = inlined_call_operand.vmem [shape: bf16[2,16,128], index: 0, kind: input, shape index: {}]
  %s1 = inlined_call_operand.vmem [shape: bf16[2,16,128], index: 1, kind: input, shape index: {}]
  %s2 = inlined_call_operand.hbm [shape: bf16[5,256,128], index: 2, kind: input, shape index: {}]
  %s3 = inlined_call_operand.vmem [shape: f32[1,128], index: 3, kind: input, shape index: {}]
  %s4 = inlined_call_operand.vmem [shape: f32[1,128], index: 4, kind: input, shape index: {}]
  %s5 = inlined_call_operand.vmem [shape: f32[1,128], index: 5, kind: input, shape index: {}]
  %s6 = inlined_call_operand.hbm [shape: bf16[5,128,128], index: 6, kind: input, shape index: {}]
  %s7 = inlined_call_operand.vmem [shape: f32[1,128], index: 7, kind: input, shape index: {}]
  %s8 = inlined_call_operand.vmem [shape: f32[1,128], index: 8, kind: input, shape index: {}]
  %s9 = inlined_call_operand.vmem [shape: f32[1,128], index: 9, kind: input, shape index: {}]
  %s10 = inlined_call_operand.hbm [shape: bf16[256,128], index: 10, kind: input, shape index: {}]
  %s11 = inlined_call_operand.vmem [shape: f32[1,128], index: 11, kind: input, shape index: {}]
  %s12 = inlined_call_operand.vmem [shape: f32[1,128], index: 12, kind: input, shape index: {}]
  %s13 = inlined_call_operand.vmem [shape: bf16[2,16,128], index: 13, kind: output, shape index: {}]
  %s14 = sld [smem:[#allocation0]]
  $region74: #{dense_tcn_feature_forward.11} parent=0
    _
  %s16 = ssub.s32 1, %s14
  %s17 = scalar_select 0, %s16, %s14
  $region1: #{dense_tcn_feature_forward.11} parent=0
    #allocation4 [shape = 'u8[327680]{0}', space=vmem, size = 0x50000, scoped, tag = 'input window, operand 2, single buffered']
    #allocation5 [shape = 's32[1]{0}', space=sflag, size = 0x4, scoped, tag = 'scoped memory for dense_tcn_feature_forward.11']
    #allocation6 [shape = 'u8[163840]{0}', space=vmem, size = 0x28000, scoped, tag = 'input window, operand 6, single buffered']
    #allocation7 [shape = 's32[1]{0}', space=sflag, size = 0x4, scoped, tag = 'scoped memory for dense_tcn_feature_forward.11']
    #allocation8 [shape = 'u8[65536]{0}', space=vmem, size = 0x10000, scoped, tag = 'input window, operand 10, single buffered']
    %18 = vsyncpa [#allocation5], 0
    %19 = vsyncpa [#allocation7], 0
    // Predicated region
    $region2: #{dense_tcn_feature_forward.11} parent=1 // pred_check
      _
    $region3: #{dense_tcn_feature_forward.11} parent=1 // pred_check_branch
      %21 = sbr.rel (0) target = $region5
    $region4: #{dense_tcn_feature_forward.11} parent=1 // pred_region
      _
    $region5: #{dense_tcn_feature_forward.11} parent=1 // pred_fallthru
      _
    // Predicated region
    $region6: #{dense_tcn_feature_forward.11} parent=1 // pred_check
      _
    $region7: #{dense_tcn_feature_forward.11} parent=1 // pred_check_branch
      %23 = sbr.rel (0) target = $region9
    $region8: #{dense_tcn_feature_forward.11} parent=1 // pred_region
      _
    $region9: #{dense_tcn_feature_forward.11} parent=1 // pred_fallthru
      _
    // Predicated region
    $region10: #{dense_tcn_feature_forward.11} parent=1 // pred_check
      _
    $region11: #{dense_tcn_feature_forward.11} parent=1 // pred_check_branch
      %25 = sbr.rel (0) target = $region13
    $region12: #{dense_tcn_feature_forward.11} parent=1 // pred_region
      %27 = vsyncadd [#allocation5], 0
      %s28 = sshll.u32 %s2, 4
      %s29 = int_to_ptr.hbm [resolvable:$true] %s28
      %s30 = sshll.u32 [#allocation4], 4
      %s31 = int_to_ptr.vmem [resolvable:$true] %s30
      %36 = dma.hbm_to_vmem [thread:$0]  %s29, 10240, %s31, [#allocation5], 64, 64, 4
    $region13: #{dense_tcn_feature_forward.11} parent=1 // pred_fallthru
      _
    // Predicated region
    $region14: #{dense_tcn_feature_forward.11} parent=1 // pred_check
      _
    $region15: #{dense_tcn_feature_forward.11} parent=1 // pred_check_branch
      %38 = sbr.rel (0) target = $region17
    $region16: #{dense_tcn_feature_forward.11} parent=1 // pred_region
      _
    $region17: #{dense_tcn_feature_forward.11} parent=1 // pred_fallthru
      _
    // Predicated region
    $region18: #{dense_tcn_feature_forward.11} parent=1 // pred_check
      _
    $region19: #{dense_tcn_feature_forward.11} parent=1 // pred_check_branch
      %40 = sbr.rel (0) target = $region21
    $region20: #{dense_tcn_feature_forward.11} parent=1 // pred_region
      _
    $region21: #{dense_tcn_feature_forward.11} parent=1 // pred_fallthru
      _
    // Predicated region
    $region22: #{dense_tcn_feature_forward.11} parent=1 // pred_check
      _
    $region23: #{dense_tcn_feature_forward.11} parent=1 // pred_check_branch
      %42 = sbr.rel (0) target = $region25
    $region24: #{dense_tcn_feature_forward.11} parent=1 // pred_region
      _
    $region25: #{dense_tcn_feature_forward.11} parent=1 // pred_fallthru
      _
    // Predicated region
    $region26: #{dense_tcn_feature_forward.11} parent=1 // pred_check
      _
    $region27: #{dense_tcn_feature_forward.11} parent=1 // pred_check_branch
      %44 = sbr.rel (0) target = $region29
    $region28: #{dense_tcn_feature_forward.11} parent=1 // pred_region
      %46 = vsyncadd [#allocation7], 0
      %s47 = sshll.u32 %s6, 4
      %s48 = int_to_ptr.hbm [resolvable:$true] %s47
      %s49 = sshll.u32 [#allocation6], 4
      %s50 = int_to_ptr.vmem [resolvable:$true] %s49
      %55 = dma.hbm_to_vmem [thread:$0]  %s48, 5120, %s50, [#allocation7], 64, 64, 4
    $region29: #{dense_tcn_feature_forward.11} parent=1 // pred_fallthru
      _
    // Predicated region
    $region30: #{dense_tcn_feature_forward.11} parent=1 // pred_check
      _
    $region31: #{dense_tcn_feature_forward.11} parent=1 // pred_check_branch
      %57 = sbr.rel (0) target = $region33
    $region32: #{dense_tcn_feature_forward.11} parent=1 // pred_region
      _
    $region33: #{dense_tcn_feature_forward.11} parent=1 // pred_fallthru
      _
    // Predicated region
    $region34: #{dense_tcn_feature_forward.11} parent=1 // pred_check
      _
    $region35: #{dense_tcn_feature_forward.11} parent=1 // pred_check_branch
      %59 = sbr.rel (0) target = $region37
    $region36: #{dense_tcn_feature_forward.11} parent=1 // pred_region
      _
    $region37: #{dense_tcn_feature_forward.11} parent=1 // pred_fallthru
      _
    // Predicated region
    $region38: #{dense_tcn_feature_forward.11} parent=1 // pred_check
      _
    $region39: #{dense_tcn_feature_forward.11} parent=1 // pred_check_branch
      %61 = sbr.rel (0) target = $region41
    $region40: #{dense_tcn_feature_forward.11} parent=1 // pred_region
      _
    $region41: #{dense_tcn_feature_forward.11} parent=1 // pred_fallthru
      _
    // Predicated region
    $region42: #{dense_tcn_feature_forward.11} parent=1 // pred_check
      _
    $region43: #{dense_tcn_feature_forward.11} parent=1 // pred_check_branch
      %63 = sbr.rel (0) target = $region45
    $region44: #{dense_tcn_feature_forward.11} parent=1 // pred_region
      %65 = vsyncadd [#allocation7], 0
      %s66 = sshll.u32 %s10, 4
      %s67 = int_to_ptr.hbm [resolvable:$true] %s66
      %s68 = sshll.u32 [#allocation8], 4
      %s69 = int_to_ptr.vmem [resolvable:$true] %s68
      %74 = dma.hbm_to_vmem [thread:$0]  %s67, 2048, %s69, [#allocation7], 64, 64, 4
    $region45: #{dense_tcn_feature_forward.11} parent=1 // pred_fallthru
      _
    // Predicated region
    $region46: #{dense_tcn_feature_forward.11} parent=1 // pred_check
      _
    $region47: #{dense_tcn_feature_forward.11} parent=1 // pred_check_branch
      %76 = sbr.rel (0) target = $region49
    $region48: #{dense_tcn_feature_forward.11} parent=1 // pred_region
      _
    $region49: #{dense_tcn_feature_forward.11} parent=1 // pred_fallthru
      _
    // Predicated region
    $region50: #{dense_tcn_feature_forward.11} parent=1 // pred_check
      _
    $region51: #{dense_tcn_feature_forward.11} parent=1 // pred_check_branch
      %78 = sbr.rel (0) target = $region53
    $region52: #{dense_tcn_feature_forward.11} parent=1 // pred_region
      _
    $region53: #{dense_tcn_feature_forward.11} parent=1 // pred_fallthru
      _
    // Predicated region
    $region54: #{dense_tcn_feature_forward.11} parent=1 // pred_check
      _
    $region55: #{dense_tcn_feature_forward.11} parent=1 // pred_check_branch
      %80 = sbr.rel (0) target = $region57
    $region56: #{dense_tcn_feature_forward.11} parent=1 // pred_region
      %82 = dma.done [#allocation5], 10240
    $region57: #{dense_tcn_feature_forward.11} parent=1 // pred_fallthru
      _
    // Predicated region
    $region58: #{dense_tcn_feature_forward.11} parent=1 // pred_check
      _
    $region59: #{dense_tcn_feature_forward.11} parent=1 // pred_check_branch
      %84 = sbr.rel (0) target = $region61
    $region60: #{dense_tcn_feature_forward.11} parent=1 // pred_region
      %86 = dma.done [#allocation7], 5120
    $region61: #{dense_tcn_feature_forward.11} parent=1 // pred_fallthru
      _
    // Predicated region
    $region62: #{dense_tcn_feature_forward.11} parent=1 // pred_check
      _
    $region63: #{dense_tcn_feature_forward.11} parent=1 // pred_check_branch
      %88 = sbr.rel (0) target = $region65
    $region64: #{dense_tcn_feature_forward.11} parent=1 // pred_region
      %90 = dma.done [#allocation7], 2048
    $region65: #{dense_tcn_feature_forward.11} parent=1 // pred_fallthru
      _
    %v92 = vld [vmem:[%s0] sm:$0xf]
    %v93 = vld [vmem:[%s0 + $0x4] sm:$0xf]
    %v96 = vunpack.c.l.b16 %v92
    %v97 = vunpack.c.l.b16 %v93
    %v98 = vpack.c.b16 %v96, %v96
    %v99 = vpack.c.b16 %v97, %v97
    %vm100 = vcmask 1043456
    %v103 = vsel %vm100, 0, %v98
    %v105 = vsel %vm100, %v99, 0
    %v108 = vunpack.c.l.b16 %v103
    %v109 = vunpack.c.h.b16 %v103
    %v110 = vunpack.c.l.b16 %v105
    %v111 = vunpack.c.h.b16 %v105
    %v112 = vpack.c.b16 %v108, %v108
    %v113 = vpack.c.b16 %v109, %v109
    %v114 = vpack.c.b16 %v110, %v110
    %v115 = vpack.c.b16 %v111, %v111
    %120 = vst [vmem:[#allocation2] sm:$0xf] %v112
    %121 = vst [vmem:[#allocation2 + $0x8] sm:$0xf] %v113
    %122 = vst [vmem:[#allocation2 + $0x10] sm:$0xf] %v114
    %123 = vst [vmem:[#allocation2 + $0x18] sm:$0xf] %v115
    %v124 = vld [vmem:[%s1] sm:$0xf]
    %v125 = vld [vmem:[%s1 + $0x4] sm:$0xf]
    %v128 = vunpack.c.l.b16 %v124
    %v129 = vunpack.c.l.b16 %v125
    %v130 = vpack.c.b16 %v128, %v128
    %v131 = vpack.c.b16 %v129, %v129
    %v133 = vsel %vm100, 0, %v130
    %v135 = vsel %vm100, %v131, 0
    %v138 = vunpack.c.l.b16 %v133
    %v139 = vunpack.c.h.b16 %v133
    %v140 = vunpack.c.l.b16 %v135
    %v141 = vunpack.c.h.b16 %v135
    %v142 = vpack.c.b16 %v138, %v138
    %v143 = vpack.c.b16 %v139, %v139
    %v144 = vpack.c.b16 %v140, %v140
    %v145 = vpack.c.b16 %v141, %v141
    %150 = vst [vmem:[#allocation2 + $0x4] sm:$0xf] %v142
    %151 = vst [vmem:[#allocation2 + $0xc] sm:$0xf] %v143
    %152 = vst [vmem:[#allocation2 + $0x14] sm:$0xf] %v144
    %153 = vst [vmem:[#allocation2 + $0x1c] sm:$0xf] %v145
    %s154 = scalar_lea.vmem %s0, 8
    %v155 = vld [vmem:[%s154] sm:$0xf]
    %v156 = vld [vmem:[%s154 + $0x4] sm:$0xf]
    %v159 = vunpack.c.l.b16 %v155
    %v160 = vunpack.c.l.b16 %v156
    %v161 = vpack.c.b16 %v159, %v159
    %v162 = vpack.c.b16 %v160, %v160
    %v164 = vsel %vm100, 0, %v161
    %v166 = vsel %vm100, %v162, 0
    %v169 = vunpack.c.l.b16 %v164
    %v170 = vunpack.c.h.b16 %v164
    %v171 = vunpack.c.l.b16 %v166
    %v172 = vunpack.c.h.b16 %v166
    %v173 = vpack.c.b16 %v169, %v169
    %v174 = vpack.c.b16 %v170, %v170
    %v175 = vpack.c.b16 %v171, %v171
    %v176 = vpack.c.b16 %v172, %v172
    %181 = vst [vmem:[#allocation2 + $0x20] sm:$0xf] %v173
    %182 = vst [vmem:[#allocation2 + $0x28] sm:$0xf] %v174
    %183 = vst [vmem:[#allocation2 + $0x30] sm:$0xf] %v175
    %184 = vst [vmem:[#allocation2 + $0x38] sm:$0xf] %v176
    %s185 = scalar_lea.vmem %s1, 8
    %v186 = vld [vmem:[%s185] sm:$0xf]
    %v187 = vld [vmem:[%s185 + $0x4] sm:$0xf]
    %v190 = vunpack.c.l.b16 %v186
    %v191 = vunpack.c.l.b16 %v187
    %v192 = vpack.c.b16 %v190, %v190
    %v193 = vpack.c.b16 %v191, %v191
    %v195 = vsel %vm100, 0, %v192
    %v197 = vsel %vm100, %v193, 0
    %v200 = vunpack.c.l.b16 %v195
    %v201 = vunpack.c.h.b16 %v195
    %v202 = vunpack.c.l.b16 %v197
    %v203 = vunpack.c.h.b16 %v197
    %v204 = vpack.c.b16 %v200, %v200
    %v205 = vpack.c.b16 %v201, %v201
    %v206 = vpack.c.b16 %v202, %v202
    %v207 = vpack.c.b16 %v203, %v203
    %212 = vst [vmem:[#allocation2 + $0x24] sm:$0xf] %v204
    %213 = vst [vmem:[#allocation2 + $0x2c] sm:$0xf] %v205
    %214 = vst [vmem:[#allocation2 + $0x34] sm:$0xf] %v206
    %215 = vst [vmem:[#allocation2 + $0x3c] sm:$0xf] %v207
    %v216 = vld [vmem:[#allocation2] sm:$0xcc]
    %v217 = vld [vmem:[#allocation2 + $0x8] sm:$0xff]
    %v218 = vld [vmem:[#allocation2 + $0x10] sm:$0xff]
    %v219 = vld [vmem:[#allocation2 + $0x18] sm:$0xff]
    %v220 = vld [vmem:[#allocation2 + $0x20] sm:$0xff]
    %v221 = vld [vmem:[#allocation2 + $0x28] sm:$0xff]
    %v222 = vld [vmem:[#allocation2 + $0x30] sm:$0x33]
    %v223 = vld [vmem:[#allocation4] sm:$0xf]
    %v224 = vld [vmem:[#allocation4 + $0x4] sm:$0xf]
    %v225 = vld [vmem:[#allocation4 + $0x8] sm:$0xf]
    %v226 = vld [vmem:[#allocation4 + $0xc] sm:$0xf]
    %v227 = vld [vmem:[#allocation4 + $0x10] sm:$0xf]
    %v228 = vld [vmem:[#allocation4 + $0x14] sm:$0xf]
    %v229 = vld [vmem:[#allocation4 + $0x18] sm:$0xf]
    %v230 = vld [vmem:[#allocation4 + $0x1c] sm:$0xf]
    %v231 = vld [vmem:[#allocation4 + $0x20] sm:$0xf]
    %v232 = vld [vmem:[#allocation4 + $0x24] sm:$0xf]
    %v233 = vld [vmem:[#allocation4 + $0x28] sm:$0xf]
    %v234 = vld [vmem:[#allocation4 + $0x2c] sm:$0xf]
    %v235 = vld [vmem:[#allocation4 + $0x30] sm:$0xf]
    %v236 = vld [vmem:[#allocation4 + $0x34] sm:$0xf]
    %v237 = vld [vmem:[#allocation4 + $0x38] sm:$0xf]
    %v238 = vld [vmem:[#allocation4 + $0x3c] sm:$0xf]
    %v239 = vld [vmem:[#allocation4 + $0x40] sm:$0xf]
    %v240 = vld [vmem:[#allocation4 + $0x44] sm:$0xf]
    %v241 = vld [vmem:[#allocation4 + $0x48] sm:$0xf]
    %v242 = vld [vmem:[#allocation4 + $0x4c] sm:$0xf]
    %v243 = vld [vmem:[#allocation4 + $0x50] sm:$0xf]
    %v244 = vld [vmem:[#allocation4 + $0x54] sm:$0xf]
    %v245 = vld [vmem:[#allocation4 + $0x58] sm:$0xf]
    %v246 = vld [vmem:[#allocation4 + $0x5c] sm:$0xf]
    %v247 = vld [vmem:[#allocation4 + $0x60] sm:$0xf]
    %v248 = vld [vmem:[#allocation4 + $0x64] sm:$0xf]
    %v249 = vld [vmem:[#allocation4 + $0x68] sm:$0xf]
    %v250 = vld [vmem:[#allocation4 + $0x6c] sm:$0xf]
    %v251 = vld [vmem:[#allocation4 + $0x70] sm:$0xf]
    %v252 = vld [vmem:[#allocation4 + $0x74] sm:$0xf]
    %v253 = vld [vmem:[#allocation4 + $0x78] sm:$0xf]
    %v254 = vld [vmem:[#allocation4 + $0x7c] sm:$0xf]
    %v255 = vld [vmem:[#allocation2] sm:$0x88]
    %v256 = vld [vmem:[#allocation2 + $0x30] sm:$0x77]
    %s257 = scalar_lea.vmem [#allocation4], 128
    %v258 = vld [vmem:[%s257] sm:$0xf]
    %v259 = vld [vmem:[%s257 + $0x4] sm:$0xf]
    %v260 = vld [vmem:[%s257 + $0x8] sm:$0xf]
    %v261 = vld [vmem:[%s257 + $0xc] sm:$0xf]
    %v262 = vld [vmem:[%s257 + $0x10] sm:$0xf]
    %v263 = vld [vmem:[%s257 + $0x14] sm:$0xf]
    %v264 = vld [vmem:[%s257 + $0x18] sm:$0xf]
    %v265 = vld [vmem:[%s257 + $0x1c] sm:$0xf]
    %v266 = vld [vmem:[%s257 + $0x20] sm:$0xf]
    %v267 = vld [vmem:[%s257 + $0x24] sm:$0xf]
    %v268 = vld [vmem:[%s257 + $0x28] sm:$0xf]
    %v269 = vld [vmem:[%s257 + $0x2c] sm:$0xf]
    %v270 = vld [vmem:[%s257 + $0x30] sm:$0xf]
    %v271 = vld [vmem:[%s257 + $0x34] sm:$0xf]
    %v272 = vld [vmem:[%s257 + $0x38] sm:$0xf]
    %v273 = vld [vmem:[%s257 + $0x3c] sm:$0xf]
    %v274 = vld [vmem:[%s257 + $0x40] sm:$0xf]
    %v275 = vld [vmem:[%s257 + $0x44] sm:$0xf]
    %v276 = vld [vmem:[%s257 + $0x48] sm:$0xf]
    %v277 = vld [vmem:[%s257 + $0x4c] sm:$0xf]
    %v278 = vld [vmem:[%s257 + $0x50] sm:$0xf]
    %v279 = vld [vmem:[%s257 + $0x54] sm:$0xf]
    %v280 = vld [vmem:[%s257 + $0x58] sm:$0xf]
    %v281 = vld [vmem:[%s257 + $0x5c] sm:$0xf]
    %v282 = vld [vmem:[%s257 + $0x60] sm:$0xf]
    %v283 = vld [vmem:[%s257 + $0x64] sm:$0xf]
    %v284 = vld [vmem:[%s257 + $0x68] sm:$0xf]
    %v285 = vld [vmem:[%s257 + $0x6c] sm:$0xf]
    %v286 = vld [vmem:[%s257 + $0x70] sm:$0xf]
    %v287 = vld [vmem:[%s257 + $0x74] sm:$0xf]
    %v288 = vld [vmem:[%s257 + $0x78] sm:$0xf]
    %v289 = vld [vmem:[%s257 + $0x7c] sm:$0xf]
    %v297 = vunpack.c.l.b16 %v255
    %v298 = vunpack.c.h.b16 %v255
    %v299 = vunpack.c.l.b16 %v217
    %v300 = vunpack.c.h.b16 %v217
    %v301 = vunpack.c.l.b16 %v218
    %v302 = vunpack.c.h.b16 %v218
    %v303 = vunpack.c.l.b16 %v219
    %v304 = vunpack.c.h.b16 %v219
    %v305 = vunpack.c.l.b16 %v220
    %v306 = vunpack.c.h.b16 %v220
    %v307 = vunpack.c.l.b16 %v221
    %v308 = vunpack.c.h.b16 %v221
    %v309 = vunpack.c.l.b16 %v256
    %v310 = vunpack.c.h.b16 %v256
    %v311 = vpack.c.b16 %v299, %v297
    %v312 = vpack.c.b16 %v300, %v298
    %v313 = vpack.c.b16 %v303, %v301
    %v314 = vpack.c.b16 %v304, %v302
    %v315 = vpack.c.b16 %v307, %v305
    %v316 = vpack.c.b16 %v308, %v306
    %v317 = vpack.c.b16 %v309, %v309
    %v318 = vpack.c.b16 %v310, %v310
    %vm319 = vcmask 1044480
    %v320 = vrot.slane %v311, 3
    %v321 = vrot.slane %v313, 3
    %v322 = vsel %vm319, %v320, %v321
    %v323 = vrot.slane %v312, 3
    %v324 = vrot.slane %v314, 3
    %v325 = vsel %vm319, %v323, %v324
    %v326 = vrot.slane %v315, 3
    %v327 = vsel %vm319, %v321, %v326
    %v328 = vrot.slane %v316, 3
    %v329 = vsel %vm319, %v324, %v328
    %v330 = vrot.slane %v317, 3
    %v331 = vsel %vm319, %v326, %v330
    %v332 = vrot.slane %v318, 3
    %v333 = vsel %vm319, %v328, %v332
    %v372 = vunpack.c.l.b16 %v258
    %v373 = vunpack.c.l.b16 %v259
    %v374 = vunpack.c.l.b16 %v260
    %v375 = vunpack.c.l.b16 %v261
    %v376 = vunpack.c.l.b16 %v262
    %v377 = vunpack.c.l.b16 %v263
    %v378 = vunpack.c.l.b16 %v264
    %v379 = vunpack.c.l.b16 %v265
    %v380 = vunpack.c.l.b16 %v266
    %v381 = vunpack.c.l.b16 %v267
    %v382 = vunpack.c.l.b16 %v268
    %v383 = vunpack.c.l.b16 %v269
    %v384 = vunpack.c.l.b16 %v270
    %v385 = vunpack.c.l.b16 %v271
    %v386 = vunpack.c.l.b16 %v272
    %v387 = vunpack.c.l.b16 %v273
    %v388 = vunpack.c.l.b16 %v274
    %v389 = vunpack.c.l.b16 %v275
    %v390 = vunpack.c.l.b16 %v276
    %v391 = vunpack.c.l.b16 %v277
    %v392 = vunpack.c.l.b16 %v278
    %v393 = vunpack.c.l.b16 %v279
    %v394 = vunpack.c.l.b16 %v280
    %v395 = vunpack.c.l.b16 %v281
    %v396 = vunpack.c.l.b16 %v282
    %v397 = vunpack.c.l.b16 %v283
    %v398 = vunpack.c.l.b16 %v284
    %v399 = vunpack.c.l.b16 %v285
    %v400 = vunpack.c.l.b16 %v286
    %v401 = vunpack.c.l.b16 %v287
    %v402 = vunpack.c.l.b16 %v288
    %v403 = vunpack.c.l.b16 %v289
    %v404 = vpack.c.b16 %v373, %v372
    %v405 = vpack.c.b16 %v375, %v374
    %v406 = vpack.c.b16 %v377, %v376
    %v407 = vpack.c.b16 %v379, %v378
    %v408 = vpack.c.b16 %v381, %v380
    %v409 = vpack.c.b16 %v383, %v382
    %v410 = vpack.c.b16 %v385, %v384
    %v411 = vpack.c.b16 %v387, %v386
    %v412 = vpack.c.b16 %v389, %v388
    %v413 = vpack.c.b16 %v391, %v390
    %v414 = vpack.c.b16 %v393, %v392
    %v415 = vpack.c.b16 %v395, %v394
    %v416 = vpack.c.b16 %v397, %v396
    %v417 = vpack.c.b16 %v399, %v398
    %v418 = vpack.c.b16 %v401, %v400
    %v419 = vpack.c.b16 %v403, %v402
    %436 = vmatpush.bf16.msra.mxu0 %v411
    %437 = vmatpush.bf16.msra.mxu0 %v410
    %438 = vmatpush.bf16.msra.mxu0 %v409
    %439 = vmatpush.bf16.msra.mxu0 %v408
    %440 = vmatpush.bf16.msra.mxu0 %v407
    %441 = vmatpush.bf16.msra.mxu0 %v406
    %442 = vmatpush.bf16.msra.mxu0 %v405
    %443 = vmatpush.bf16.msra.mxu0 %v404
    %444 = vmatmul.bf16.gmra.mxu0 %v322
    %v445 = vpop.f32.mrf.mxu0
    %v446 = vadd.f32 0.0, %v445
    %v447 = vpop.f32.mrf.mxu0
    %448 = vmatmul.bf16.gmra.mxu0 %v327
    %v449 = vpop.f32.mrf.mxu0
    %v450 = vpop.f32.mrf.mxu0
    %451 = vmatmul.bf16.gmra.mxu0 %v331
    %v452 = vpop.f32.mrf.mxu0
    %v453 = vadd.f32 0.0, %v452
    %v454 = vpop.f32.mrf.mxu0
    %455 = vdwg.mxu0
    %456 = vmatpush.bf16.msra.mxu0 %v419
    %457 = vmatpush.bf16.msra.mxu0 %v418
    %458 = vmatpush.bf16.msra.mxu0 %v417
    %459 = vmatpush.bf16.msra.mxu0 %v416
    %460 = vmatpush.bf16.msra.mxu0 %v415
    %461 = vmatpush.bf16.msra.mxu0 %v414
    %462 = vmatpush.bf16.msra.mxu0 %v413
    %463 = vmatpush.bf16.msra.mxu0 %v412
    %464 = vmatmul.bf16.gmra.mxu0 %v325
    %v465 = vpop.f32.mrf.mxu0
    %v466 = vadd.f32 %v446, %v465
    %v467 = vpop.f32.mrf.mxu0
    %468 = vmatmul.bf16.gmra.mxu0 %v329
    %v469 = vpop.f32.mrf.mxu0
    %v470 = vpop.f32.mrf.mxu0
    %471 = vmatmul.bf16.gmra.mxu0 %v333
    %v472 = vpop.f32.mrf.mxu0
    %v473 = vadd.f32 %v453, %v472
    %v474 = vpop.f32.mrf.mxu0
    %475 = vdwg.mxu0
    %v478 = vunpack.c.l.b16 %v216
    %v479 = vunpack.c.h.b16 %v216
    %v480 = vunpack.c.l.b16 %v222
    %v481 = vunpack.c.h.b16 %v222
    %v482 = vpack.c.b16 %v299, %v478
    %v483 = vpack.c.b16 %v300, %v479
    %v484 = vpack.c.b16 %v480, %v480
    %v485 = vpack.c.b16 %v481, %v481
    %vm486 = vcmask 1045504
    %v487 = vrot.slane %v482, 2
    %v488 = vrot.slane %v313, 2
    %v489 = vsel %vm486, %v487, %v488
    %v490 = vrot.slane %v483, 2
    %v491 = vrot.slane %v314, 2
    %v492 = vsel %vm486, %v490, %v491
    %v493 = vrot.slane %v315, 2
    %v494 = vsel %vm486, %v488, %v493
    %v495 = vrot.slane %v316, 2
    %v496 = vsel %vm486, %v491, %v495
    %v497 = vrot.slane %v484, 2
    %v498 = vsel %vm486, %v493, %v497
    %v499 = vrot.slane %v485, 2
    %v500 = vsel %vm486, %v495, %v499
    %v539 = vunpack.c.l.b16 %v223
    %v540 = vunpack.c.l.b16 %v224
    %v541 = vunpack.c.l.b16 %v225
    %v542 = vunpack.c.l.b16 %v226
    %v543 = vunpack.c.l.b16 %v227
    %v544 = vunpack.c.l.b16 %v228
    %v545 = vunpack.c.l.b16 %v229
    %v546 = vunpack.c.l.b16 %v230
    %v547 = vunpack.c.l.b16 %v231
    %v548 = vunpack.c.l.b16 %v232
    %v549 = vunpack.c.l.b16 %v233
    %v550 = vunpack.c.l.b16 %v234
    %v551 = vunpack.c.l.b16 %v235
    %v552 = vunpack.c.l.b16 %v236
    %v553 = vunpack.c.l.b16 %v237
    %v554 = vunpack.c.l.b16 %v238
    %v555 = vunpack.c.l.b16 %v239
    %v556 = vunpack.c.l.b16 %v240
    %v557 = vunpack.c.l.b16 %v241
    %v558 = vunpack.c.l.b16 %v242
    %v559 = vunpack.c.l.b16 %v243
    %v560 = vunpack.c.l.b16 %v244
    %v561 = vunpack.c.l.b16 %v245
    %v562 = vunpack.c.l.b16 %v246
    %v563 = vunpack.c.l.b16 %v247
    %v564 = vunpack.c.l.b16 %v248
    %v565 = vunpack.c.l.b16 %v249
    %v566 = vunpack.c.l.b16 %v250
    %v567 = vunpack.c.l.b16 %v251
    %v568 = vunpack.c.l.b16 %v252
    %v569 = vunpack.c.l.b16 %v253
    %v570 = vunpack.c.l.b16 %v254
    %v571 = vpack.c.b16 %v540, %v539
    %v572 = vpack.c.b16 %v542, %v541
    %v573 = vpack.c.b16 %v544, %v543
    %v574 = vpack.c.b16 %v546, %v545
    %v575 = vpack.c.b16 %v548, %v547
    %v576 = vpack.c.b16 %v550, %v549
    %v577 = vpack.c.b16 %v552, %v551
    %v578 = vpack.c.b16 %v554, %v553
    %v579 = vpack.c.b16 %v556, %v555
    %v580 = vpack.c.b16 %v558, %v557
    %v581 = vpack.c.b16 %v560, %v559
    %v582 = vpack.c.b16 %v562, %v561
    %v583 = vpack.c.b16 %v564, %v563
    %v584 = vpack.c.b16 %v566, %v565
    %v585 = vpack.c.b16 %v568, %v567
    %v586 = vpack.c.b16 %v570, %v569
    %603 = vmatpush.bf16.msra.mxu0 %v578
    %604 = vmatpush.bf16.msra.mxu0 %v577
    %605 = vmatpush.bf16.msra.mxu0 %v576
    %606 = vmatpush.bf16.msra.mxu0 %v575
    %607 = vmatpush.bf16.msra.mxu0 %v574
    %608 = vmatpush.bf16.msra.mxu0 %v573
    %609 = vmatpush.bf16.msra.mxu0 %v572
    %610 = vmatpush.bf16.msra.mxu0 %v571
    %611 = vmatmul.bf16.gmra.mxu0 %v489
    %v612 = vpop.f32.mrf.mxu0
    %v613 = vadd.f32 %v466, %v612
    %v614 = vpop.f32.mrf.mxu0
    %615 = vmatmul.bf16.gmra.mxu0 %v494
    %v616 = vpop.f32.mrf.mxu0
    %v617 = vpop.f32.mrf.mxu0
    %618 = vmatmul.bf16.gmra.mxu0 %v498
    %v619 = vpop.f32.mrf.mxu0
    %v620 = vadd.f32 %v473, %v619
    %v621 = vpop.f32.mrf.mxu0
    %622 = vdwg.mxu0
    %623 = vmatpush.bf16.msra.mxu0 %v586
    %624 = vmatpush.bf16.msra.mxu0 %v585
    %625 = vmatpush.bf16.msra.mxu0 %v584
    %626 = vmatpush.bf16.msra.mxu0 %v583
    %627 = vmatpush.bf16.msra.mxu0 %v582
    %628 = vmatpush.bf16.msra.mxu0 %v581
    %629 = vmatpush.bf16.msra.mxu0 %v580
    %630 = vmatpush.bf16.msra.mxu0 %v579
    %631 = vmatmul.bf16.gmra.mxu0 %v492
    %v632 = vpop.f32.mrf.mxu0
    %v633 = vadd.f32 %v613, %v632
    %v634 = vpop.f32.mrf.mxu0
    %635 = vmatmul.bf16.gmra.mxu0 %v496
    %v636 = vpop.f32.mrf.mxu0
    %v637 = vpop.f32.mrf.mxu0
    %638 = vmatmul.bf16.gmra.mxu0 %v500
    %v639 = vpop.f32.mrf.mxu0
    %v640 = vadd.f32 %v620, %v639
    %v641 = vpop.f32.mrf.mxu0
    %642 = vdwg.mxu0
    %v643 = vld [vmem:[#allocation2 + $0x30] sm:$0xff]
    %s644 = scalar_lea.vmem [#allocation4], 256
    %v645 = vld [vmem:[%s644] sm:$0xf]
    %v646 = vld [vmem:[%s644 + $0x4] sm:$0xf]
    %v647 = vld [vmem:[%s644 + $0x8] sm:$0xf]
    %v648 = vld [vmem:[%s644 + $0xc] sm:$0xf]
    %v649 = vld [vmem:[%s644 + $0x10] sm:$0xf]
    %v650 = vld [vmem:[%s644 + $0x14] sm:$0xf]
    %v651 = vld [vmem:[%s644 + $0x18] sm:$0xf]
    %v652 = vld [vmem:[%s644 + $0x1c] sm:$0xf]
    %v653 = vld [vmem:[%s644 + $0x20] sm:$0xf]
    %v654 = vld [vmem:[%s644 + $0x24] sm:$0xf]
    %v655 = vld [vmem:[%s644 + $0x28] sm:$0xf]
    %v656 = vld [vmem:[%s644 + $0x2c] sm:$0xf]
    %v657 = vld [vmem:[%s644 + $0x30] sm:$0xf]
    %v658 = vld [vmem:[%s644 + $0x34] sm:$0xf]
    %v659 = vld [vmem:[%s644 + $0x38] sm:$0xf]
    %v660 = vld [vmem:[%s644 + $0x3c] sm:$0xf]
    %v661 = vld [vmem:[%s644 + $0x40] sm:$0xf]
    %v662 = vld [vmem:[%s644 + $0x44] sm:$0xf]
    %v663 = vld [vmem:[%s644 + $0x48] sm:$0xf]
    %v664 = vld [vmem:[%s644 + $0x4c] sm:$0xf]
    %v665 = vld [vmem:[%s644 + $0x50] sm:$0xf]
    %v666 = vld [vmem:[%s644 + $0x54] sm:$0xf]
    %v667 = vld [vmem:[%s644 + $0x58] sm:$0xf]
    %v668 = vld [vmem:[%s644 + $0x5c] sm:$0xf]
    %v669 = vld [vmem:[%s644 + $0x60] sm:$0xf]
    %v670 = vld [vmem:[%s644 + $0x64] sm:$0xf]
    %v671 = vld [vmem:[%s644 + $0x68] sm:$0xf]
    %v672 = vld [vmem:[%s644 + $0x6c] sm:$0xf]
    %v673 = vld [vmem:[%s644 + $0x70] sm:$0xf]
    %v674 = vld [vmem:[%s644 + $0x74] sm:$0xf]
    %v675 = vld [vmem:[%s644 + $0x78] sm:$0xf]
    %v676 = vld [vmem:[%s644 + $0x7c] sm:$0xf]
    %v678 = vunpack.c.l.b16 %v643
    %v679 = vunpack.c.h.b16 %v643
    %v680 = vpack.c.b16 %v301, %v299
    %v681 = vpack.c.b16 %v302, %v300
    %v682 = vpack.c.b16 %v305, %v303
    %v683 = vpack.c.b16 %v306, %v304
    %v684 = vpack.c.b16 %v678, %v307
    %v685 = vpack.c.b16 %v679, %v308
    %v724 = vunpack.c.l.b16 %v645
    %v725 = vunpack.c.l.b16 %v646
    %v726 = vunpack.c.l.b16 %v647
    %v727 = vunpack.c.l.b16 %v648
    %v728 = vunpack.c.l.b16 %v649
    %v729 = vunpack.c.l.b16 %v650
    %v730 = vunpack.c.l.b16 %v651
    %v731 = vunpack.c.l.b16 %v652
    %v732 = vunpack.c.l.b16 %v653
    %v733 = vunpack.c.l.b16 %v654
    %v734 = vunpack.c.l.b16 %v655
    %v735 = vunpack.c.l.b16 %v656
    %v736 = vunpack.c.l.b16 %v657
    %v737 = vunpack.c.l.b16 %v658
    %v738 = vunpack.c.l.b16 %v659
    %v739 = vunpack.c.l.b16 %v660
    %v740 = vunpack.c.l.b16 %v661
    %v741 = vunpack.c.l.b16 %v662
    %v742 = vunpack.c.l.b16 %v663
    %v743 = vunpack.c.l.b16 %v664
    %v744 = vunpack.c.l.b16 %v665
    %v745 = vunpack.c.l.b16 %v666
    %v746 = vunpack.c.l.b16 %v667
    %v747 = vunpack.c.l.b16 %v668
    %v748 = vunpack.c.l.b16 %v669
    %v749 = vunpack.c.l.b16 %v670
    %v750 = vunpack.c.l.b16 %v671
    %v751 = vunpack.c.l.b16 %v672
    %v752 = vunpack.c.l.b16 %v673
    %v753 = vunpack.c.l.b16 %v674
    %v754 = vunpack.c.l.b16 %v675
    %v755 = vunpack.c.l.b16 %v676
    %v756 = vpack.c.b16 %v725, %v724
    %v757 = vpack.c.b16 %v727, %v726
    %v758 = vpack.c.b16 %v729, %v728
    %v759 = vpack.c.b16 %v731, %v730
    %v760 = vpack.c.b16 %v733, %v732
    %v761 = vpack.c.b16 %v735, %v734
    %v762 = vpack.c.b16 %v737, %v736
    %v763 = vpack.c.b16 %v739, %v738
    %v764 = vpack.c.b16 %v741, %v740
    %v765 = vpack.c.b16 %v743, %v742
    %v766 = vpack.c.b16 %v745, %v744
    %v767 = vpack.c.b16 %v747, %v746
    %v768 = vpack.c.b16 %v749, %v748
    %v769 = vpack.c.b16 %v751, %v750
    %v770 = vpack.c.b16 %v753, %v752
    %v771 = vpack.c.b16 %v755, %v754
    %788 = vmatpush.bf16.msra.mxu0 %v763
    %789 = vmatpush.bf16.msra.mxu0 %v762
    %790 = vmatpush.bf16.msra.mxu0 %v761
    %791 = vmatpush.bf16.msra.mxu0 %v760
    %792 = vmatpush.bf16.msra.mxu0 %v759
    %793 = vmatpush.bf16.msra.mxu0 %v758
    %794 = vmatpush.bf16.msra.mxu0 %v757
    %795 = vmatpush.bf16.msra.mxu0 %v756
    %796 = vmatmul.bf16.gmra.mxu0 %v680
    %v797 = vpop.f32.mrf.mxu0
    %v798 = vadd.f32 0.0, %v797
    %v799 = vpop.f32.mrf.mxu0
    %800 = vmatmul.bf16.gmra.mxu0 %v682
    %v801 = vpop.f32.mrf.mxu0
    %v802 = vpop.f32.mrf.mxu0
    %803 = vmatmul.bf16.gmra.mxu0 %v684
    %v804 = vpop.f32.mrf.mxu0
    %v805 = vadd.f32 0.0, %v804
    %v806 = vpop.f32.mrf.mxu0
    %807 = vdwg.mxu0
    %808 = vmatpush.bf16.msra.mxu0 %v771
    %809 = vmatpush.bf16.msra.mxu0 %v770
    %810 = vmatpush.bf16.msra.mxu0 %v769
    %811 = vmatpush.bf16.msra.mxu0 %v768
    %812 = vmatpush.bf16.msra.mxu0 %v767
    %813 = vmatpush.bf16.msra.mxu0 %v766
    %814 = vmatpush.bf16.msra.mxu0 %v765
    %815 = vmatpush.bf16.msra.mxu0 %v764
    %816 = vmatmul.bf16.gmra.mxu0 %v681
    %v817 = vpop.f32.mrf.mxu0
    %v818 = vadd.f32 %v798, %v817
    %v819 = vpop.f32.mrf.mxu0
    %820 = vmatmul.bf16.gmra.mxu0 %v683
    %v821 = vpop.f32.mrf.mxu0
    %v822 = vpop.f32.mrf.mxu0
    %823 = vmatmul.bf16.gmra.mxu0 %v685
    %v824 = vpop.f32.mrf.mxu0
    %v825 = vadd.f32 %v805, %v824
    %v826 = vpop.f32.mrf.mxu0
    %827 = vdwg.mxu0
    %v828 = vadd.f32 %v633, %v818
    %v829 = vadd.f32 %v640, %v825
    %v830 = vld [vmem:[#allocation2 + $0x8] sm:$0xee]
    %v831 = vld [vmem:[#allocation2 + $0x10] sm:$0xff]
    %v832 = vld [vmem:[#allocation2 + $0x18] sm:$0xff]
    %v833 = vld [vmem:[#allocation2 + $0x20] sm:$0xff]
    %v834 = vld [vmem:[#allocation2 + $0x28] sm:$0xff]
    %v835 = vld [vmem:[#allocation2 + $0x30] sm:$0xff]
    %v836 = vld [vmem:[#allocation2 + $0x38] sm:$0x11]
    %s837 = scalar_lea.vmem [#allocation4], 384
    %v838 = vld [vmem:[%s837] sm:$0xf]
    %v839 = vld [vmem:[%s837 + $0x4] sm:$0xf]
    %v840 = vld [vmem:[%s837 + $0x8] sm:$0xf]
    %v841 = vld [vmem:[%s837 + $0xc] sm:$0xf]
    %v842 = vld [vmem:[%s837 + $0x10] sm:$0xf]
    %v843 = vld [vmem:[%s837 + $0x14] sm:$0xf]
    %v844 = vld [vmem:[%s837 + $0x18] sm:$0xf]
    %v845 = vld [vmem:[%s837 + $0x1c] sm:$0xf]
    %v846 = vld [vmem:[%s837 + $0x20] sm:$0xf]
    %v847 = vld [vmem:[%s837 + $0x24] sm:$0xf]
    %v848 = vld [vmem:[%s837 + $0x28] sm:$0xf]
    %v849 = vld [vmem:[%s837 + $0x2c] sm:$0xf]
    %v850 = vld [vmem:[%s837 + $0x30] sm:$0xf]
    %v851 = vld [vmem:[%s837 + $0x34] sm:$0xf]
    %v852 = vld [vmem:[%s837 + $0x38] sm:$0xf]
    %v853 = vld [vmem:[%s837 + $0x3c] sm:$0xf]
    %v854 = vld [vmem:[%s837 + $0x40] sm:$0xf]
    %v855 = vld [vmem:[%s837 + $0x44] sm:$0xf]
    %v856 = vld [vmem:[%s837 + $0x48] sm:$0xf]
    %v857 = vld [vmem:[%s837 + $0x4c] sm:$0xf]
    %v858 = vld [vmem:[%s837 + $0x50] sm:$0xf]
    %v859 = vld [vmem:[%s837 + $0x54] sm:$0xf]
    %v860 = vld [vmem:[%s837 + $0x58] sm:$0xf]
    %v861 = vld [vmem:[%s837 + $0x5c] sm:$0xf]
    %v862 = vld [vmem:[%s837 + $0x60] sm:$0xf]
    %v863 = vld [vmem:[%s837 + $0x64] sm:$0xf]
    %v864 = vld [vmem:[%s837 + $0x68] sm:$0xf]
    %v865 = vld [vmem:[%s837 + $0x6c] sm:$0xf]
    %v866 = vld [vmem:[%s837 + $0x70] sm:$0xf]
    %v867 = vld [vmem:[%s837 + $0x74] sm:$0xf]
    %v868 = vld [vmem:[%s837 + $0x78] sm:$0xf]
    %v869 = vld [vmem:[%s837 + $0x7c] sm:$0xf]
    %v877 = vunpack.c.l.b16 %v830
    %v878 = vunpack.c.h.b16 %v830
    %v879 = vunpack.c.l.b16 %v831
    %v880 = vunpack.c.h.b16 %v831
    %v881 = vunpack.c.l.b16 %v832
    %v882 = vunpack.c.h.b16 %v832
    %v883 = vunpack.c.l.b16 %v833
    %v884 = vunpack.c.h.b16 %v833
    %v885 = vunpack.c.l.b16 %v834
    %v886 = vunpack.c.h.b16 %v834
    %v887 = vunpack.c.l.b16 %v835
    %v888 = vunpack.c.h.b16 %v835
    %v889 = vunpack.c.l.b16 %v836
    %v890 = vunpack.c.h.b16 %v836
    %v891 = vpack.c.b16 %v879, %v877
    %v892 = vpack.c.b16 %v880, %v878
    %v893 = vpack.c.b16 %v883, %v881
    %v894 = vpack.c.b16 %v884, %v882
    %v895 = vpack.c.b16 %v887, %v885
    %v896 = vpack.c.b16 %v888, %v886
    %v897 = vpack.c.b16 %v889, %v889
    %v898 = vpack.c.b16 %v890, %v890
    %vm899 = vcmask 1046528
    %v900 = vrot.slane %v891, 1
    %v901 = vrot.slane %v893, 1
    %v902 = vsel %vm899, %v900, %v901
    %v903 = vrot.slane %v892, 1
    %v904 = vrot.slane %v894, 1
    %v905 = vsel %vm899, %v903, %v904
    %v906 = vrot.slane %v895, 1
    %v907 = vsel %vm899, %v901, %v906
    %v908 = vrot.slane %v896, 1
    %v909 = vsel %vm899, %v904, %v908
    %v910 = vrot.slane %v897, 1
    %v911 = vsel %vm899, %v906, %v910
    %v912 = vrot.slane %v898, 1
    %v913 = vsel %vm899, %v908, %v912
    %v952 = vunpack.c.l.b16 %v838
    %v953 = vunpack.c.l.b16 %v839
    %v954 = vunpack.c.l.b16 %v840
    %v955 = vunpack.c.l.b16 %v841
    %v956 = vunpack.c.l.b16 %v842
    %v957 = vunpack.c.l.b16 %v843
    %v958 = vunpack.c.l.b16 %v844
    %v959 = vunpack.c.l.b16 %v845
    %v960 = vunpack.c.l.b16 %v846
    %v961 = vunpack.c.l.b16 %v847
    %v962 = vunpack.c.l.b16 %v848
    %v963 = vunpack.c.l.b16 %v849
    %v964 = vunpack.c.l.b16 %v850
    %v965 = vunpack.c.l.b16 %v851
    %v966 = vunpack.c.l.b16 %v852
    %v967 = vunpack.c.l.b16 %v853
    %v968 = vunpack.c.l.b16 %v854
    %v969 = vunpack.c.l.b16 %v855
    %v970 = vunpack.c.l.b16 %v856
    %v971 = vunpack.c.l.b16 %v857
    %v972 = vunpack.c.l.b16 %v858
    %v973 = vunpack.c.l.b16 %v859
    %v974 = vunpack.c.l.b16 %v860
    %v975 = vunpack.c.l.b16 %v861
    %v976 = vunpack.c.l.b16 %v862
    %v977 = vunpack.c.l.b16 %v863
    %v978 = vunpack.c.l.b16 %v864
    %v979 = vunpack.c.l.b16 %v865
    %v980 = vunpack.c.l.b16 %v866
    %v981 = vunpack.c.l.b16 %v867
    %v982 = vunpack.c.l.b16 %v868
    %v983 = vunpack.c.l.b16 %v869
    %v984 = vpack.c.b16 %v953, %v952
    %v985 = vpack.c.b16 %v955, %v954
    %v986 = vpack.c.b16 %v957, %v956
    %v987 = vpack.c.b16 %v959, %v958
    %v988 = vpack.c.b16 %v961, %v960
    %v989 = vpack.c.b16 %v963, %v962
    %v990 = vpack.c.b16 %v965, %v964
    %v991 = vpack.c.b16 %v967, %v966
    %v992 = vpack.c.b16 %v969, %v968
    %v993 = vpack.c.b16 %v971, %v970
    %v994 = vpack.c.b16 %v973, %v972
    %v995 = vpack.c.b16 %v975, %v974
    %v996 = vpack.c.b16 %v977, %v976
    %v997 = vpack.c.b16 %v979, %v978
    %v998 = vpack.c.b16 %v981, %v980
    %v999 = vpack.c.b16 %v983, %v982
    %1016 = vmatpush.bf16.msra.mxu0 %v991
    %1017 = vmatpush.bf16.msra.mxu0 %v990
    %1018 = vmatpush.bf16.msra.mxu0 %v989
    %1019 = vmatpush.bf16.msra.mxu0 %v988
    %1020 = vmatpush.bf16.msra.mxu0 %v987
    %1021 = vmatpush.bf16.msra.mxu0 %v986
    %1022 = vmatpush.bf16.msra.mxu0 %v985
    %1023 = vmatpush.bf16.msra.mxu0 %v984
    %1024 = vmatmul.bf16.gmra.mxu0 %v902
    %v1025 = vpop.f32.mrf.mxu0
    %v1026 = vadd.f32 0.0, %v1025
    %v1027 = vpop.f32.mrf.mxu0
    %1028 = vmatmul.bf16.gmra.mxu0 %v907
    %v1029 = vpop.f32.mrf.mxu0
    %v1030 = vpop.f32.mrf.mxu0
    %1031 = vmatmul.bf16.gmra.mxu0 %v911
    %v1032 = vpop.f32.mrf.mxu0
    %v1033 = vadd.f32 0.0, %v1032
    %v1034 = vpop.f32.mrf.mxu0
    %1035 = vdwg.mxu0
    %1036 = vmatpush.bf16.msra.mxu0 %v999
    %1037 = vmatpush.bf16.msra.mxu0 %v998
    %1038 = vmatpush.bf16.msra.mxu0 %v997
    %1039 = vmatpush.bf16.msra.mxu0 %v996
    %1040 = vmatpush.bf16.msra.mxu0 %v995
    %1041 = vmatpush.bf16.msra.mxu0 %v994
    %1042 = vmatpush.bf16.msra.mxu0 %v993
    %1043 = vmatpush.bf16.msra.mxu0 %v992
    %1044 = vmatmul.bf16.gmra.mxu0 %v905
    %v1045 = vpop.f32.mrf.mxu0
    %v1046 = vadd.f32 %v1026, %v1045
    %v1047 = vpop.f32.mrf.mxu0
    %1048 = vmatmul.bf16.gmra.mxu0 %v909
    %v1049 = vpop.f32.mrf.mxu0
    %v1050 = vpop.f32.mrf.mxu0
    %1051 = vmatmul.bf16.gmra.mxu0 %v913
    %v1052 = vpop.f32.mrf.mxu0
    %v1053 = vadd.f32 %v1033, %v1052
    %v1054 = vpop.f32.mrf.mxu0
    %1055 = vdwg.mxu0
    %v1056 = vadd.f32 %v828, %v1046
    %v1057 = vadd.f32 %v829, %v1053
    %v1058 = vld [vmem:[#allocation2 + $0x8] sm:$0xcc]
    %v1059 = vld [vmem:[#allocation2 + $0x38] sm:$0x33]
    %s1060 = scalar_lea.vmem [#allocation4], 512
    %v1061 = vld [vmem:[%s1060] sm:$0xf]
    %v1062 = vld [vmem:[%s1060 + $0x4] sm:$0xf]
    %v1063 = vld [vmem:[%s1060 + $0x8] sm:$0xf]
    %v1064 = vld [vmem:[%s1060 + $0xc] sm:$0xf]
    %v1065 = vld [vmem:[%s1060 + $0x10] sm:$0xf]
    %v1066 = vld [vmem:[%s1060 + $0x14] sm:$0xf]
    %v1067 = vld [vmem:[%s1060 + $0x18] sm:$0xf]
    %v1068 = vld [vmem:[%s1060 + $0x1c] sm:$0xf]
    %v1069 = vld [vmem:[%s1060 + $0x20] sm:$0xf]
    %v1070 = vld [vmem:[%s1060 + $0x24] sm:$0xf]
    %v1071 = vld [vmem:[%s1060 + $0x28] sm:$0xf]
    %v1072 = vld [vmem:[%s1060 + $0x2c] sm:$0xf]
    %v1073 = vld [vmem:[%s1060 + $0x30] sm:$0xf]
    %v1074 = vld [vmem:[%s1060 + $0x34] sm:$0xf]
    %v1075 = vld [vmem:[%s1060 + $0x38] sm:$0xf]
    %v1076 = vld [vmem:[%s1060 + $0x3c] sm:$0xf]
    %v1077 = vld [vmem:[%s1060 + $0x40] sm:$0xf]
    %v1078 = vld [vmem:[%s1060 + $0x44] sm:$0xf]
    %v1079 = vld [vmem:[%s1060 + $0x48] sm:$0xf]
    %v1080 = vld [vmem:[%s1060 + $0x4c] sm:$0xf]
    %v1081 = vld [vmem:[%s1060 + $0x50] sm:$0xf]
    %v1082 = vld [vmem:[%s1060 + $0x54] sm:$0xf]
    %v1083 = vld [vmem:[%s1060 + $0x58] sm:$0xf]
    %v1084 = vld [vmem:[%s1060 + $0x5c] sm:$0xf]
    %v1085 = vld [vmem:[%s1060 + $0x60] sm:$0xf]
    %v1086 = vld [vmem:[%s1060 + $0x64] sm:$0xf]
    %v1087 = vld [vmem:[%s1060 + $0x68] sm:$0xf]
    %v1088 = vld [vmem:[%s1060 + $0x6c] sm:$0xf]
    %v1089 = vld [vmem:[%s1060 + $0x70] sm:$0xf]
    %v1090 = vld [vmem:[%s1060 + $0x74] sm:$0xf]
    %v1091 = vld [vmem:[%s1060 + $0x78] sm:$0xf]
    %v1092 = vld [vmem:[%s1060 + $0x7c] sm:$0xf]
    %v1095 = vunpack.c.l.b16 %v1058
    %v1096 = vunpack.c.h.b16 %v1058
    %v1097 = vunpack.c.l.b16 %v1059
    %v1098 = vunpack.c.h.b16 %v1059
    %v1099 = vpack.c.b16 %v879, %v1095
    %v1100 = vpack.c.b16 %v880, %v1096
    %v1101 = vpack.c.b16 %v1097, %v1097
    %v1102 = vpack.c.b16 %v1098, %v1098
    %v1103 = vrot.slane %v1099, 2
    %v1104 = vrot.slane %v893, 2
    %v1105 = vsel %vm486, %v1103, %v1104
    %v1106 = vrot.slane %v1100, 2
    %v1107 = vrot.slane %v894, 2
    %v1108 = vsel %vm486, %v1106, %v1107
    %v1109 = vrot.slane %v895, 2
    %v1110 = vsel %vm486, %v1104, %v1109
    %v1111 = vrot.slane %v896, 2
    %v1112 = vsel %vm486, %v1107, %v1111
    %v1113 = vrot.slane %v1101, 2
    %v1114 = vsel %vm486, %v1109, %v1113
    %v1115 = vrot.slane %v1102, 2
    %v1116 = vsel %vm486, %v1111, %v1115
    %v1155 = vunpack.c.l.b16 %v1061
    %v1156 = vunpack.c.l.b16 %v1062
    %v1157 = vunpack.c.l.b16 %v1063
    %v1158 = vunpack.c.l.b16 %v1064
    %v1159 = vunpack.c.l.b16 %v1065
    %v1160 = vunpack.c.l.b16 %v1066
    %v1161 = vunpack.c.l.b16 %v1067
    %v1162 = vunpack.c.l.b16 %v1068
    %v1163 = vunpack.c.l.b16 %v1069
    %v1164 = vunpack.c.l.b16 %v1070
    %v1165 = vunpack.c.l.b16 %v1071
    %v1166 = vunpack.c.l.b16 %v1072
    %v1167 = vunpack.c.l.b16 %v1073
    %v1168 = vunpack.c.l.b16 %v1074
    %v1169 = vunpack.c.l.b16 %v1075
    %v1170 = vunpack.c.l.b16 %v1076
    %v1171 = vunpack.c.l.b16 %v1077
    %v1172 = vunpack.c.l.b16 %v1078
    %v1173 = vunpack.c.l.b16 %v1079
    %v1174 = vunpack.c.l.b16 %v1080
    %v1175 = vunpack.c.l.b16 %v1081
    %v1176 = vunpack.c.l.b16 %v1082
    %v1177 = vunpack.c.l.b16 %v1083
    %v1178 = vunpack.c.l.b16 %v1084
    %v1179 = vunpack.c.l.b16 %v1085
    %v1180 = vunpack.c.l.b16 %v1086
    %v1181 = vunpack.c.l.b16 %v1087
    %v1182 = vunpack.c.l.b16 %v1088
    %v1183 = vunpack.c.l.b16 %v1089
    %v1184 = vunpack.c.l.b16 %v1090
    %v1185 = vunpack.c.l.b16 %v1091
    %v1186 = vunpack.c.l.b16 %v1092
    %v1187 = vpack.c.b16 %v1156, %v1155
    %v1188 = vpack.c.b16 %v1158, %v1157
    %v1189 = vpack.c.b16 %v1160, %v1159
    %v1190 = vpack.c.b16 %v1162, %v1161
    %v1191 = vpack.c.b16 %v1164, %v1163
    %v1192 = vpack.c.b16 %v1166, %v1165
    %v1193 = vpack.c.b16 %v1168, %v1167
    %v1194 = vpack.c.b16 %v1170, %v1169
    %v1195 = vpack.c.b16 %v1172, %v1171
    %v1196 = vpack.c.b16 %v1174, %v1173
    %v1197 = vpack.c.b16 %v1176, %v1175
    %v1198 = vpack.c.b16 %v1178, %v1177
    %v1199 = vpack.c.b16 %v1180, %v1179
    %v1200 = vpack.c.b16 %v1182, %v1181
    %v1201 = vpack.c.b16 %v1184, %v1183
    %v1202 = vpack.c.b16 %v1186, %v1185
    %1219 = vmatpush.bf16.msra.mxu0 %v1194
    %1220 = vmatpush.bf16.msra.mxu0 %v1193
    %1221 = vmatpush.bf16.msra.mxu0 %v1192
    %1222 = vmatpush.bf16.msra.mxu0 %v1191
    %1223 = vmatpush.bf16.msra.mxu0 %v1190
    %1224 = vmatpush.bf16.msra.mxu0 %v1189
    %1225 = vmatpush.bf16.msra.mxu0 %v1188
    %1226 = vmatpush.bf16.msra.mxu0 %v1187
    %1227 = vmatmul.bf16.gmra.mxu0 %v1105
    %v1228 = vpop.f32.mrf.mxu0
    %v1229 = vadd.f32 0.0, %v1228
    %v1230 = vpop.f32.mrf.mxu0
    %1231 = vmatmul.bf16.gmra.mxu0 %v1110
    %v1232 = vpop.f32.mrf.mxu0
    %v1233 = vpop.f32.mrf.mxu0
    %1234 = vmatmul.bf16.gmra.mxu0 %v1114
    %v1235 = vpop.f32.mrf.mxu0
    %v1236 = vadd.f32 0.0, %v1235
    %v1237 = vpop.f32.mrf.mxu0
    %1238 = vdwg.mxu0
    %1239 = vmatpush.bf16.msra.mxu0 %v1202
    %1240 = vmatpush.bf16.msra.mxu0 %v1201
    %1241 = vmatpush.bf16.msra.mxu0 %v1200
    %1242 = vmatpush.bf16.msra.mxu0 %v1199
    %1243 = vmatpush.bf16.msra.mxu0 %v1198
    %1244 = vmatpush.bf16.msra.mxu0 %v1197
    %1245 = vmatpush.bf16.msra.mxu0 %v1196
    %1246 = vmatpush.bf16.msra.mxu0 %v1195
    %1247 = vmatmul.bf16.gmra.mxu0 %v1108
    %v1248 = vpop.f32.mrf.mxu0
    %v1249 = vadd.f32 %v1229, %v1248
    %v1250 = vpop.f32.mrf.mxu0
    %1251 = vmatmul.bf16.gmra.mxu0 %v1112
    %v1252 = vpop.f32.mrf.mxu0
    %v1253 = vpop.f32.mrf.mxu0
    %1254 = vmatmul.bf16.gmra.mxu0 %v1116
    %v1255 = vpop.f32.mrf.mxu0
    %v1256 = vadd.f32 %v1236, %v1255
    %v1257 = vpop.f32.mrf.mxu0
    %1258 = vdwg.mxu0
    %v1259 = vadd.f32 %v1056, %v1249
    %v1260 = vadd.f32 %v1057, %v1256
    %v1261 = vld [vmem:[%s3] sm:$0x1]
    %v1263 = vperm.slane %v1261, 0
    %v1265 = vmul.f32 %v1259, %v1263
    %v1266 = vmul.f32 %v1260, %v1263
    %v1267 = vld [vmem:[%s4] sm:$0x1]
    %v1269 = vperm.slane %v1267, 0
    %v1271 = vadd.f32 %v1265, %v1269
    %v1272 = vadd.f32 %v1266, %v1269
    %v1273 = vld [vmem:[%s5] sm:$0x1]
    %vm1274 = vcmp.ge.f32.partialorder %v1271, 0.0
    %vm1275 = vcmp.ge.f32.partialorder %v1272, 0.0
    %v1277 = vperm.slane %v1273, 0
    %v1279 = vmul.f32 %v1277, %v1271
    %v1280 = vmul.f32 %v1277, %v1272
    %v1281 = vsel %vm1274, %v1271, %v1279
    %v1282 = vsel %vm1275, %v1272, %v1280
    %v1283 = vpack.c.bf16 0.0, 0.0
    %v1284 = vpack.c.bf16 %v1281, %v1281
    %1285 = vst [vmem:[#allocation3] sm:$0xf] %v1283
    %1286 = vst [vmem:[#allocation3 + $0x4] sm:$0xf] %v1284
    %1287 = vst [vmem:[#allocation3 + $0x8] sm:$0xf] %v1283
    %1288 = vst [vmem:[#allocation3 + $0xc] sm:$0xf] %v1283
    %v1289 = vpack.c.bf16 %v1282, %v1282
    %1290 = vst [vmem:[#allocation3 + $0x10] sm:$0xf] %v1283
    %1291 = vst [vmem:[#allocation3 + $0x14] sm:$0xf] %v1289
    %1292 = vst [vmem:[#allocation3 + $0x18] sm:$0xf] %v1283
    %1293 = vst [vmem:[#allocation3 + $0x1c] sm:$0xf] %v1283
    %v1294 = vld [vmem:[#allocation3] sm:$0xc]
    %v1295 = vld [vmem:[#allocation3 + $0x4] sm:$0xf]
    %v1296 = vld [vmem:[#allocation3 + $0x8] sm:$0xf]
    %v1297 = vld [vmem:[#allocation3 + $0xc] sm:$0xf]
    %v1298 = vld [vmem:[#allocation3 + $0x10] sm:$0xf]
    %v1299 = vld [vmem:[#allocation3 + $0x14] sm:$0xf]
    %v1300 = vld [vmem:[#allocation3 + $0x18] sm:$0x3]
    %v1301 = vld [vmem:[#allocation6] sm:$0xf]
    %v1302 = vld [vmem:[#allocation6 + $0x4] sm:$0xf]
    %v1303 = vld [vmem:[#allocation6 + $0x8] sm:$0xf]
    %v1304 = vld [vmem:[#allocation6 + $0xc] sm:$0xf]
    %v1305 = vld [vmem:[#allocation6 + $0x10] sm:$0xf]
    %v1306 = vld [vmem:[#allocation6 + $0x14] sm:$0xf]
    %v1307 = vld [vmem:[#allocation6 + $0x18] sm:$0xf]
    %v1308 = vld [vmem:[#allocation6 + $0x1c] sm:$0xf]
    %v1309 = vld [vmem:[#allocation6 + $0x20] sm:$0xf]
    %v1310 = vld [vmem:[#allocation6 + $0x24] sm:$0xf]
    %v1311 = vld [vmem:[#allocation6 + $0x28] sm:$0xf]
    %v1312 = vld [vmem:[#allocation6 + $0x2c] sm:$0xf]
    %v1313 = vld [vmem:[#allocation6 + $0x30] sm:$0xf]
    %v1314 = vld [vmem:[#allocation6 + $0x34] sm:$0xf]
    %v1315 = vld [vmem:[#allocation6 + $0x38] sm:$0xf]
    %v1316 = vld [vmem:[#allocation6 + $0x3c] sm:$0xf]
    %v1317 = vld [vmem:[#allocation3] sm:$0x8]
    %v1318 = vld [vmem:[#allocation3 + $0x18] sm:$0x7]
    %s1319 = scalar_lea.vmem [#allocation6], 64
    %v1320 = vld [vmem:[%s1319] sm:$0xf]
    %v1321 = vld [vmem:[%s1319 + $0x4] sm:$0xf]
    %v1322 = vld [vmem:[%s1319 + $0x8] sm:$0xf]
    %v1323 = vld [vmem:[%s1319 + $0xc] sm:$0xf]
    %v1324 = vld [vmem:[%s1319 + $0x10] sm:$0xf]
    %v1325 = vld [vmem:[%s1319 + $0x14] sm:$0xf]
    %v1326 = vld [vmem:[%s1319 + $0x18] sm:$0xf]
    %v1327 = vld [vmem:[%s1319 + $0x1c] sm:$0xf]
    %v1328 = vld [vmem:[%s1319 + $0x20] sm:$0xf]
    %v1329 = vld [vmem:[%s1319 + $0x24] sm:$0xf]
    %v1330 = vld [vmem:[%s1319 + $0x28] sm:$0xf]
    %v1331 = vld [vmem:[%s1319 + $0x2c] sm:$0xf]
    %v1332 = vld [vmem:[%s1319 + $0x30] sm:$0xf]
    %v1333 = vld [vmem:[%s1319 + $0x34] sm:$0xf]
    %v1334 = vld [vmem:[%s1319 + $0x38] sm:$0xf]
    %v1335 = vld [vmem:[%s1319 + $0x3c] sm:$0xf]
    %v1343 = vunpack.c.l.b16 %v1317
    %v1344 = vunpack.c.l.b16 %v1295
    %v1345 = vunpack.c.l.b16 %v1296
    %v1346 = vunpack.c.l.b16 %v1297
    %v1347 = vunpack.c.l.b16 %v1298
    %v1348 = vunpack.c.l.b16 %v1299
    %v1349 = vunpack.c.l.b16 %v1318
    %v1350 = vpack.c.b16 %v1344, %v1343
    %v1351 = vpack.c.b16 %v1346, %v1345
    %v1352 = vpack.c.b16 %v1348, %v1347
    %v1353 = vpack.c.b16 %v1349, %v1349
    %v1354 = vrot.slane %v1350, 3
    %v1355 = vrot.slane %v1351, 3
    %v1356 = vsel %vm319, %v1354, %v1355
    %v1357 = vrot.slane %v1352, 3
    %v1358 = vsel %vm319, %v1355, %v1357
    %v1359 = vrot.slane %v1353, 3
    %v1360 = vsel %vm319, %v1357, %v1359
    %v1380 = vunpack.c.l.b16 %v1320
    %v1381 = vunpack.c.l.b16 %v1321
    %v1382 = vunpack.c.l.b16 %v1322
    %v1383 = vunpack.c.l.b16 %v1323
    %v1384 = vunpack.c.l.b16 %v1324
    %v1385 = vunpack.c.l.b16 %v1325
    %v1386 = vunpack.c.l.b16 %v1326
    %v1387 = vunpack.c.l.b16 %v1327
    %v1388 = vunpack.c.l.b16 %v1328
    %v1389 = vunpack.c.l.b16 %v1329
    %v1390 = vunpack.c.l.b16 %v1330
    %v1391 = vunpack.c.l.b16 %v1331
    %v1392 = vunpack.c.l.b16 %v1332
    %v1393 = vunpack.c.l.b16 %v1333
    %v1394 = vunpack.c.l.b16 %v1334
    %v1395 = vunpack.c.l.b16 %v1335
    %v1396 = vpack.c.b16 %v1381, %v1380
    %v1397 = vpack.c.b16 %v1383, %v1382
    %v1398 = vpack.c.b16 %v1385, %v1384
    %v1399 = vpack.c.b16 %v1387, %v1386
    %v1400 = vpack.c.b16 %v1389, %v1388
    %v1401 = vpack.c.b16 %v1391, %v1390
    %v1402 = vpack.c.b16 %v1393, %v1392
    %v1403 = vpack.c.b16 %v1395, %v1394
    %1412 = vmatpush.bf16.msra.mxu0 %v1403
    %1413 = vmatpush.bf16.msra.mxu0 %v1402
    %1414 = vmatpush.bf16.msra.mxu0 %v1401
    %1415 = vmatpush.bf16.msra.mxu0 %v1400
    %1416 = vmatpush.bf16.msra.mxu0 %v1399
    %1417 = vmatpush.bf16.msra.mxu0 %v1398
    %1418 = vmatpush.bf16.msra.mxu0 %v1397
    %1419 = vmatpush.bf16.msra.mxu0 %v1396
    %1420 = vmatmul.bf16.gmra.mxu0 %v1356
    %v1421 = vpop.f32.mrf.mxu0
    %v1422 = vadd.f32 0.0, %v1421
    %v1423 = vpop.f32.mrf.mxu0
    %1424 = vmatmul.bf16.gmra.mxu0 %v1358
    %v1425 = vpop.f32.mrf.mxu0
    %v1426 = vpop.f32.mrf.mxu0
    %1427 = vmatmul.bf16.gmra.mxu0 %v1360
    %v1428 = vpop.f32.mrf.mxu0
    %v1429 = vadd.f32 0.0, %v1428
    %v1430 = vpop.f32.mrf.mxu0
    %1431 = vdwg.mxu0
    %v1434 = vunpack.c.l.b16 %v1294
    %v1435 = vunpack.c.l.b16 %v1300
    %v1436 = vpack.c.b16 %v1344, %v1434
    %v1437 = vpack.c.b16 %v1435, %v1435
    %v1438 = vrot.slane %v1436, 2
    %v1439 = vrot.slane %v1351, 2
    %v1440 = vsel %vm486, %v1438, %v1439
    %v1441 = vrot.slane %v1352, 2
    %v1442 = vsel %vm486, %v1439, %v1441
    %v1443 = vrot.slane %v1437, 2
    %v1444 = vsel %vm486, %v1441, %v1443
    %v1464 = vunpack.c.l.b16 %v1301
    %v1465 = vunpack.c.l.b16 %v1302
    %v1466 = vunpack.c.l.b16 %v1303
    %v1467 = vunpack.c.l.b16 %v1304
    %v1468 = vunpack.c.l.b16 %v1305
    %v1469 = vunpack.c.l.b16 %v1306
    %v1470 = vunpack.c.l.b16 %v1307
    %v1471 = vunpack.c.l.b16 %v1308
    %v1472 = vunpack.c.l.b16 %v1309
    %v1473 = vunpack.c.l.b16 %v1310
    %v1474 = vunpack.c.l.b16 %v1311
    %v1475 = vunpack.c.l.b16 %v1312
    %v1476 = vunpack.c.l.b16 %v1313
    %v1477 = vunpack.c.l.b16 %v1314
    %v1478 = vunpack.c.l.b16 %v1315
    %v1479 = vunpack.c.l.b16 %v1316
    %v1480 = vpack.c.b16 %v1465, %v1464
    %v1481 = vpack.c.b16 %v1467, %v1466
    %v1482 = vpack.c.b16 %v1469, %v1468
    %v1483 = vpack.c.b16 %v1471, %v1470
    %v1484 = vpack.c.b16 %v1473, %v1472
    %v1485 = vpack.c.b16 %v1475, %v1474
    %v1486 = vpack.c.b16 %v1477, %v1476
    %v1487 = vpack.c.b16 %v1479, %v1478
    %1496 = vmatpush.bf16.msra.mxu0 %v1487
    %1497 = vmatpush.bf16.msra.mxu0 %v1486
    %1498 = vmatpush.bf16.msra.mxu0 %v1485
    %1499 = vmatpush.bf16.msra.mxu0 %v1484
    %1500 = vmatpush.bf16.msra.mxu0 %v1483
    %1501 = vmatpush.bf16.msra.mxu0 %v1482
    %1502 = vmatpush.bf16.msra.mxu0 %v1481
    %1503 = vmatpush.bf16.msra.mxu0 %v1480
    %1504 = vmatmul.bf16.gmra.mxu0 %v1440
    %v1505 = vpop.f32.mrf.mxu0
    %v1506 = vadd.f32 %v1422, %v1505
    %v1507 = vpop.f32.mrf.mxu0
    %1508 = vmatmul.bf16.gmra.mxu0 %v1442
    %v1509 = vpop.f32.mrf.mxu0
    %v1510 = vpop.f32.mrf.mxu0
    %1511 = vmatmul.bf16.gmra.mxu0 %v1444
    %v1512 = vpop.f32.mrf.mxu0
    %v1513 = vadd.f32 %v1429, %v1512
    %v1514 = vpop.f32.mrf.mxu0
    %1515 = vdwg.mxu0
    %v1516 = vld [vmem:[#allocation3 + $0x18] sm:$0xf]
    %s1517 = scalar_lea.vmem [#allocation6], 128
    %v1518 = vld [vmem:[%s1517] sm:$0xf]
    %v1519 = vld [vmem:[%s1517 + $0x4] sm:$0xf]
    %v1520 = vld [vmem:[%s1517 + $0x8] sm:$0xf]
    %v1521 = vld [vmem:[%s1517 + $0xc] sm:$0xf]
    %v1522 = vld [vmem:[%s1517 + $0x10] sm:$0xf]
    %v1523 = vld [vmem:[%s1517 + $0x14] sm:$0xf]
    %v1524 = vld [vmem:[%s1517 + $0x18] sm:$0xf]
    %v1525 = vld [vmem:[%s1517 + $0x1c] sm:$0xf]
    %v1526 = vld [vmem:[%s1517 + $0x20] sm:$0xf]
    %v1527 = vld [vmem:[%s1517 + $0x24] sm:$0xf]
    %v1528 = vld [vmem:[%s1517 + $0x28] sm:$0xf]
    %v1529 = vld [vmem:[%s1517 + $0x2c] sm:$0xf]
    %v1530 = vld [vmem:[%s1517 + $0x30] sm:$0xf]
    %v1531 = vld [vmem:[%s1517 + $0x34] sm:$0xf]
    %v1532 = vld [vmem:[%s1517 + $0x38] sm:$0xf]
    %v1533 = vld [vmem:[%s1517 + $0x3c] sm:$0xf]
    %v1535 = vunpack.c.l.b16 %v1516
    %v1536 = vpack.c.b16 %v1345, %v1344
    %v1537 = vpack.c.b16 %v1347, %v1346
    %v1538 = vpack.c.b16 %v1535, %v1348
    %v1558 = vunpack.c.l.b16 %v1518
    %v1559 = vunpack.c.l.b16 %v1519
    %v1560 = vunpack.c.l.b16 %v1520
    %v1561 = vunpack.c.l.b16 %v1521
    %v1562 = vunpack.c.l.b16 %v1522
    %v1563 = vunpack.c.l.b16 %v1523
    %v1564 = vunpack.c.l.b16 %v1524
    %v1565 = vunpack.c.l.b16 %v1525
    %v1566 = vunpack.c.l.b16 %v1526
    %v1567 = vunpack.c.l.b16 %v1527
    %v1568 = vunpack.c.l.b16 %v1528
    %v1569 = vunpack.c.l.b16 %v1529
    %v1570 = vunpack.c.l.b16 %v1530
    %v1571 = vunpack.c.l.b16 %v1531
    %v1572 = vunpack.c.l.b16 %v1532
    %v1573 = vunpack.c.l.b16 %v1533
    %v1574 = vpack.c.b16 %v1559, %v1558
    %v1575 = vpack.c.b16 %v1561, %v1560
    %v1576 = vpack.c.b16 %v1563, %v1562
    %v1577 = vpack.c.b16 %v1565, %v1564
    %v1578 = vpack.c.b16 %v1567, %v1566
    %v1579 = vpack.c.b16 %v1569, %v1568
    %v1580 = vpack.c.b16 %v1571, %v1570
    %v1581 = vpack.c.b16 %v1573, %v1572
    %1590 = vmatpush.bf16.msra.mxu0 %v1581
    %1591 = vmatpush.bf16.msra.mxu0 %v1580
    %1592 = vmatpush.bf16.msra.mxu0 %v1579
    %1593 = vmatpush.bf16.msra.mxu0 %v1578
    %1594 = vmatpush.bf16.msra.mxu0 %v1577
    %1595 = vmatpush.bf16.msra.mxu0 %v1576
    %1596 = vmatpush.bf16.msra.mxu0 %v1575
    %1597 = vmatpush.bf16.msra.mxu0 %v1574
    %1598 = vmatmul.bf16.gmra.mxu0 %v1536
    %v1599 = vpop.f32.mrf.mxu0
    %v1600 = vadd.f32 0.0, %v1599
    %v1601 = vpop.f32.mrf.mxu0
    %1602 = vmatmul.bf16.gmra.mxu0 %v1537
    %v1603 = vpop.f32.mrf.mxu0
    %v1604 = vpop.f32.mrf.mxu0
    %1605 = vmatmul.bf16.gmra.mxu0 %v1538
    %v1606 = vpop.f32.mrf.mxu0
    %v1607 = vadd.f32 0.0, %v1606
    %v1608 = vpop.f32.mrf.mxu0
    %1609 = vdwg.mxu0
    %v1610 = vadd.f32 %v1506, %v1600
    %v1611 = vadd.f32 %v1513, %v1607
    %v1612 = vld [vmem:[#allocation3 + $0x4] sm:$0xe]
    %v1613 = vld [vmem:[#allocation3 + $0x8] sm:$0xf]
    %v1614 = vld [vmem:[#allocation3 + $0xc] sm:$0xf]
    %v1615 = vld [vmem:[#allocation3 + $0x10] sm:$0xf]
    %v1616 = vld [vmem:[#allocation3 + $0x14] sm:$0xf]
    %v1617 = vld [vmem:[#allocation3 + $0x18] sm:$0xf]
    %v1618 = vld [vmem:[#allocation3 + $0x1c] sm:$0x1]
    %s1619 = scalar_lea.vmem [#allocation6], 192
    %v1620 = vld [vmem:[%s1619] sm:$0xf]
    %v1621 = vld [vmem:[%s1619 + $0x4] sm:$0xf]
    %v1622 = vld [vmem:[%s1619 + $0x8] sm:$0xf]
    %v1623 = vld [vmem:[%s1619 + $0xc] sm:$0xf]
    %v1624 = vld [vmem:[%s1619 + $0x10] sm:$0xf]
    %v1625 = vld [vmem:[%s1619 + $0x14] sm:$0xf]
    %v1626 = vld [vmem:[%s1619 + $0x18] sm:$0xf]
    %v1627 = vld [vmem:[%s1619 + $0x1c] sm:$0xf]
    %v1628 = vld [vmem:[%s1619 + $0x20] sm:$0xf]
    %v1629 = vld [vmem:[%s1619 + $0x24] sm:$0xf]
    %v1630 = vld [vmem:[%s1619 + $0x28] sm:$0xf]
    %v1631 = vld [vmem:[%s1619 + $0x2c] sm:$0xf]
    %v1632 = vld [vmem:[%s1619 + $0x30] sm:$0xf]
    %v1633 = vld [vmem:[%s1619 + $0x34] sm:$0xf]
    %v1634 = vld [vmem:[%s1619 + $0x38] sm:$0xf]
    %v1635 = vld [vmem:[%s1619 + $0x3c] sm:$0xf]
    %v1643 = vunpack.c.l.b16 %v1612
    %v1644 = vunpack.c.l.b16 %v1613
    %v1645 = vunpack.c.l.b16 %v1614
    %v1646 = vunpack.c.l.b16 %v1615
    %v1647 = vunpack.c.l.b16 %v1616
    %v1648 = vunpack.c.l.b16 %v1617
    %v1649 = vunpack.c.l.b16 %v1618
    %v1650 = vpack.c.b16 %v1644, %v1643
    %v1651 = vpack.c.b16 %v1646, %v1645
    %v1652 = vpack.c.b16 %v1648, %v1647
    %v1653 = vpack.c.b16 %v1649, %v1649
    %v1654 = vrot.slane %v1650, 1
    %v1655 = vrot.slane %v1651, 1
    %v1656 = vsel %vm899, %v1654, %v1655
    %v1657 = vrot.slane %v1652, 1
    %v1658 = vsel %vm899, %v1655, %v1657
    %v1659 = vrot.slane %v1653, 1
    %v1660 = vsel %vm899, %v1657, %v1659
    %v1680 = vunpack.c.l.b16 %v1620
    %v1681 = vunpack.c.l.b16 %v1621
    %v1682 = vunpack.c.l.b16 %v1622
    %v1683 = vunpack.c.l.b16 %v1623
    %v1684 = vunpack.c.l.b16 %v1624
    %v1685 = vunpack.c.l.b16 %v1625
    %v1686 = vunpack.c.l.b16 %v1626
    %v1687 = vunpack.c.l.b16 %v1627
    %v1688 = vunpack.c.l.b16 %v1628
    %v1689 = vunpack.c.l.b16 %v1629
    %v1690 = vunpack.c.l.b16 %v1630
    %v1691 = vunpack.c.l.b16 %v1631
    %v1692 = vunpack.c.l.b16 %v1632
    %v1693 = vunpack.c.l.b16 %v1633
    %v1694 = vunpack.c.l.b16 %v1634
    %v1695 = vunpack.c.l.b16 %v1635
    %v1696 = vpack.c.b16 %v1681, %v1680
    %v1697 = vpack.c.b16 %v1683, %v1682
    %v1698 = vpack.c.b16 %v1685, %v1684
    %v1699 = vpack.c.b16 %v1687, %v1686
    %v1700 = vpack.c.b16 %v1689, %v1688
    %v1701 = vpack.c.b16 %v1691, %v1690
    %v1702 = vpack.c.b16 %v1693, %v1692
    %v1703 = vpack.c.b16 %v1695, %v1694
    %1712 = vmatpush.bf16.msra.mxu0 %v1703
    %1713 = vmatpush.bf16.msra.mxu0 %v1702
    %1714 = vmatpush.bf16.msra.mxu0 %v1701
    %1715 = vmatpush.bf16.msra.mxu0 %v1700
    %1716 = vmatpush.bf16.msra.mxu0 %v1699
    %1717 = vmatpush.bf16.msra.mxu0 %v1698
    %1718 = vmatpush.bf16.msra.mxu0 %v1697
    %1719 = vmatpush.bf16.msra.mxu0 %v1696
    %1720 = vmatmul.bf16.gmra.mxu0 %v1656
    %v1721 = vpop.f32.mrf.mxu0
    %v1722 = vadd.f32 0.0, %v1721
    %v1723 = vpop.f32.mrf.mxu0
    %1724 = vmatmul.bf16.gmra.mxu0 %v1658
    %v1725 = vpop.f32.mrf.mxu0
    %v1726 = vpop.f32.mrf.mxu0
    %1727 = vmatmul.bf16.gmra.mxu0 %v1660
    %v1728 = vpop.f32.mrf.mxu0
    %v1729 = vadd.f32 0.0, %v1728
    %v1730 = vpop.f32.mrf.mxu0
    %1731 = vdwg.mxu0
    %v1732 = vadd.f32 %v1610, %v1722
    %v1733 = vadd.f32 %v1611, %v1729
    %v1734 = vld [vmem:[#allocation3 + $0x4] sm:$0xc]
    %v1735 = vld [vmem:[#allocation3 + $0x1c] sm:$0x3]
    %s1736 = scalar_lea.vmem [#allocation6], 256
    %v1737 = vld [vmem:[%s1736] sm:$0xf]
    %v1738 = vld [vmem:[%s1736 + $0x4] sm:$0xf]
    %v1739 = vld [vmem:[%s1736 + $0x8] sm:$0xf]
    %v1740 = vld [vmem:[%s1736 + $0xc] sm:$0xf]
    %v1741 = vld [vmem:[%s1736 + $0x10] sm:$0xf]
    %v1742 = vld [vmem:[%s1736 + $0x14] sm:$0xf]
    %v1743 = vld [vmem:[%s1736 + $0x18] sm:$0xf]
    %v1744 = vld [vmem:[%s1736 + $0x1c] sm:$0xf]
    %v1745 = vld [vmem:[%s1736 + $0x20] sm:$0xf]
    %v1746 = vld [vmem:[%s1736 + $0x24] sm:$0xf]
    %v1747 = vld [vmem:[%s1736 + $0x28] sm:$0xf]
    %v1748 = vld [vmem:[%s1736 + $0x2c] sm:$0xf]
    %v1749 = vld [vmem:[%s1736 + $0x30] sm:$0xf]
    %v1750 = vld [vmem:[%s1736 + $0x34] sm:$0xf]
    %v1751 = vld [vmem:[%s1736 + $0x38] sm:$0xf]
    %v1752 = vld [vmem:[%s1736 + $0x3c] sm:$0xf]
    %v1755 = vunpack.c.l.b16 %v1734
    %v1756 = vunpack.c.l.b16 %v1735
    %v1757 = vpack.c.b16 %v1644, %v1755
    %v1758 = vpack.c.b16 %v1756, %v1756
    %v1759 = vrot.slane %v1757, 2
    %v1760 = vrot.slane %v1651, 2
    %v1761 = vsel %vm486, %v1759, %v1760
    %v1762 = vrot.slane %v1652, 2
    %v1763 = vsel %vm486, %v1760, %v1762
    %v1764 = vrot.slane %v1758, 2
    %v1765 = vsel %vm486, %v1762, %v1764
    %v1785 = vunpack.c.l.b16 %v1737
    %v1786 = vunpack.c.l.b16 %v1738
    %v1787 = vunpack.c.l.b16 %v1739
    %v1788 = vunpack.c.l.b16 %v1740
    %v1789 = vunpack.c.l.b16 %v1741
    %v1790 = vunpack.c.l.b16 %v1742
    %v1791 = vunpack.c.l.b16 %v1743
    %v1792 = vunpack.c.l.b16 %v1744
    %v1793 = vunpack.c.l.b16 %v1745
    %v1794 = vunpack.c.l.b16 %v1746
    %v1795 = vunpack.c.l.b16 %v1747
    %v1796 = vunpack.c.l.b16 %v1748
    %v1797 = vunpack.c.l.b16 %v1749
    %v1798 = vunpack.c.l.b16 %v1750
    %v1799 = vunpack.c.l.b16 %v1751
    %v1800 = vunpack.c.l.b16 %v1752
    %v1801 = vpack.c.b16 %v1786, %v1785
    %v1802 = vpack.c.b16 %v1788, %v1787
    %v1803 = vpack.c.b16 %v1790, %v1789
    %v1804 = vpack.c.b16 %v1792, %v1791
    %v1805 = vpack.c.b16 %v1794, %v1793
    %v1806 = vpack.c.b16 %v1796, %v1795
    %v1807 = vpack.c.b16 %v1798, %v1797
    %v1808 = vpack.c.b16 %v1800, %v1799
    %1817 = vmatpush.bf16.msra.mxu0 %v1808
    %1818 = vmatpush.bf16.msra.mxu0 %v1807
    %1819 = vmatpush.bf16.msra.mxu0 %v1806
    %1820 = vmatpush.bf16.msra.mxu0 %v1805
    %1821 = vmatpush.bf16.msra.mxu0 %v1804
    %1822 = vmatpush.bf16.msra.mxu0 %v1803
    %1823 = vmatpush.bf16.msra.mxu0 %v1802
    %1824 = vmatpush.bf16.msra.mxu0 %v1801
    %1825 = vmatmul.bf16.gmra.mxu0 %v1761
    %v1826 = vpop.f32.mrf.mxu0
    %v1827 = vadd.f32 0.0, %v1826
    %v1828 = vpop.f32.mrf.mxu0
    %1829 = vmatmul.bf16.gmra.mxu0 %v1763
    %v1830 = vpop.f32.mrf.mxu0
    %v1831 = vpop.f32.mrf.mxu0
    %1832 = vmatmul.bf16.gmra.mxu0 %v1765
    %v1833 = vpop.f32.mrf.mxu0
    %v1834 = vadd.f32 0.0, %v1833
    %v1835 = vpop.f32.mrf.mxu0
    %1836 = vdwg.mxu0
    %v1837 = vadd.f32 %v1732, %v1827
    %v1838 = vadd.f32 %v1733, %v1834
    %v1839 = vld [vmem:[%s7] sm:$0x1]
    %v1841 = vperm.slane %v1839, 0
    %v1843 = vmul.f32 %v1837, %v1841
    %v1844 = vmul.f32 %v1838, %v1841
    %v1845 = vld [vmem:[%s8] sm:$0x1]
    %v1847 = vperm.slane %v1845, 0
    %v1849 = vadd.f32 %v1843, %v1847
    %v1850 = vadd.f32 %v1844, %v1847
    %v1851 = vld [vmem:[%s9] sm:$0x1]
    %vm1852 = vcmp.ge.f32.partialorder %v1849, 0.0
    %vm1853 = vcmp.ge.f32.partialorder %v1850, 0.0
    %v1855 = vperm.slane %v1851, 0
    %v1857 = vmul.f32 %v1855, %v1849
    %v1858 = vmul.f32 %v1855, %v1850
    %v1859 = vsel %vm1852, %v1849, %v1857
    %v1860 = vsel %vm1853, %v1850, %v1858
    %v1861 = vld [vmem:[#allocation2 + $0x8] sm:$0xff]
    %v1862 = vld [vmem:[#allocation2 + $0x10] sm:$0xff]
    %v1863 = vld [vmem:[#allocation2 + $0x18] sm:$0xff]
    %v1864 = vld [vmem:[#allocation2 + $0x20] sm:$0xff]
    %v1865 = vld [vmem:[#allocation2 + $0x28] sm:$0xff]
    %v1866 = vld [vmem:[#allocation2 + $0x30] sm:$0xff]
    %v1867 = vld [vmem:[#allocation8] sm:$0xf]
    %v1868 = vld [vmem:[#allocation8 + $0x4] sm:$0xf]
    %v1869 = vld [vmem:[#allocation8 + $0x8] sm:$0xf]
    %v1870 = vld [vmem:[#allocation8 + $0xc] sm:$0xf]
    %v1871 = vld [vmem:[#allocation8 + $0x10] sm:$0xf]
    %v1872 = vld [vmem:[#allocation8 + $0x14] sm:$0xf]
    %v1873 = vld [vmem:[#allocation8 + $0x18] sm:$0xf]
    %v1874 = vld [vmem:[#allocation8 + $0x1c] sm:$0xf]
    %v1875 = vld [vmem:[#allocation8 + $0x20] sm:$0xf]
    %v1876 = vld [vmem:[#allocation8 + $0x24] sm:$0xf]
    %v1877 = vld [vmem:[#allocation8 + $0x28] sm:$0xf]
    %v1878 = vld [vmem:[#allocation8 + $0x2c] sm:$0xf]
    %v1879 = vld [vmem:[#allocation8 + $0x30] sm:$0xf]
    %v1880 = vld [vmem:[#allocation8 + $0x34] sm:$0xf]
    %v1881 = vld [vmem:[#allocation8 + $0x38] sm:$0xf]
    %v1882 = vld [vmem:[#allocation8 + $0x3c] sm:$0xf]
    %v1883 = vld [vmem:[#allocation8 + $0x40] sm:$0xf]
    %v1884 = vld [vmem:[#allocation8 + $0x44] sm:$0xf]
    %v1885 = vld [vmem:[#allocation8 + $0x48] sm:$0xf]
    %v1886 = vld [vmem:[#allocation8 + $0x4c] sm:$0xf]
    %v1887 = vld [vmem:[#allocation8 + $0x50] sm:$0xf]
    %v1888 = vld [vmem:[#allocation8 + $0x54] sm:$0xf]
    %v1889 = vld [vmem:[#allocation8 + $0x58] sm:$0xf]
    %v1890 = vld [vmem:[#allocation8 + $0x5c] sm:$0xf]
    %v1891 = vld [vmem:[#allocation8 + $0x60] sm:$0xf]
    %v1892 = vld [vmem:[#allocation8 + $0x64] sm:$0xf]
    %v1893 = vld [vmem:[#allocation8 + $0x68] sm:$0xf]
    %v1894 = vld [vmem:[#allocation8 + $0x6c] sm:$0xf]
    %v1895 = vld [vmem:[#allocation8 + $0x70] sm:$0xf]
    %v1896 = vld [vmem:[#allocation8 + $0x74] sm:$0xf]
    %v1897 = vld [vmem:[#allocation8 + $0x78] sm:$0xf]
    %v1898 = vld [vmem:[#allocation8 + $0x7c] sm:$0xf]
    %v1899 = vld [vmem:[%s11] sm:$0x1]
    %v1901 = vperm.slane %v1899, 0
    %v1909 = vunpack.c.l.b16 %v1861
    %v1910 = vunpack.c.h.b16 %v1861
    %v1911 = vunpack.c.l.b16 %v1862
    %v1912 = vunpack.c.h.b16 %v1862
    %v1913 = vunpack.c.l.b16 %v1863
    %v1914 = vunpack.c.h.b16 %v1863
    %v1915 = vunpack.c.l.b16 %v1864
    %v1916 = vunpack.c.h.b16 %v1864
    %v1917 = vunpack.c.l.b16 %v1865
    %v1918 = vunpack.c.h.b16 %v1865
    %v1919 = vunpack.c.l.b16 %v1866
    %v1920 = vunpack.c.h.b16 %v1866
    %v1921 = vpack.c.b16 %v1911, %v1909
    %v1922 = vpack.c.b16 %v1912, %v1910
    %v1923 = vpack.c.b16 %v1915, %v1913
    %v1924 = vpack.c.b16 %v1916, %v1914
    %v1925 = vpack.c.b16 %v1919, %v1917
    %v1926 = vpack.c.b16 %v1920, %v1918
    %v1965 = vunpack.c.l.b16 %v1867
    %v1966 = vunpack.c.l.b16 %v1868
    %v1967 = vunpack.c.l.b16 %v1869
    %v1968 = vunpack.c.l.b16 %v1870
    %v1969 = vunpack.c.l.b16 %v1871
    %v1970 = vunpack.c.l.b16 %v1872
    %v1971 = vunpack.c.l.b16 %v1873
    %v1972 = vunpack.c.l.b16 %v1874
    %v1973 = vunpack.c.l.b16 %v1875
    %v1974 = vunpack.c.l.b16 %v1876
    %v1975 = vunpack.c.l.b16 %v1877
    %v1976 = vunpack.c.l.b16 %v1878
    %v1977 = vunpack.c.l.b16 %v1879
    %v1978 = vunpack.c.l.b16 %v1880
    %v1979 = vunpack.c.l.b16 %v1881
    %v1980 = vunpack.c.l.b16 %v1882
    %v1981 = vunpack.c.l.b16 %v1883
    %v1982 = vunpack.c.l.b16 %v1884
    %v1983 = vunpack.c.l.b16 %v1885
    %v1984 = vunpack.c.l.b16 %v1886
    %v1985 = vunpack.c.l.b16 %v1887
    %v1986 = vunpack.c.l.b16 %v1888
    %v1987 = vunpack.c.l.b16 %v1889
    %v1988 = vunpack.c.l.b16 %v1890
    %v1989 = vunpack.c.l.b16 %v1891
    %v1990 = vunpack.c.l.b16 %v1892
    %v1991 = vunpack.c.l.b16 %v1893
    %v1992 = vunpack.c.l.b16 %v1894
    %v1993 = vunpack.c.l.b16 %v1895
    %v1994 = vunpack.c.l.b16 %v1896
    %v1995 = vunpack.c.l.b16 %v1897
    %v1996 = vunpack.c.l.b16 %v1898
    %v1997 = vpack.c.b16 %v1966, %v1965
    %v1998 = vpack.c.b16 %v1968, %v1967
    %v1999 = vpack.c.b16 %v1970, %v1969
    %v2000 = vpack.c.b16 %v1972, %v1971
    %v2001 = vpack.c.b16 %v1974, %v1973
    %v2002 = vpack.c.b16 %v1976, %v1975
    %v2003 = vpack.c.b16 %v1978, %v1977
    %v2004 = vpack.c.b16 %v1980, %v1979
    %v2005 = vpack.c.b16 %v1982, %v1981
    %v2006 = vpack.c.b16 %v1984, %v1983
    %v2007 = vpack.c.b16 %v1986, %v1985
    %v2008 = vpack.c.b16 %v1988, %v1987
    %v2009 = vpack.c.b16 %v1990, %v1989
    %v2010 = vpack.c.b16 %v1992, %v1991
    %v2011 = vpack.c.b16 %v1994, %v1993
    %v2012 = vpack.c.b16 %v1996, %v1995
    %2029 = vmatpush.bf16.msra.mxu0 %v2004
    %2030 = vmatpush.bf16.msra.mxu0 %v2003
    %2031 = vmatpush.bf16.msra.mxu0 %v2002
    %2032 = vmatpush.bf16.msra.mxu0 %v2001
    %2033 = vmatpush.bf16.msra.mxu0 %v2000
    %2034 = vmatpush.bf16.msra.mxu0 %v1999
    %2035 = vmatpush.bf16.msra.mxu0 %v1998
    %2036 = vmatpush.bf16.msra.mxu0 %v1997
    %2037 = vmatmul.bf16.gmra.mxu0 %v1921
    %v2038 = vpop.f32.mrf.mxu0
    %v2039 = vadd.f32 %v1901, %v2038
    %v2040 = vpop.f32.mrf.mxu0
    %2041 = vmatmul.bf16.gmra.mxu0 %v1923
    %v2042 = vpop.f32.mrf.mxu0
    %v2043 = vpop.f32.mrf.mxu0
    %2044 = vmatmul.bf16.gmra.mxu0 %v1925
    %v2045 = vpop.f32.mrf.mxu0
    %v2046 = vadd.f32 %v1901, %v2045
    %v2047 = vpop.f32.mrf.mxu0
    %2048 = vdwg.mxu0
    %2049 = vmatpush.bf16.msra.mxu0 %v2012
    %2050 = vmatpush.bf16.msra.mxu0 %v2011
    %2051 = vmatpush.bf16.msra.mxu0 %v2010
    %2052 = vmatpush.bf16.msra.mxu0 %v2009
    %2053 = vmatpush.bf16.msra.mxu0 %v2008
    %2054 = vmatpush.bf16.msra.mxu0 %v2007
    %2055 = vmatpush.bf16.msra.mxu0 %v2006
    %2056 = vmatpush.bf16.msra.mxu0 %v2005
    %2057 = vmatmul.bf16.gmra.mxu0 %v1922
    %v2058 = vpop.f32.mrf.mxu0
    %v2059 = vadd.f32 %v2039, %v2058
    %v2060 = vpop.f32.mrf.mxu0
    %2061 = vmatmul.bf16.gmra.mxu0 %v1924
    %v2062 = vpop.f32.mrf.mxu0
    %v2063 = vpop.f32.mrf.mxu0
    %2064 = vmatmul.bf16.gmra.mxu0 %v1926
    %v2065 = vpop.f32.mrf.mxu0
    %v2066 = vadd.f32 %v2046, %v2065
    %v2067 = vpop.f32.mrf.mxu0
    %2068 = vdwg.mxu0
    %v2069 = vadd.f32 %v1859, %v2059
    %v2070 = vld [vmem:[%s12] sm:$0x1]
    %vm2071 = vcmp.ge.f32.partialorder %v2069, 0.0
    %v2073 = vperm.slane %v2070, 0
    %v2075 = vmul.f32 %v2073, %v2069
    %v2076 = vsel %vm2071, %v2069, %v2075
    %v2077 = vpack.c.bf16 %v2076, %v2076
    %2078 = vst [vmem:[%s13] sm:$0xf] %v2077
    %2079 = vst [vmem:[%s13 + $0x4] sm:$0xf] %v1283
    %v2080 = vadd.f32 %v1860, %v2066
    %v2081 = vld [vmem:[%s12] sm:$0x1]
    %vm2082 = vcmp.ge.f32.partialorder %v2080, 0.0
    %v2084 = vperm.slane %v2081, 0
    %v2086 = vmul.f32 %v2084, %v2080
    %v2087 = vsel %vm2082, %v2080, %v2086
    %v2088 = vpack.c.bf16 %v2087, %v2087
    %s2089 = scalar_lea.vmem %s13, 8
    %2090 = vst [vmem:[%s2089] sm:$0xf] %v2088
    %2091 = vst [vmem:[%s2089 + $0x4] sm:$0xf] %v1283
    // Predicated region
    $region66: #{dense_tcn_feature_forward.11} parent=1 // pred_check
      _
    $region67: #{dense_tcn_feature_forward.11} parent=1 // pred_check_branch
      %2093 = sbr.rel (0) target = $region69
    $region68: #{dense_tcn_feature_forward.11} parent=1 // pred_region
      _
    $region69: #{dense_tcn_feature_forward.11} parent=1 // pred_fallthru
      _
    // Predicated region
    $region70: #{dense_tcn_feature_forward.11} parent=1 // pred_check
      _
    $region71: #{dense_tcn_feature_forward.11} parent=1 // pred_check_branch
      %2095 = sbr.rel (0) target = $region73
    $region72: #{dense_tcn_feature_forward.11} parent=1 // pred_region
      _
    $region73: #{dense_tcn_feature_forward.11} parent=1 // pred_fallthru
      _
    %2096 = vsyncpa [#allocation5], 1
    %2097 = vsyncpa [#allocation7], 1

</llo_original>
